<compile_context>
chip_gen: v7x
topology: tpu7x:2x2x1
jax: 0.10.0
libtpu: 0.0.40
codegen_flags: <defaults>
</compile_context>

<pallas_src>
import jax
import jax.numpy as jnp
from jax import lax
from jax.experimental import pallas as pl
from jax.experimental.pallas import tpu as pltpu

# ----------------------- small, forward-consistent config -------------------
N_SRC_VOCAB = 20
N_TGT_VOCAB = 10          # V  (tgt_array = arange(n_tgt_vocab))
D_MODEL = 32
D_INNER = 64
N_HEAD = 4
D_K = D_MODEL // N_HEAD
NUM_RELNS = 2             # len(adjs); reln_array = arange(3 * num_relns)
BATCH = 2
SRC_LEN = 8
LN_EPS = 1e-6

_LANES = 128
_VMEM_LIMIT = 32 * 1024 * 1024   # safe on v5e/v6e/v7x, far above actual use

# ------------------------------ slab layouts ---------------------------------
# embedding slab rows (sublane-aligned offsets)
_EMB_SRC, _EMB_TGT, _EMB_REL, _EMB_ROWS = 0, 24, 40, 48
# w32 slab: weights with a 32-row contraction dim, zero-padded to 128 lanes
(_W_ENC_QKV, _W_ENC_O, _W_ENC_F1, _W_GCN_REL,
 _W_DEC_SQKV, _W_DEC_SO, _W_DEC_EQ, _W_DEC_EKV, _W_DEC_EO, _W_DEC_F1) = range(10)
# w64 slab: weights with a 64-row contraction dim
_W_ENC_F2, _W_GCN_NS, _W_DEC_F2 = range(3)
# vec slab rows: all biases / LayerNorm gamma+beta / projection bias (128-lane padded)
(_V_ENC_BQKV, _V_ENC_BO, _V_ENC_LN1G, _V_ENC_LN1B, _V_ENC_B1, _V_ENC_B2,
 _V_ENC_LN2G, _V_ENC_LN2B, _V_GCN_BN, _V_DEC_SBQKV, _V_DEC_SBO, _V_DEC_SLNG,
 _V_DEC_SLNB, _V_DEC_EBQ, _V_DEC_EBKV, _V_DEC_EBO, _V_DEC_ELNG, _V_DEC_ELNB,
 _V_DEC_B1, _V_DEC_B2, _V_DEC_FLNG, _V_DEC_FLNB, _V_PRJ_B) = range(23)
_VEC_ROWS = 23


# ------------------------------- fused kernel --------------------------------
def _mrmp_fused_kernel(src_ref, srccol_ref, emb_ref, adj_ref,
                       w32_ref, w64_ref, vec_ref,
                       logit_ref, lbl_ref, rel_ref):
    f32 = jnp.float32
    D, DI, H, DK = D_MODEL, D_INNER, N_HEAD, D_K
    B, S, V, R = BATCH, SRC_LEN, N_TGT_VOCAB, NUM_RELNS

    def vrow(i, width=_LANES):                 # (1, width) bias / gamma / beta row
        return vec_ref[pl.ds(i, 1), pl.ds(0, width)]

    def ln(x, gi, bi):                         # row-wise LayerNorm over D lanes
        g = vrow(gi, D)
        b = vrow(bi, D)
        mu = jnp.mean(x, axis=-1, keepdims=True)
        var = jnp.mean((x - mu) ** 2, axis=-1, keepdims=True)
        return (x - mu) * lax.rsqrt(var + LN_EPS) * g + b

    def head_masks(sk):
        """Block-diagonal masks for all-head attention with key length sk.
        Built with iota + thresholds only (no vector integer division)."""
        hsk = H * sk

        def gid(shape, axis, width):
            idx = lax.broadcasted_iota(jnp.int32, shape, axis)
            g = jnp.zeros(shape, jnp.int32)
            for t in range(1, H):
                g = g + (idx >= t * width).astype(jnp.int32)
            return g

        km = (gid((D, hsk), 0, DK) == gid((D, hsk), 1, sk)).astype(f32)    # (D, H*sk)
        vm = (gid((hsk, D), 0, sk) == gid((hsk, D), 1, DK)).astype(f32)    # (H*sk, D)
        gs = (gid((hsk, hsk), 0, sk) == gid((hsk, hsk), 1, sk)).astype(f32)
        return km, vm, gs

    inv_scale = 1.0 / float(DK) ** 0.5

    def mha(q, k, v, key_bias_row, masks):
        """Multi-head attention: q (Sq, D), k/v (Sk, D) with heads in contiguous
        DK-lane groups, key_bias_row (1, Sk) additive bias or None.
        Scores and PV for ALL heads are one MXU push each (block-diag K^T / V);
        the per-head softmax denominator is a group-sum matmul."""
        km, vm, gs = masks
        kb = jnp.concatenate([k.T] * H, axis=1) * km        # (D, H*Sk)
        vb = jnp.concatenate([v] * H, axis=0) * vm          # (H*Sk, D)
        s = jnp.dot(q, kb, preferred_element_type=f32) * inv_scale
        if key_bias_row is not None:
            s = s + jnp.concatenate([key_bias_row] * H, axis=1)
        # subtracting a per-row constant is a valid stabilizer for the per-head softmax
        s = s - jnp.max(s, axis=-1, keepdims=True)
        p = jnp.exp(s)
        denom = jnp.dot(p, gs, preferred_element_type=f32)  # per-head sums, broadcast
        p = p / jnp.maximum(denom, 1e-30)
        return jnp.dot(p, vb, preferred_element_type=f32)   # (Sq, D), heads concatenated

    # -------------- source embedding + padding mask (built in-kernel) --------------
    src_ids = src_ref[...]                                            # (B, S) int32
    key_bias = jnp.where(src_ids == 0, f32(-1e9), f32(0.0))           # (B, S)
    src_tab = emb_ref[pl.ds(_EMB_SRC, N_SRC_VOCAB), :]                # (20, D)
    onehot = (srccol_ref[...] ==
              lax.broadcasted_iota(jnp.int32, (B * S, N_SRC_VOCAB), 1)).astype(f32)
    x = jnp.dot(onehot, src_tab, preferred_element_type=f32)          # (B*S, D)

    # --------------------------------- encoder layer -------------------------------
    masks_s = head_masks(S)
    qkv = jnp.dot(x, w32_ref[_W_ENC_QKV],
                  preferred_element_type=f32) + vrow(_V_ENC_BQKV)     # (B*S, 128)
    attn = jnp.concatenate(
        [mha(qkv[b * S:(b + 1) * S, 0:D],
             qkv[b * S:(b + 1) * S, D:2 * D],
             qkv[b * S:(b + 1) * S, 2 * D:3 * D],
             key_bias[b:b + 1, :], masks_s)
         for b in range(B)], axis=0)                                   # (B*S, D)
    o = jnp.dot(attn, w32_ref[_W_ENC_O],
                preferred_element_type=f32) + vrow(_V_ENC_BO)
    h1 = ln(o[:, :D] + x, _V_ENC_LN1G, _V_ENC_LN1B)
    f = jnp.dot(h1, w32_ref[_W_ENC_F1],
                preferred_element_type=f32) + vrow(_V_ENC_B1)
    f = jnp.maximum(f[:, :DI], 0.0)
    f = jnp.dot(f, w64_ref[_W_ENC_F2],
                preferred_element_type=f32) + vrow(_V_ENC_B2)
    enc_out = ln(f[:, :D] + h1, _V_ENC_LN2G, _V_ENC_LN2B)              # (B*S, D)

    # ---------------------------- CompGCN message passing --------------------------
    # TODO(synk): CompGCN internals guessed (subtraction composition, in/out/self
    # directions, tanh); exact refactor: sum_r A_r@(E - rel_r) = A_sum@E - rowsum(A)@rel.
    tgt_tab = emb_ref[pl.ds(_EMB_TGT, V), :]                           # (V, D)
    rel_tab = emb_ref[pl.ds(_EMB_REL, 3 * R), :]                       # (3R, D)
    adj_sum = adj_ref[:, pl.ds(0, V)]                                  # (V, V)
    adj_rs = adj_ref[:, pl.ds(V, 2 * R)]                               # (V, 2R)
    agg = (jnp.dot(adj_sum, tgt_tab, preferred_element_type=f32)
           - jnp.dot(adj_rs, rel_tab[:2 * R, :], preferred_element_type=f32))
    self_msg = tgt_tab - jnp.mean(rel_tab[2 * R:, :], axis=0, keepdims=True)
    comb = jnp.concatenate([agg, self_msg], axis=-1)                    # (V, 2D)
    hn = jnp.dot(comb, w64_ref[_W_GCN_NS],
                 preferred_element_type=f32) + vrow(_V_GCN_BN)
    lbl = jnp.tanh(hn[:, :D])                                           # (V, D)
    rel = jnp.tanh(jnp.dot(rel_tab, w32_ref[_W_GCN_REL],
                           preferred_element_type=f32)[:, :D])          # (3R, D)
    lbl_ref[...] = lbl
    rel_ref[...] = rel

    # --------------------------------- decoder layer -------------------------------
    masks_v = head_masks(V)
    # dec_input = label_embeddings.repeat(B,1,1): self-attention branch and the
    # enc-dec query projection are batch-invariant -> computed once.
    qkv_d = jnp.dot(lbl, w32_ref[_W_DEC_SQKV],
                    preferred_element_type=f32) + vrow(_V_DEC_SBQKV)    # (V, 128)
    a = mha(qkv_d[:, 0:D], qkv_d[:, D:2 * D], qkv_d[:, 2 * D:3 * D], None, masks_v)
    h = jnp.dot(a, w32_ref[_W_DEC_SO],
                preferred_element_type=f32) + vrow(_V_DEC_SBO)
    d1 = ln(h[:, :D] + lbl, _V_DEC_SLNG, _V_DEC_SLNB)                   # (V, D)
    q_ed = (jnp.dot(d1, w32_ref[_W_DEC_EQ],
                    preferred_element_type=f32) + vrow(_V_DEC_EBQ))[:, :D]
    kv = jnp.dot(enc_out, w32_ref[_W_DEC_EKV],
                 preferred_element_type=f32) + vrow(_V_DEC_EBKV)        # (B*S, 128)
    tgt_t = tgt_tab.T                                                   # tied prj weight
    eye_v = (lax.broadcasted_iota(jnp.int32, (V, V), 0) ==
             lax.broadcasted_iota(jnp.int32, (V, V), 1)).astype(f32)
    logit_rows = []
    for b in range(B):
        sl = slice(b * S, (b + 1) * S)
        a = mha(q_ed, kv[sl, 0:D], kv[sl, D:2 * D], key_bias[b:b + 1, :], masks_s)
        h = jnp.dot(a, w32_ref[_W_DEC_EO],
                    preferred_element_type=f32) + vrow(_V_DEC_EBO)
        d2 = ln(h[:, :D] + d1, _V_DEC_ELNG, _V_DEC_ELNB)
        ff = jnp.dot(d2, w32_ref[_W_DEC_F1],
                     preferred_element_type=f32) + vrow(_V_DEC_B1)
        ff = jnp.maximum(ff[:, :DI], 0.0)
        ff = jnp.dot(ff, w64_ref[_W_DEC_F2],
                     preferred_element_type=f32) + vrow(_V_DEC_B2)
        d3 = ln(ff[:, :D] + d2, _V_DEC_FLNG, _V_DEC_FLNB)               # (V, D)
        # tied-weight diagonal projection -> lane-dense (1, V) logit row
        # logit[b, i] = <dec_out[b, i, :], tgt_emb[i, :]> + prj_bias[i]
        m = jnp.dot(d3, tgt_t, preferred_element_type=f32)              # (V, V)
        logit_rows.append(jnp.sum(m * eye_v, axis=0, keepdims=True))    # (1, V)
    logit_ref[...] = (jnp.concatenate(logit_rows, axis=0)
                      + vrow(_V_PRJ_B, V))                               # (B, V)


# ------------------------------ pallas wrapper --------------------------------
def mrmp_forward(packed, src_seq):
    src_seq = src_seq.astype(jnp.int32)
    src_col = src_seq.reshape(BATCH * SRC_LEN, 1)
    vmem = pltpu.MemorySpace.VMEM
    logits, lbl, rel = pl.pallas_call(
        _mrmp_fused_kernel,
        out_shape=(jax.ShapeDtypeStruct((BATCH, N_TGT_VOCAB), jnp.float32),
                   jax.ShapeDtypeStruct((N_TGT_VOCAB, D_MODEL), jnp.float32),
                   jax.ShapeDtypeStruct((3 * NUM_RELNS, D_MODEL), jnp.float32)),
        in_specs=[pl.BlockSpec(memory_space=vmem)] * 7,
        out_specs=(pl.BlockSpec(memory_space=vmem),
                   pl.BlockSpec(memory_space=vmem),
                   pl.BlockSpec(memory_space=vmem)),
        compiler_params=pltpu.CompilerParams(vmem_limit_bytes=_VMEM_LIMIT),
    )(src_seq, src_col, packed["emb"], packed["adj"],
      packed["w32"], packed["w64"], packed["vec"])
    return logits, (lbl, rel)


# ------------------------------ parameter init --------------------------------
def init_params(key):
    keys = iter(jax.random.split(key, 64))
    D, DI, V, R = D_MODEL, D_INNER, N_TGT_VOCAB, NUM_RELNS

    def xav(shape):
        fan_in, fan_out = shape[-2], shape[-1]
        lim = (6.0 / (fan_in + fan_out)) ** 0.5
        return jax.random.uniform(next(keys), shape, jnp.float32, -lim, lim)

    src_emb = xav((N_SRC_VOCAB, D)).at[0].set(0.0)   # padding_idx = 0
    tgt_emb = xav((V, D)).at[0].set(0.0)             # padding_idx = 0
    reln_emb = xav((3 * R, D))

    # encoder layer weights
    enc_wqkv = jnp.concatenate([xav((D, D)), xav((D, D)), xav((D, D))], axis=1)
    enc_wo, enc_w1, enc_w2 = xav((D, D)), xav((D, DI)), xav((DI, D))
    # CompGCN: node & self weights folded into one (2D, D) matrix
    gcn_w_ns = jnp.concatenate([xav((D, D)), xav((D, D))], axis=0)
    gcn_w_rel = xav((D, D))
    # decoder layer weights
    dec_swqkv = jnp.concatenate([xav((D, D)), xav((D, D)), xav((D, D))], axis=1)
    dec_swo = xav((D, D))
    dec_ewq = xav((D, D))
    dec_ewkv = jnp.concatenate([xav((D, D)), xav((D, D))], axis=1)
    dec_ewo, dec_w1, dec_w2 = xav((D, D)), xav((D, DI)), xav((DI, D))

    # deterministic synthetic adjacency matrices (adjs passed to MrMP.__init__)
    adj = (jax.random.uniform(next(keys), (R, V, V)) < 0.35).astype(jnp.float32)
    adj_stacked = jnp.concatenate([adj, jnp.transpose(adj, (0, 2, 1))], axis=0)
    adj_sum = jnp.sum(adj_stacked, axis=0)                        # (V, V)
    adj_row_sum = jnp.transpose(jnp.sum(adj_stacked, axis=2))     # (V, 2R)

    # ------------------------------- pack into slabs ---------------------------
    def pad2(a, rows, cols):
        return jnp.zeros((rows, cols), jnp.float32).at[:a.shape[0], :a.shape[1]].set(a)

    w32_slab = jnp.stack([pad2(w, D, _LANES) for w in
                          [enc_wqkv, enc_wo, enc_w1, gcn_w_rel, dec_swqkv, dec_swo,
                           dec_ewq, dec_ewkv, dec_ewo, dec_w1]])          # (10, 32, 128)
    w64_slab = jnp.stack([pad2(w, 2 * D, _LANES) for w in
                          [enc_w2, gcn_w_ns, dec_w2]])                    # (3, 64, 128)

    def padv(v):
        return jnp.zeros((_LANES,), jnp.float32).at[:v.shape[0]].set(v)

    z, o_ = (lambda n: jnp.zeros((n,), jnp.float32)), (lambda n: jnp.ones((n,), jnp.float32))
    vec_list = [
        z(3 * D), z(D), o_(D), z(D), z(DI), z(D), o_(D), z(D),   # encoder
        z(D),                                                     # CompGCN node bias
        z(3 * D), z(D), o_(D), z(D),                              # dec self-attn
        z(D), z(2 * D), z(D), o_(D), z(D),                        # dec enc-attn
        z(DI), z(D), o_(D), z(D),                                 # dec FFN
        z(V),                                                     # tied prj bias
    ]
    assert len(vec_list) == _VEC_ROWS
    vec_slab = jnp.stack([padv(v) for v in vec_list])             # (23, 128)

    emb_slab = jnp.zeros((_EMB_ROWS, D), jnp.float32)
    emb_slab = emb_slab.at[_EMB_SRC:_EMB_SRC + N_SRC_VOCAB].set(src_emb)
    emb_slab = emb_slab.at[_EMB_TGT:_EMB_TGT + V].set(tgt_emb)
    emb_slab = emb_slab.at[_EMB_REL:_EMB_REL + 3 * R].set(reln_emb)

    adj_slab = jnp.zeros((V, 16), jnp.float32)
    adj_slab = adj_slab.at[:, :V].set(adj_sum)
    adj_slab = adj_slab.at[:, V:V + 2 * R].set(adj_row_sum)

    return {"emb": emb_slab, "adj": adj_slab,
            "w32": w32_slab, "w64": w64_slab, "vec": vec_slab}


# ------------------------------------ main ------------------------------------
if __name__ == "__main__":
    key = jax.random.PRNGKey(0)
    pkey, dkey = jax.random.split(key)
    packed = init_params(pkey)

    src_seq = jax.random.randint(dkey, (BATCH, SRC_LEN), 1, N_SRC_VOCAB, dtype=jnp.int32)
    src_seq = src_seq.at[:, -2:].set(0)   # some padding so src_mask matters

    fwd = jax.jit(mrmp_forward)
    seq_logit, (label_emb, reln_emb) = fwd(packed, src_seq)
    jax.block_until_ready(seq_logit)

    assert seq_logit.shape == (BATCH, N_TGT_VOCAB)
    assert label_emb.shape == (N_TGT_VOCAB, D_MODEL)
    assert reln_emb.shape == (3 * NUM_RELNS, D_MODEL)
    assert bool(jnp.all(jnp.isfinite(seq_logit)))
    assert bool(jnp.all(jnp.isfinite(label_emb)))
    assert bool(jnp.all(jnp.isfinite(reln_emb)))
    print("KERNEL_OK")
</pallas_src>

<mosaic_0001>
module attributes {stable_mosaic.version = 11 : i64} {
  func.func @_mrmp_fused_kernel(%arg0: memref<2x8xi32, #tpu.memory_space<vmem>>, %arg1: memref<16x1xi32, #tpu.memory_space<vmem>>, %arg2: memref<48x32xf32, #tpu.memory_space<vmem>>, %arg3: memref<10x16xf32, #tpu.memory_space<vmem>>, %arg4: memref<10x32x128xf32, #tpu.memory_space<vmem>>, %arg5: memref<3x64x128xf32, #tpu.memory_space<vmem>>, %arg6: memref<23x128xf32, #tpu.memory_space<vmem>>, %arg7: memref<2x10xf32, #tpu.memory_space<vmem>>, %arg8: memref<10x32xf32, #tpu.memory_space<vmem>>, %arg9: memref<6x32xf32, #tpu.memory_space<vmem>>) attributes {dimension_semantics = [], scalar_prefetch = 0 : i64, scratch_operands = 0 : i64, tpu.core_type = #tpu.core_type<tc>} {
    %c0 = arith.constant 0 : index
    %c0_0 = arith.constant 0 : index
    %0 = vector.load %arg0[%c0, %c0_0] : memref<2x8xi32, #tpu.memory_space<vmem>>, vector<2x8xi32>
    %c0_i32 = arith.constant 0 : i32
    %1 = vector.broadcast %c0_i32 : i32 to vector<2x8xi32>
    %2 = arith.cmpi eq, %0, %1 : vector<2x8xi32>
    %cst = arith.constant -1.000000e+09 : f32
    %cst_1 = arith.constant 0.000000e+00 : f32
    %3 = vector.broadcast %cst : f32 to vector<2x8xf32>
    %4 = vector.broadcast %cst_1 : f32 to vector<2x8xf32>
    %5 = arith.select %2, %3, %4 : vector<2x8xi1>, vector<2x8xf32>
    %c0_2 = arith.constant 0 : index
    %c0_3 = arith.constant 0 : index
    %6 = vector.load %arg2[%c0_2, %c0_3] : memref<48x32xf32, #tpu.memory_space<vmem>>, vector<20x32xf32>
    %c0_4 = arith.constant 0 : index
    %c0_5 = arith.constant 0 : index
    %7 = vector.load %arg1[%c0_4, %c0_5] : memref<16x1xi32, #tpu.memory_space<vmem>>, vector<16x1xi32>
    %8 = tpu.iota {dimensions = array<i32: 1>} : vector<16x20xi32>
    %9 = vector.broadcast %7 : vector<16x1xi32> to vector<16x20xi32>
    %10 = arith.cmpi eq, %9, %8 : vector<16x20xi32>
    %11 = arith.extui %10 : vector<16x20xi1> to vector<16x20xi32>
    %12 = arith.sitofp %11 : vector<16x20xi32> to vector<16x20xf32>
    %cst_6 = arith.constant dense<0.000000e+00> : vector<16x32xf32>
    %13 = tpu.matmul %12, %6, %cst_6 {dimension_numbers = #tpu.dot_dimension_numbers<[1], [0], [0], [1], [0, 0, 1, 1], [], []>} : vector<16x20xf32>, vector<20x32xf32>, vector<16x32xf32> -> vector<16x32xf32>
    %14 = tpu.iota {dimensions = array<i32: 0>} : vector<32x32xi32>
    %c0_i32_7 = arith.constant 0 : i32
    %15 = vector.broadcast %c0_i32_7 : i32 to vector<32x32xi32>
    %c8_i32 = arith.constant 8 : i32
    %16 = vector.broadcast %c8_i32 : i32 to vector<32x32xi32>
    %17 = arith.cmpi sge, %14, %16 : vector<32x32xi32>
    %18 = arith.extui %17 : vector<32x32xi1> to vector<32x32xi32>
    %19 = arith.addi %15, %18 : vector<32x32xi32>
    %c16_i32 = arith.constant 16 : i32
    %20 = vector.broadcast %c16_i32 : i32 to vector<32x32xi32>
    %21 = arith.cmpi sge, %14, %20 : vector<32x32xi32>
    %22 = arith.extui %21 : vector<32x32xi1> to vector<32x32xi32>
    %23 = arith.addi %19, %22 : vector<32x32xi32>
    %c24_i32 = arith.constant 24 : i32
    %24 = vector.broadcast %c24_i32 : i32 to vector<32x32xi32>
    %25 = arith.cmpi sge, %14, %24 : vector<32x32xi32>
    %26 = arith.extui %25 : vector<32x32xi1> to vector<32x32xi32>
    %27 = arith.addi %23, %26 : vector<32x32xi32>
    %28 = tpu.iota {dimensions = array<i32: 1>} : vector<32x32xi32>
    %c0_i32_8 = arith.constant 0 : i32
    %29 = vector.broadcast %c0_i32_8 : i32 to vector<32x32xi32>
    %c8_i32_9 = arith.constant 8 : i32
    %30 = vector.broadcast %c8_i32_9 : i32 to vector<32x32xi32>
    %31 = arith.cmpi sge, %28, %30 : vector<32x32xi32>
    %32 = arith.extui %31 : vector<32x32xi1> to vector<32x32xi32>
    %33 = arith.addi %29, %32 : vector<32x32xi32>
    %c16_i32_10 = arith.constant 16 : i32
    %34 = vector.broadcast %c16_i32_10 : i32 to vector<32x32xi32>
    %35 = arith.cmpi sge, %28, %34 : vector<32x32xi32>
    %36 = arith.extui %35 : vector<32x32xi1> to vector<32x32xi32>
    %37 = arith.addi %33, %36 : vector<32x32xi32>
    %c24_i32_11 = arith.constant 24 : i32
    %38 = vector.broadcast %c24_i32_11 : i32 to vector<32x32xi32>
    %39 = arith.cmpi sge, %28, %38 : vector<32x32xi32>
    %40 = arith.extui %39 : vector<32x32xi1> to vector<32x32xi32>
    %41 = arith.addi %37, %40 : vector<32x32xi32>
    %42 = arith.cmpi eq, %27, %41 : vector<32x32xi32>
    %43 = arith.extui %42 : vector<32x32xi1> to vector<32x32xi32>
    %44 = arith.sitofp %43 : vector<32x32xi32> to vector<32x32xf32>
    %45 = tpu.iota {dimensions = array<i32: 0>} : vector<32x32xi32>
    %c0_i32_12 = arith.constant 0 : i32
    %46 = vector.broadcast %c0_i32_12 : i32 to vector<32x32xi32>
    %c8_i32_13 = arith.constant 8 : i32
    %47 = vector.broadcast %c8_i32_13 : i32 to vector<32x32xi32>
    %48 = arith.cmpi sge, %45, %47 : vector<32x32xi32>
    %49 = arith.extui %48 : vector<32x32xi1> to vector<32x32xi32>
    %50 = arith.addi %46, %49 : vector<32x32xi32>
    %c16_i32_14 = arith.constant 16 : i32
    %51 = vector.broadcast %c16_i32_14 : i32 to vector<32x32xi32>
    %52 = arith.cmpi sge, %45, %51 : vector<32x32xi32>
    %53 = arith.extui %52 : vector<32x32xi1> to vector<32x32xi32>
    %54 = arith.addi %50, %53 : vector<32x32xi32>
    %c24_i32_15 = arith.constant 24 : i32
    %55 = vector.broadcast %c24_i32_15 : i32 to vector<32x32xi32>
    %56 = arith.cmpi sge, %45, %55 : vector<32x32xi32>
    %57 = arith.extui %56 : vector<32x32xi1> to vector<32x32xi32>
    %58 = arith.addi %54, %57 : vector<32x32xi32>
    %59 = tpu.iota {dimensions = array<i32: 1>} : vector<32x32xi32>
    %c0_i32_16 = arith.constant 0 : i32
    %60 = vector.broadcast %c0_i32_16 : i32 to vector<32x32xi32>
    %c8_i32_17 = arith.constant 8 : i32
    %61 = vector.broadcast %c8_i32_17 : i32 to vector<32x32xi32>
    %62 = arith.cmpi sge, %59, %61 : vector<32x32xi32>
    %63 = arith.extui %62 : vector<32x32xi1> to vector<32x32xi32>
    %64 = arith.addi %60, %63 : vector<32x32xi32>
    %c16_i32_18 = arith.constant 16 : i32
    %65 = vector.broadcast %c16_i32_18 : i32 to vector<32x32xi32>
    %66 = arith.cmpi sge, %59, %65 : vector<32x32xi32>
    %67 = arith.extui %66 : vector<32x32xi1> to vector<32x32xi32>
    %68 = arith.addi %64, %67 : vector<32x32xi32>
    %c24_i32_19 = arith.constant 24 : i32
    %69 = vector.broadcast %c24_i32_19 : i32 to vector<32x32xi32>
    %70 = arith.cmpi sge, %59, %69 : vector<32x32xi32>
    %71 = arith.extui %70 : vector<32x32xi1> to vector<32x32xi32>
    %72 = arith.addi %68, %71 : vector<32x32xi32>
    %73 = arith.cmpi eq, %58, %72 : vector<32x32xi32>
    %74 = arith.extui %73 : vector<32x32xi1> to vector<32x32xi32>
    %75 = arith.sitofp %74 : vector<32x32xi32> to vector<32x32xf32>
    %76 = tpu.iota {dimensions = array<i32: 0>} : vector<32x32xi32>
    %c0_i32_20 = arith.constant 0 : i32
    %77 = vector.broadcast %c0_i32_20 : i32 to vector<32x32xi32>
    %c8_i32_21 = arith.constant 8 : i32
    %78 = vector.broadcast %c8_i32_21 : i32 to vector<32x32xi32>
    %79 = arith.cmpi sge, %76, %78 : vector<32x32xi32>
    %80 = arith.extui %79 : vector<32x32xi1> to vector<32x32xi32>
    %81 = arith.addi %77, %80 : vector<32x32xi32>
    %c16_i32_22 = arith.constant 16 : i32
    %82 = vector.broadcast %c16_i32_22 : i32 to vector<32x32xi32>
    %83 = arith.cmpi sge, %76, %82 : vector<32x32xi32>
    %84 = arith.extui %83 : vector<32x32xi1> to vector<32x32xi32>
    %85 = arith.addi %81, %84 : vector<32x32xi32>
    %c24_i32_23 = arith.constant 24 : i32
    %86 = vector.broadcast %c24_i32_23 : i32 to vector<32x32xi32>
    %87 = arith.cmpi sge, %76, %86 : vector<32x32xi32>
    %88 = arith.extui %87 : vector<32x32xi1> to vector<32x32xi32>
    %89 = arith.addi %85, %88 : vector<32x32xi32>
    %90 = tpu.iota {dimensions = array<i32: 1>} : vector<32x32xi32>
    %c0_i32_24 = arith.constant 0 : i32
    %91 = vector.broadcast %c0_i32_24 : i32 to vector<32x32xi32>
    %c8_i32_25 = arith.constant 8 : i32
    %92 = vector.broadcast %c8_i32_25 : i32 to vector<32x32xi32>
    %93 = arith.cmpi sge, %90, %92 : vector<32x32xi32>
    %94 = arith.extui %93 : vector<32x32xi1> to vector<32x32xi32>
    %95 = arith.addi %91, %94 : vector<32x32xi32>
    %c16_i32_26 = arith.constant 16 : i32
    %96 = vector.broadcast %c16_i32_26 : i32 to vector<32x32xi32>
    %97 = arith.cmpi sge, %90, %96 : vector<32x32xi32>
    %98 = arith.extui %97 : vector<32x32xi1> to vector<32x32xi32>
    %99 = arith.addi %95, %98 : vector<32x32xi32>
    %c24_i32_27 = arith.constant 24 : i32
    %100 = vector.broadcast %c24_i32_27 : i32 to vector<32x32xi32>
    %101 = arith.cmpi sge, %90, %100 : vector<32x32xi32>
    %102 = arith.extui %101 : vector<32x32xi1> to vector<32x32xi32>
    %103 = arith.addi %99, %102 : vector<32x32xi32>
    %104 = arith.cmpi eq, %89, %103 : vector<32x32xi32>
    %105 = arith.extui %104 : vector<32x32xi1> to vector<32x32xi32>
    %106 = arith.sitofp %105 : vector<32x32xi32> to vector<32x32xf32>
    %c0_28 = arith.constant 0 : index
    %c0_29 = arith.constant 0 : index
    %c0_30 = arith.constant 0 : index
    %107 = vector.load %arg4[%c0_28, %c0_29, %c0_30] : memref<10x32x128xf32, #tpu.memory_space<vmem>>, vector<1x32x128xf32>
    %108 = vector.shape_cast %107 : vector<1x32x128xf32> to vector<32x128xf32>
    %cst_31 = arith.constant dense<0.000000e+00> : vector<16x128xf32>
    %109 = tpu.matmul %13, %108, %cst_31 {dimension_numbers = #tpu.dot_dimension_numbers<[1], [0], [0], [1], [0, 0, 1, 1], [], []>} : vector<16x32xf32>, vector<32x128xf32>, vector<16x128xf32> -> vector<16x128xf32>
    %c0_32 = arith.constant 0 : index
    %c0_33 = arith.constant 0 : index
    %110 = vector.load %arg6[%c0_32, %c0_33] : memref<23x128xf32, #tpu.memory_space<vmem>>, vector<1x128xf32>
    %111 = vector.broadcast %110 : vector<1x128xf32> to vector<16x128xf32>
    %112 = arith.addf %109, %111 : vector<16x128xf32>
    %113 = vector.extract_strided_slice %112 {offsets = [0, 0], sizes = [8, 32], strides = [1, 1]} : vector<16x128xf32> to vector<8x32xf32>
    %114 = vector.extract_strided_slice %112 {offsets = [0, 32], sizes = [8, 32], strides = [1, 1]} : vector<16x128xf32> to vector<8x32xf32>
    %115 = vector.extract_strided_slice %112 {offsets = [0, 64], sizes = [8, 32], strides = [1, 1]} : vector<16x128xf32> to vector<8x32xf32>
    %116 = vector.extract_strided_slice %5 {offsets = [0, 0], sizes = [1, 8], strides = [1, 1]} : vector<2x8xf32> to vector<1x8xf32>
    %117 = tpu.transpose %114, [1, 0] : vector<8x32xf32> -> vector<32x8xf32>
    %118 = tpu.concatenate %117, %117, %117, %117 in 1 : vector<32x8xf32>, vector<32x8xf32>, vector<32x8xf32>, vector<32x8xf32> -> vector<32x32xf32>
    %119 = arith.mulf %118, %44 : vector<32x32xf32>
    %120 = tpu.concatenate %115, %115, %115, %115 in 0 : vector<8x32xf32>, vector<8x32xf32>, vector<8x32xf32>, vector<8x32xf32> -> vector<32x32xf32>
    %121 = arith.mulf %120, %75 : vector<32x32xf32>
    %cst_34 = arith.constant dense<0.000000e+00> : vector<8x32xf32>
    %122 = tpu.matmul %113, %119, %cst_34 {dimension_numbers = #tpu.dot_dimension_numbers<[1], [0], [0], [1], [0, 0, 1, 1], [], []>} : vector<8x32xf32>, vector<32x32xf32>, vector<8x32xf32> -> vector<8x32xf32>
    %cst_35 = arith.constant 0.353553385 : f32
    %123 = vector.broadcast %cst_35 : f32 to vector<8x32xf32>
    %124 = arith.mulf %122, %123 : vector<8x32xf32>
    %125 = tpu.concatenate %116, %116, %116, %116 in 1 : vector<1x8xf32>, vector<1x8xf32>, vector<1x8xf32>, vector<1x8xf32> -> vector<1x32xf32>
    %126 = vector.broadcast %125 : vector<1x32xf32> to vector<8x32xf32>
    %127 = arith.addf %124, %126 : vector<8x32xf32>
    %cst_36 = arith.constant dense<0xFF800000> : vector<8xf32>
    %128 = vector.multi_reduction <maximumf>, %127, %cst_36 [1] : vector<8x32xf32> to vector<8xf32>
    %129 = vector.shape_cast %128 : vector<8xf32> to vector<8x1xf32>
    %130 = vector.broadcast %129 : vector<8x1xf32> to vector<8x32xf32>
    %131 = arith.subf %127, %130 : vector<8x32xf32>
    %132 = math.exp %131 : vector<8x32xf32>
    %cst_37 = arith.constant dense<0.000000e+00> : vector<8x32xf32>
    %133 = tpu.matmul %132, %106, %cst_37 {dimension_numbers = #tpu.dot_dimension_numbers<[1], [0], [0], [1], [0, 0, 1, 1], [], []>} : vector<8x32xf32>, vector<32x32xf32>, vector<8x32xf32> -> vector<8x32xf32>
    %cst_38 = arith.constant 1.000000e-30 : f32
    %134 = vector.broadcast %cst_38 : f32 to vector<8x32xf32>
    %135 = arith.maximumf %133, %134 : vector<8x32xf32>
    %136 = arith.divf %132, %135 : vector<8x32xf32>
    %cst_39 = arith.constant dense<0.000000e+00> : vector<8x32xf32>
    %137 = tpu.matmul %136, %121, %cst_39 {dimension_numbers = #tpu.dot_dimension_numbers<[1], [0], [0], [1], [0, 0, 1, 1], [], []>} : vector<8x32xf32>, vector<32x32xf32>, vector<8x32xf32> -> vector<8x32xf32>
    %138 = vector.extract_strided_slice %112 {offsets = [8, 0], sizes = [8, 32], strides = [1, 1]} : vector<16x128xf32> to vector<8x32xf32>
    %139 = vector.extract_strided_slice %112 {offsets = [8, 32], sizes = [8, 32], strides = [1, 1]} : vector<16x128xf32> to vector<8x32xf32>
    %140 = vector.extract_strided_slice %112 {offsets = [8, 64], sizes = [8, 32], strides = [1, 1]} : vector<16x128xf32> to vector<8x32xf32>
    %141 = vector.extract_strided_slice %5 {offsets = [1, 0], sizes = [1, 8], strides = [1, 1]} : vector<2x8xf32> to vector<1x8xf32>
    %142 = tpu.transpose %139, [1, 0] : vector<8x32xf32> -> vector<32x8xf32>
    %143 = tpu.concatenate %142, %142, %142, %142 in 1 : vector<32x8xf32>, vector<32x8xf32>, vector<32x8xf32>, vector<32x8xf32> -> vector<32x32xf32>
    %144 = arith.mulf %143, %44 : vector<32x32xf32>
    %145 = tpu.concatenate %140, %140, %140, %140 in 0 : vector<8x32xf32>, vector<8x32xf32>, vector<8x32xf32>, vector<8x32xf32> -> vector<32x32xf32>
    %146 = arith.mulf %145, %75 : vector<32x32xf32>
    %cst_40 = arith.constant dense<0.000000e+00> : vector<8x32xf32>
    %147 = tpu.matmul %138, %144, %cst_40 {dimension_numbers = #tpu.dot_dimension_numbers<[1], [0], [0], [1], [0, 0, 1, 1], [], []>} : vector<8x32xf32>, vector<32x32xf32>, vector<8x32xf32> -> vector<8x32xf32>
    %cst_41 = arith.constant 0.353553385 : f32
    %148 = vector.broadcast %cst_41 : f32 to vector<8x32xf32>
    %149 = arith.mulf %147, %148 : vector<8x32xf32>
    %150 = tpu.concatenate %141, %141, %141, %141 in 1 : vector<1x8xf32>, vector<1x8xf32>, vector<1x8xf32>, vector<1x8xf32> -> vector<1x32xf32>
    %151 = vector.broadcast %150 : vector<1x32xf32> to vector<8x32xf32>
    %152 = arith.addf %149, %151 : vector<8x32xf32>
    %cst_42 = arith.constant dense<0xFF800000> : vector<8xf32>
    %153 = vector.multi_reduction <maximumf>, %152, %cst_42 [1] : vector<8x32xf32> to vector<8xf32>
    %154 = vector.shape_cast %153 : vector<8xf32> to vector<8x1xf32>
    %155 = vector.broadcast %154 : vector<8x1xf32> to vector<8x32xf32>
    %156 = arith.subf %152, %155 : vector<8x32xf32>
    %157 = math.exp %156 : vector<8x32xf32>
    %cst_43 = arith.constant dense<0.000000e+00> : vector<8x32xf32>
    %158 = tpu.matmul %157, %106, %cst_43 {dimension_numbers = #tpu.dot_dimension_numbers<[1], [0], [0], [1], [0, 0, 1, 1], [], []>} : vector<8x32xf32>, vector<32x32xf32>, vector<8x32xf32> -> vector<8x32xf32>
    %cst_44 = arith.constant 1.000000e-30 : f32
    %159 = vector.broadcast %cst_44 : f32 to vector<8x32xf32>
    %160 = arith.maximumf %158, %159 : vector<8x32xf32>
    %161 = arith.divf %157, %160 : vector<8x32xf32>
    %cst_45 = arith.constant dense<0.000000e+00> : vector<8x32xf32>
    %162 = tpu.matmul %161, %146, %cst_45 {dimension_numbers = #tpu.dot_dimension_numbers<[1], [0], [0], [1], [0, 0, 1, 1], [], []>} : vector<8x32xf32>, vector<32x32xf32>, vector<8x32xf32> -> vector<8x32xf32>
    %163 = tpu.concatenate %137, %162 in 0 : vector<8x32xf32>, vector<8x32xf32> -> vector<16x32xf32>
    %c1 = arith.constant 1 : index
    %c0_46 = arith.constant 0 : index
    %c0_47 = arith.constant 0 : index
    %164 = vector.load %arg4[%c1, %c0_46, %c0_47] : memref<10x32x128xf32, #tpu.memory_space<vmem>>, vector<1x32x128xf32>
    %165 = vector.shape_cast %164 : vector<1x32x128xf32> to vector<32x128xf32>
    %cst_48 = arith.constant dense<0.000000e+00> : vector<16x128xf32>
    %166 = tpu.matmul %163, %165, %cst_48 {dimension_numbers = #tpu.dot_dimension_numbers<[1], [0], [0], [1], [0, 0, 1, 1], [], []>} : vector<16x32xf32>, vector<32x128xf32>, vector<16x128xf32> -> vector<16x128xf32>
    %c1_49 = arith.constant 1 : index
    %c0_50 = arith.constant 0 : index
    %167 = vector.load %arg6[%c1_49, %c0_50] : memref<23x128xf32, #tpu.memory_space<vmem>>, vector<1x128xf32>
    %168 = vector.broadcast %167 : vector<1x128xf32> to vector<16x128xf32>
    %169 = arith.addf %166, %168 : vector<16x128xf32>
    %170 = vector.extract_strided_slice %169 {offsets = [0, 0], sizes = [16, 32], strides = [1, 1]} : vector<16x128xf32> to vector<16x32xf32>
    %171 = arith.addf %170, %13 : vector<16x32xf32>
    %c2 = arith.constant 2 : index
    %c0_51 = arith.constant 0 : index
    %172 = vector.load %arg6[%c2, %c0_51] : memref<23x128xf32, #tpu.memory_space<vmem>>, vector<1x32xf32>
    %c3 = arith.constant 3 : index
    %c0_52 = arith.constant 0 : index
    %173 = vector.load %arg6[%c3, %c0_52] : memref<23x128xf32, #tpu.memory_space<vmem>>, vector<1x32xf32>
    %cst_53 = arith.constant dense<0.000000e+00> : vector<16xf32>
    %174 = vector.multi_reduction <add>, %171, %cst_53 [1] : vector<16x32xf32> to vector<16xf32>
    %175 = vector.shape_cast %174 : vector<16xf32> to vector<16x1xf32>
    %cst_54 = arith.constant 3.200000e+01 : f32
    %176 = vector.broadcast %cst_54 : f32 to vector<16x1xf32>
    %177 = arith.divf %175, %176 : vector<16x1xf32>
    %178 = vector.broadcast %177 : vector<16x1xf32> to vector<16x32xf32>
    %179 = arith.subf %171, %178 : vector<16x32xf32>
    %180 = arith.mulf %179, %179 : vector<16x32xf32>
    %cst_55 = arith.constant dense<0.000000e+00> : vector<16xf32>
    %181 = vector.multi_reduction <add>, %180, %cst_55 [1] : vector<16x32xf32> to vector<16xf32>
    %182 = vector.shape_cast %181 : vector<16xf32> to vector<16x1xf32>
    %cst_56 = arith.constant 3.200000e+01 : f32
    %183 = vector.broadcast %cst_56 : f32 to vector<16x1xf32>
    %184 = arith.divf %182, %183 : vector<16x1xf32>
    %185 = vector.broadcast %177 : vector<16x1xf32> to vector<16x32xf32>
    %186 = arith.subf %171, %185 : vector<16x32xf32>
    %cst_57 = arith.constant 9.99999997E-7 : f32
    %187 = vector.broadcast %cst_57 : f32 to vector<16x1xf32>
    %188 = arith.addf %184, %187 : vector<16x1xf32>
    %189 = math.rsqrt %188 : vector<16x1xf32>
    %190 = vector.broadcast %189 : vector<16x1xf32> to vector<16x32xf32>
    %191 = arith.mulf %186, %190 : vector<16x32xf32>
    %192 = vector.broadcast %172 : vector<1x32xf32> to vector<16x32xf32>
    %193 = arith.mulf %191, %192 : vector<16x32xf32>
    %194 = vector.broadcast %173 : vector<1x32xf32> to vector<16x32xf32>
    %195 = arith.addf %193, %194 : vector<16x32xf32>
    %c2_58 = arith.constant 2 : index
    %c0_59 = arith.constant 0 : index
    %c0_60 = arith.constant 0 : index
    %196 = vector.load %arg4[%c2_58, %c0_59, %c0_60] : memref<10x32x128xf32, #tpu.memory_space<vmem>>, vector<1x32x128xf32>
    %197 = vector.shape_cast %196 : vector<1x32x128xf32> to vector<32x128xf32>
    %cst_61 = arith.constant dense<0.000000e+00> : vector<16x128xf32>
    %198 = tpu.matmul %195, %197, %cst_61 {dimension_numbers = #tpu.dot_dimension_numbers<[1], [0], [0], [1], [0, 0, 1, 1], [], []>} : vector<16x32xf32>, vector<32x128xf32>, vector<16x128xf32> -> vector<16x128xf32>
    %c4 = arith.constant 4 : index
    %c0_62 = arith.constant 0 : index
    %199 = vector.load %arg6[%c4, %c0_62] : memref<23x128xf32, #tpu.memory_space<vmem>>, vector<1x128xf32>
    %200 = vector.broadcast %199 : vector<1x128xf32> to vector<16x128xf32>
    %201 = arith.addf %198, %200 : vector<16x128xf32>
    %202 = vector.extract_strided_slice %201 {offsets = [0, 0], sizes = [16, 64], strides = [1, 1]} : vector<16x128xf32> to vector<16x64xf32>
    %cst_63 = arith.constant 0.000000e+00 : f32
    %203 = vector.broadcast %cst_63 : f32 to vector<16x64xf32>
    %204 = arith.maximumf %202, %203 : vector<16x64xf32>
    %c0_64 = arith.constant 0 : index
    %c0_65 = arith.constant 0 : index
    %c0_66 = arith.constant 0 : index
    %205 = vector.load %arg5[%c0_64, %c0_65, %c0_66] : memref<3x64x128xf32, #tpu.memory_space<vmem>>, vector<1x64x128xf32>
    %206 = vector.shape_cast %205 : vector<1x64x128xf32> to vector<64x128xf32>
    %cst_67 = arith.constant dense<0.000000e+00> : vector<16x128xf32>
    %207 = tpu.matmul %204, %206, %cst_67 {dimension_numbers = #tpu.dot_dimension_numbers<[1], [0], [0], [1], [0, 0, 1, 1], [], []>} : vector<16x64xf32>, vector<64x128xf32>, vector<16x128xf32> -> vector<16x128xf32>
    %c5 = arith.constant 5 : index
    %c0_68 = arith.constant 0 : index
    %208 = vector.load %arg6[%c5, %c0_68] : memref<23x128xf32, #tpu.memory_space<vmem>>, vector<1x128xf32>
    %209 = vector.broadcast %208 : vector<1x128xf32> to vector<16x128xf32>
    %210 = arith.addf %207, %209 : vector<16x128xf32>
    %211 = vector.extract_strided_slice %210 {offsets = [0, 0], sizes = [16, 32], strides = [1, 1]} : vector<16x128xf32> to vector<16x32xf32>
    %212 = arith.addf %211, %195 : vector<16x32xf32>
    %c6 = arith.constant 6 : index
    %c0_69 = arith.constant 0 : index
    %213 = vector.load %arg6[%c6, %c0_69] : memref<23x128xf32, #tpu.memory_space<vmem>>, vector<1x32xf32>
    %c7 = arith.constant 7 : index
    %c0_70 = arith.constant 0 : index
    %214 = vector.load %arg6[%c7, %c0_70] : memref<23x128xf32, #tpu.memory_space<vmem>>, vector<1x32xf32>
    %cst_71 = arith.constant dense<0.000000e+00> : vector<16xf32>
    %215 = vector.multi_reduction <add>, %212, %cst_71 [1] : vector<16x32xf32> to vector<16xf32>
    %216 = vector.shape_cast %215 : vector<16xf32> to vector<16x1xf32>
    %cst_72 = arith.constant 3.200000e+01 : f32
    %217 = vector.broadcast %cst_72 : f32 to vector<16x1xf32>
    %218 = arith.divf %216, %217 : vector<16x1xf32>
    %219 = vector.broadcast %218 : vector<16x1xf32> to vector<16x32xf32>
    %220 = arith.subf %212, %219 : vector<16x32xf32>
    %221 = arith.mulf %220, %220 : vector<16x32xf32>
    %cst_73 = arith.constant dense<0.000000e+00> : vector<16xf32>
    %222 = vector.multi_reduction <add>, %221, %cst_73 [1] : vector<16x32xf32> to vector<16xf32>
    %223 = vector.shape_cast %222 : vector<16xf32> to vector<16x1xf32>
    %cst_74 = arith.constant 3.200000e+01 : f32
    %224 = vector.broadcast %cst_74 : f32 to vector<16x1xf32>
    %225 = arith.divf %223, %224 : vector<16x1xf32>
    %226 = vector.broadcast %218 : vector<16x1xf32> to vector<16x32xf32>
    %227 = arith.subf %212, %226 : vector<16x32xf32>
    %cst_75 = arith.constant 9.99999997E-7 : f32
    %228 = vector.broadcast %cst_75 : f32 to vector<16x1xf32>
    %229 = arith.addf %225, %228 : vector<16x1xf32>
    %230 = math.rsqrt %229 : vector<16x1xf32>
    %231 = vector.broadcast %230 : vector<16x1xf32> to vector<16x32xf32>
    %232 = arith.mulf %227, %231 : vector<16x32xf32>
    %233 = vector.broadcast %213 : vector<1x32xf32> to vector<16x32xf32>
    %234 = arith.mulf %232, %233 : vector<16x32xf32>
    %235 = vector.broadcast %214 : vector<1x32xf32> to vector<16x32xf32>
    %236 = arith.addf %234, %235 : vector<16x32xf32>
    %c24 = arith.constant 24 : index
    %c0_76 = arith.constant 0 : index
    %237 = vector.load %arg2[%c24, %c0_76] : memref<48x32xf32, #tpu.memory_space<vmem>>, vector<10x32xf32>
    %c40 = arith.constant 40 : index
    %c0_77 = arith.constant 0 : index
    %238 = vector.load %arg2[%c40, %c0_77] : memref<48x32xf32, #tpu.memory_space<vmem>>, vector<6x32xf32>
    %c0_78 = arith.constant 0 : index
    %c0_79 = arith.constant 0 : index
    %239 = vector.load %arg3[%c0_78, %c0_79] : memref<10x16xf32, #tpu.memory_space<vmem>>, vector<10x10xf32>
    %c0_80 = arith.constant 0 : index
    %c10 = arith.constant 10 : index
    %240 = vector.load %arg3[%c0_80, %c10] : memref<10x16xf32, #tpu.memory_space<vmem>>, vector<10x4xf32>
    %cst_81 = arith.constant dense<0.000000e+00> : vector<10x32xf32>
    %241 = tpu.matmul %239, %237, %cst_81 {dimension_numbers = #tpu.dot_dimension_numbers<[1], [0], [0], [1], [0, 0, 1, 1], [], []>} : vector<10x10xf32>, vector<10x32xf32>, vector<10x32xf32> -> vector<10x32xf32>
    %242 = vector.extract_strided_slice %238 {offsets = [0, 0], sizes = [4, 32], strides = [1, 1]} : vector<6x32xf32> to vector<4x32xf32>
    %cst_82 = arith.constant dense<0.000000e+00> : vector<10x32xf32>
    %243 = tpu.matmul %240, %242, %cst_82 {dimension_numbers = #tpu.dot_dimension_numbers<[1], [0], [0], [1], [0, 0, 1, 1], [], []>} : vector<10x4xf32>, vector<4x32xf32>, vector<10x32xf32> -> vector<10x32xf32>
    %244 = arith.subf %241, %243 : vector<10x32xf32>
    %245 = vector.extract_strided_slice %238 {offsets = [4, 0], sizes = [2, 32], strides = [1, 1]} : vector<6x32xf32> to vector<2x32xf32>
    %cst_83 = arith.constant dense<0.000000e+00> : vector<32xf32>
    %246 = vector.multi_reduction <add>, %245, %cst_83 [0] : vector<2x32xf32> to vector<32xf32>
    %247 = vector.shape_cast %246 : vector<32xf32> to vector<1x32xf32>
    %cst_84 = arith.constant 2.000000e+00 : f32
    %248 = vector.broadcast %cst_84 : f32 to vector<1x32xf32>
    %249 = arith.divf %247, %248 : vector<1x32xf32>
    %250 = vector.broadcast %249 : vector<1x32xf32> to vector<10x32xf32>
    %251 = arith.subf %237, %250 : vector<10x32xf32>
    %252 = tpu.concatenate %244, %251 in 1 : vector<10x32xf32>, vector<10x32xf32> -> vector<10x64xf32>
    %c1_85 = arith.constant 1 : index
    %c0_86 = arith.constant 0 : index
    %c0_87 = arith.constant 0 : index
    %253 = vector.load %arg5[%c1_85, %c0_86, %c0_87] : memref<3x64x128xf32, #tpu.memory_space<vmem>>, vector<1x64x128xf32>
    %254 = vector.shape_cast %253 : vector<1x64x128xf32> to vector<64x128xf32>
    %cst_88 = arith.constant dense<0.000000e+00> : vector<10x128xf32>
    %255 = tpu.matmul %252, %254, %cst_88 {dimension_numbers = #tpu.dot_dimension_numbers<[1], [0], [0], [1], [0, 0, 1, 1], [], []>} : vector<10x64xf32>, vector<64x128xf32>, vector<10x128xf32> -> vector<10x128xf32>
    %c8 = arith.constant 8 : index
    %c0_89 = arith.constant 0 : index
    %256 = vector.load %arg6[%c8, %c0_89] : memref<23x128xf32, #tpu.memory_space<vmem>>, vector<1x128xf32>
    %257 = vector.broadcast %256 : vector<1x128xf32> to vector<10x128xf32>
    %258 = arith.addf %255, %257 : vector<10x128xf32>
    %259 = vector.extract_strided_slice %258 {offsets = [0, 0], sizes = [10, 32], strides = [1, 1]} : vector<10x128xf32> to vector<10x32xf32>
    %260 = math.tanh %259 : vector<10x32xf32>
    %c3_90 = arith.constant 3 : index
    %c0_91 = arith.constant 0 : index
    %c0_92 = arith.constant 0 : index
    %261 = vector.load %arg4[%c3_90, %c0_91, %c0_92] : memref<10x32x128xf32, #tpu.memory_space<vmem>>, vector<1x32x128xf32>
    %262 = vector.shape_cast %261 : vector<1x32x128xf32> to vector<32x128xf32>
    %cst_93 = arith.constant dense<0.000000e+00> : vector<6x128xf32>
    %263 = tpu.matmul %238, %262, %cst_93 {dimension_numbers = #tpu.dot_dimension_numbers<[1], [0], [0], [1], [0, 0, 1, 1], [], []>} : vector<6x32xf32>, vector<32x128xf32>, vector<6x128xf32> -> vector<6x128xf32>
    %264 = vector.extract_strided_slice %263 {offsets = [0, 0], sizes = [6, 32], strides = [1, 1]} : vector<6x128xf32> to vector<6x32xf32>
    %265 = math.tanh %264 : vector<6x32xf32>
    %c0_94 = arith.constant 0 : index
    %c0_95 = arith.constant 0 : index
    %266 = vector.load %arg8[%c0_94, %c0_95] : memref<10x32xf32, #tpu.memory_space<vmem>>, vector<10x32xf32>
    tpu.vector_store %arg8[%c0_94, %c0_95], %260 {strides = array<i32>} : memref<10x32xf32, #tpu.memory_space<vmem>>, vector<10x32xf32>,
    %c0_96 = arith.constant 0 : index
    %c0_97 = arith.constant 0 : index
    %267 = vector.load %arg9[%c0_96, %c0_97] : memref<6x32xf32, #tpu.memory_space<vmem>>, vector<6x32xf32>
    tpu.vector_store %arg9[%c0_96, %c0_97], %265 {strides = array<i32>} : memref<6x32xf32, #tpu.memory_space<vmem>>, vector<6x32xf32>,
    %268 = tpu.iota {dimensions = array<i32: 0>} : vector<32x40xi32>
    %c0_i32_98 = arith.constant 0 : i32
    %269 = vector.broadcast %c0_i32_98 : i32 to vector<32x40xi32>
    %c8_i32_99 = arith.constant 8 : i32
    %270 = vector.broadcast %c8_i32_99 : i32 to vector<32x40xi32>
    %271 = arith.cmpi sge, %268, %270 : vector<32x40xi32>
    %272 = arith.extui %271 : vector<32x40xi1> to vector<32x40xi32>
    %273 = arith.addi %269, %272 : vector<32x40xi32>
    %c16_i32_100 = arith.constant 16 : i32
    %274 = vector.broadcast %c16_i32_100 : i32 to vector<32x40xi32>
    %275 = arith.cmpi sge, %268, %274 : vector<32x40xi32>
    %276 = arith.extui %275 : vector<32x40xi1> to vector<32x40xi32>
    %277 = arith.addi %273, %276 : vector<32x40xi32>
    %c24_i32_101 = arith.constant 24 : i32
    %278 = vector.broadcast %c24_i32_101 : i32 to vector<32x40xi32>
    %279 = arith.cmpi sge, %268, %278 : vector<32x40xi32>
    %280 = arith.extui %279 : vector<32x40xi1> to vector<32x40xi32>
    %281 = arith.addi %277, %280 : vector<32x40xi32>
    %282 = tpu.iota {dimensions = array<i32: 1>} : vector<32x40xi32>
    %c0_i32_102 = arith.constant 0 : i32
    %283 = vector.broadcast %c0_i32_102 : i32 to vector<32x40xi32>
    %c10_i32 = arith.constant 10 : i32
    %284 = vector.broadcast %c10_i32 : i32 to vector<32x40xi32>
    %285 = arith.cmpi sge, %282, %284 : vector<32x40xi32>
    %286 = arith.extui %285 : vector<32x40xi1> to vector<32x40xi32>
    %287 = arith.addi %283, %286 : vector<32x40xi32>
    %c20_i32 = arith.constant 20 : i32
    %288 = vector.broadcast %c20_i32 : i32 to vector<32x40xi32>
    %289 = arith.cmpi sge, %282, %288 : vector<32x40xi32>
    %290 = arith.extui %289 : vector<32x40xi1> to vector<32x40xi32>
    %291 = arith.addi %287, %290 : vector<32x40xi32>
    %c30_i32 = arith.constant 30 : i32
    %292 = vector.broadcast %c30_i32 : i32 to vector<32x40xi32>
    %293 = arith.cmpi sge, %282, %292 : vector<32x40xi32>
    %294 = arith.extui %293 : vector<32x40xi1> to vector<32x40xi32>
    %295 = arith.addi %291, %294 : vector<32x40xi32>
    %296 = arith.cmpi eq, %281, %295 : vector<32x40xi32>
    %297 = arith.extui %296 : vector<32x40xi1> to vector<32x40xi32>
    %298 = arith.sitofp %297 : vector<32x40xi32> to vector<32x40xf32>
    %299 = tpu.iota {dimensions = array<i32: 0>} : vector<40x32xi32>
    %c0_i32_103 = arith.constant 0 : i32
    %300 = vector.broadcast %c0_i32_103 : i32 to vector<40x32xi32>
    %c10_i32_104 = arith.constant 10 : i32
    %301 = vector.broadcast %c10_i32_104 : i32 to vector<40x32xi32>
    %302 = arith.cmpi sge, %299, %301 : vector<40x32xi32>
    %303 = arith.extui %302 : vector<40x32xi1> to vector<40x32xi32>
    %304 = arith.addi %300, %303 : vector<40x32xi32>
    %c20_i32_105 = arith.constant 20 : i32
    %305 = vector.broadcast %c20_i32_105 : i32 to vector<40x32xi32>
    %306 = arith.cmpi sge, %299, %305 : vector<40x32xi32>
    %307 = arith.extui %306 : vector<40x32xi1> to vector<40x32xi32>
    %308 = arith.addi %304, %307 : vector<40x32xi32>
    %c30_i32_106 = arith.constant 30 : i32
    %309 = vector.broadcast %c30_i32_106 : i32 to vector<40x32xi32>
    %310 = arith.cmpi sge, %299, %309 : vector<40x32xi32>
    %311 = arith.extui %310 : vector<40x32xi1> to vector<40x32xi32>
    %312 = arith.addi %308, %311 : vector<40x32xi32>
    %313 = tpu.iota {dimensions = array<i32: 1>} : vector<40x32xi32>
    %c0_i32_107 = arith.constant 0 : i32
    %314 = vector.broadcast %c0_i32_107 : i32 to vector<40x32xi32>
    %c8_i32_108 = arith.constant 8 : i32
    %315 = vector.broadcast %c8_i32_108 : i32 to vector<40x32xi32>
    %316 = arith.cmpi sge, %313, %315 : vector<40x32xi32>
    %317 = arith.extui %316 : vector<40x32xi1> to vector<40x32xi32>
    %318 = arith.addi %314, %317 : vector<40x32xi32>
    %c16_i32_109 = arith.constant 16 : i32
    %319 = vector.broadcast %c16_i32_109 : i32 to vector<40x32xi32>
    %320 = arith.cmpi sge, %313, %319 : vector<40x32xi32>
    %321 = arith.extui %320 : vector<40x32xi1> to vector<40x32xi32>
    %322 = arith.addi %318, %321 : vector<40x32xi32>
    %c24_i32_110 = arith.constant 24 : i32
    %323 = vector.broadcast %c24_i32_110 : i32 to vector<40x32xi32>
    %324 = arith.cmpi sge, %313, %323 : vector<40x32xi32>
    %325 = arith.extui %324 : vector<40x32xi1> to vector<40x32xi32>
    %326 = arith.addi %322, %325 : vector<40x32xi32>
    %327 = arith.cmpi eq, %312, %326 : vector<40x32xi32>
    %328 = arith.extui %327 : vector<40x32xi1> to vector<40x32xi32>
    %329 = arith.sitofp %328 : vector<40x32xi32> to vector<40x32xf32>
    %330 = tpu.iota {dimensions = array<i32: 0>} : vector<40x40xi32>
    %c0_i32_111 = arith.constant 0 : i32
    %331 = vector.broadcast %c0_i32_111 : i32 to vector<40x40xi32>
    %c10_i32_112 = arith.constant 10 : i32
    %332 = vector.broadcast %c10_i32_112 : i32 to vector<40x40xi32>
    %333 = arith.cmpi sge, %330, %332 : vector<40x40xi32>
    %334 = arith.extui %333 : vector<40x40xi1> to vector<40x40xi32>
    %335 = arith.addi %331, %334 : vector<40x40xi32>
    %c20_i32_113 = arith.constant 20 : i32
    %336 = vector.broadcast %c20_i32_113 : i32 to vector<40x40xi32>
    %337 = arith.cmpi sge, %330, %336 : vector<40x40xi32>
    %338 = arith.extui %337 : vector<40x40xi1> to vector<40x40xi32>
    %339 = arith.addi %335, %338 : vector<40x40xi32>
    %c30_i32_114 = arith.constant 30 : i32
    %340 = vector.broadcast %c30_i32_114 : i32 to vector<40x40xi32>
    %341 = arith.cmpi sge, %330, %340 : vector<40x40xi32>
    %342 = arith.extui %341 : vector<40x40xi1> to vector<40x40xi32>
    %343 = arith.addi %339, %342 : vector<40x40xi32>
    %344 = tpu.iota {dimensions = array<i32: 1>} : vector<40x40xi32>
    %c0_i32_115 = arith.constant 0 : i32
    %345 = vector.broadcast %c0_i32_115 : i32 to vector<40x40xi32>
    %c10_i32_116 = arith.constant 10 : i32
    %346 = vector.broadcast %c10_i32_116 : i32 to vector<40x40xi32>
    %347 = arith.cmpi sge, %344, %346 : vector<40x40xi32>
    %348 = arith.extui %347 : vector<40x40xi1> to vector<40x40xi32>
    %349 = arith.addi %345, %348 : vector<40x40xi32>
    %c20_i32_117 = arith.constant 20 : i32
    %350 = vector.broadcast %c20_i32_117 : i32 to vector<40x40xi32>
    %351 = arith.cmpi sge, %344, %350 : vector<40x40xi32>
    %352 = arith.extui %351 : vector<40x40xi1> to vector<40x40xi32>
    %353 = arith.addi %349, %352 : vector<40x40xi32>
    %c30_i32_118 = arith.constant 30 : i32
    %354 = vector.broadcast %c30_i32_118 : i32 to vector<40x40xi32>
    %355 = arith.cmpi sge, %344, %354 : vector<40x40xi32>
    %356 = arith.extui %355 : vector<40x40xi1> to vector<40x40xi32>
    %357 = arith.addi %353, %356 : vector<40x40xi32>
    %358 = arith.cmpi eq, %343, %357 : vector<40x40xi32>
    %359 = arith.extui %358 : vector<40x40xi1> to vector<40x40xi32>
    %360 = arith.sitofp %359 : vector<40x40xi32> to vector<40x40xf32>
    %c4_119 = arith.constant 4 : index
    %c0_120 = arith.constant 0 : index
    %c0_121 = arith.constant 0 : index
    %361 = vector.load %arg4[%c4_119, %c0_120, %c0_121] : memref<10x32x128xf32, #tpu.memory_space<vmem>>, vector<1x32x128xf32>
    %362 = vector.shape_cast %361 : vector<1x32x128xf32> to vector<32x128xf32>
    %cst_122 = arith.constant dense<0.000000e+00> : vector<10x128xf32>
    %363 = tpu.matmul %260, %362, %cst_122 {dimension_numbers = #tpu.dot_dimension_numbers<[1], [0], [0], [1], [0, 0, 1, 1], [], []>} : vector<10x32xf32>, vector<32x128xf32>, vector<10x128xf32> -> vector<10x128xf32>
    %c9 = arith.constant 9 : index
    %c0_123 = arith.constant 0 : index
    %364 = vector.load %arg6[%c9, %c0_123] : memref<23x128xf32, #tpu.memory_space<vmem>>, vector<1x128xf32>
    %365 = vector.broadcast %364 : vector<1x128xf32> to vector<10x128xf32>
    %366 = arith.addf %363, %365 : vector<10x128xf32>
    %367 = vector.extract_strided_slice %366 {offsets = [0, 0], sizes = [10, 32], strides = [1, 1]} : vector<10x128xf32> to vector<10x32xf32>
    %368 = vector.extract_strided_slice %366 {offsets = [0, 32], sizes = [10, 32], strides = [1, 1]} : vector<10x128xf32> to vector<10x32xf32>
    %369 = vector.extract_strided_slice %366 {offsets = [0, 64], sizes = [10, 32], strides = [1, 1]} : vector<10x128xf32> to vector<10x32xf32>
    %370 = tpu.transpose %368, [1, 0] : vector<10x32xf32> -> vector<32x10xf32>
    %371 = tpu.concatenate %370, %370, %370, %370 in 1 : vector<32x10xf32>, vector<32x10xf32>, vector<32x10xf32>, vector<32x10xf32> -> vector<32x40xf32>
    %372 = arith.mulf %371, %298 : vector<32x40xf32>
    %373 = tpu.concatenate %369, %369, %369, %369 in 0 : vector<10x32xf32>, vector<10x32xf32>, vector<10x32xf32>, vector<10x32xf32> -> vector<40x32xf32>
    %374 = arith.mulf %373, %329 : vector<40x32xf32>
    %cst_124 = arith.constant dense<0.000000e+00> : vector<10x40xf32>
    %375 = tpu.matmul %367, %372, %cst_124 {dimension_numbers = #tpu.dot_dimension_numbers<[1], [0], [0], [1], [0, 0, 1, 1], [], []>} : vector<10x32xf32>, vector<32x40xf32>, vector<10x40xf32> -> vector<10x40xf32>
    %cst_125 = arith.constant 0.353553385 : f32
    %376 = vector.broadcast %cst_125 : f32 to vector<10x40xf32>
    %377 = arith.mulf %375, %376 : vector<10x40xf32>
    %cst_126 = arith.constant dense<0xFF800000> : vector<10xf32>
    %378 = vector.multi_reduction <maximumf>, %377, %cst_126 [1] : vector<10x40xf32> to vector<10xf32>
    %379 = vector.shape_cast %378 : vector<10xf32> to vector<10x1xf32>
    %380 = vector.broadcast %379 : vector<10x1xf32> to vector<10x40xf32>
    %381 = arith.subf %377, %380 : vector<10x40xf32>
    %382 = math.exp %381 : vector<10x40xf32>
    %cst_127 = arith.constant dense<0.000000e+00> : vector<10x40xf32>
    %383 = tpu.matmul %382, %360, %cst_127 {dimension_numbers = #tpu.dot_dimension_numbers<[1], [0], [0], [1], [0, 0, 1, 1], [], []>} : vector<10x40xf32>, vector<40x40xf32>, vector<10x40xf32> -> vector<10x40xf32>
    %cst_128 = arith.constant 1.000000e-30 : f32
    %384 = vector.broadcast %cst_128 : f32 to vector<10x40xf32>
    %385 = arith.maximumf %383, %384 : vector<10x40xf32>
    %386 = arith.divf %382, %385 : vector<10x40xf32>
    %cst_129 = arith.constant dense<0.000000e+00> : vector<10x32xf32>
    %387 = tpu.matmul %386, %374, %cst_129 {dimension_numbers = #tpu.dot_dimension_numbers<[1], [0], [0], [1], [0, 0, 1, 1], [], []>} : vector<10x40xf32>, vector<40x32xf32>, vector<10x32xf32> -> vector<10x32xf32>
    %c5_130 = arith.constant 5 : index
    %c0_131 = arith.constant 0 : index
    %c0_132 = arith.constant 0 : index
    %388 = vector.load %arg4[%c5_130, %c0_131, %c0_132] : memref<10x32x128xf32, #tpu.memory_space<vmem>>, vector<1x32x128xf32>
    %389 = vector.shape_cast %388 : vector<1x32x128xf32> to vector<32x128xf32>
    %cst_133 = arith.constant dense<0.000000e+00> : vector<10x128xf32>
    %390 = tpu.matmul %387, %389, %cst_133 {dimension_numbers = #tpu.dot_dimension_numbers<[1], [0], [0], [1], [0, 0, 1, 1], [], []>} : vector<10x32xf32>, vector<32x128xf32>, vector<10x128xf32> -> vector<10x128xf32>
    %c10_134 = arith.constant 10 : index
    %c0_135 = arith.constant 0 : index
    %391 = vector.load %arg6[%c10_134, %c0_135] : memref<23x128xf32, #tpu.memory_space<vmem>>, vector<1x128xf32>
    %392 = vector.broadcast %391 : vector<1x128xf32> to vector<10x128xf32>
    %393 = arith.addf %390, %392 : vector<10x128xf32>
    %394 = vector.extract_strided_slice %393 {offsets = [0, 0], sizes = [10, 32], strides = [1, 1]} : vector<10x128xf32> to vector<10x32xf32>
    %395 = arith.addf %394, %260 : vector<10x32xf32>
    %c11 = arith.constant 11 : index
    %c0_136 = arith.constant 0 : index
    %396 = vector.load %arg6[%c11, %c0_136] : memref<23x128xf32, #tpu.memory_space<vmem>>, vector<1x32xf32>
    %c12 = arith.constant 12 : index
    %c0_137 = arith.constant 0 : index
    %397 = vector.load %arg6[%c12, %c0_137] : memref<23x128xf32, #tpu.memory_space<vmem>>, vector<1x32xf32>
    %cst_138 = arith.constant dense<0.000000e+00> : vector<10xf32>
    %398 = vector.multi_reduction <add>, %395, %cst_138 [1] : vector<10x32xf32> to vector<10xf32>
    %399 = vector.shape_cast %398 : vector<10xf32> to vector<10x1xf32>
    %cst_139 = arith.constant 3.200000e+01 : f32
    %400 = vector.broadcast %cst_139 : f32 to vector<10x1xf32>
    %401 = arith.divf %399, %400 : vector<10x1xf32>
    %402 = vector.broadcast %401 : vector<10x1xf32> to vector<10x32xf32>
    %403 = arith.subf %395, %402 : vector<10x32xf32>
    %404 = arith.mulf %403, %403 : vector<10x32xf32>
    %cst_140 = arith.constant dense<0.000000e+00> : vector<10xf32>
    %405 = vector.multi_reduction <add>, %404, %cst_140 [1] : vector<10x32xf32> to vector<10xf32>
    %406 = vector.shape_cast %405 : vector<10xf32> to vector<10x1xf32>
    %cst_141 = arith.constant 3.200000e+01 : f32
    %407 = vector.broadcast %cst_141 : f32 to vector<10x1xf32>
    %408 = arith.divf %406, %407 : vector<10x1xf32>
    %409 = vector.broadcast %401 : vector<10x1xf32> to vector<10x32xf32>
    %410 = arith.subf %395, %409 : vector<10x32xf32>
    %cst_142 = arith.constant 9.99999997E-7 : f32
    %411 = vector.broadcast %cst_142 : f32 to vector<10x1xf32>
    %412 = arith.addf %408, %411 : vector<10x1xf32>
    %413 = math.rsqrt %412 : vector<10x1xf32>
    %414 = vector.broadcast %413 : vector<10x1xf32> to vector<10x32xf32>
    %415 = arith.mulf %410, %414 : vector<10x32xf32>
    %416 = vector.broadcast %396 : vector<1x32xf32> to vector<10x32xf32>
    %417 = arith.mulf %415, %416 : vector<10x32xf32>
    %418 = vector.broadcast %397 : vector<1x32xf32> to vector<10x32xf32>
    %419 = arith.addf %417, %418 : vector<10x32xf32>
    %c6_143 = arith.constant 6 : index
    %c0_144 = arith.constant 0 : index
    %c0_145 = arith.constant 0 : index
    %420 = vector.load %arg4[%c6_143, %c0_144, %c0_145] : memref<10x32x128xf32, #tpu.memory_space<vmem>>, vector<1x32x128xf32>
    %421 = vector.shape_cast %420 : vector<1x32x128xf32> to vector<32x128xf32>
    %cst_146 = arith.constant dense<0.000000e+00> : vector<10x128xf32>
    %422 = tpu.matmul %419, %421, %cst_146 {dimension_numbers = #tpu.dot_dimension_numbers<[1], [0], [0], [1], [0, 0, 1, 1], [], []>} : vector<10x32xf32>, vector<32x128xf32>, vector<10x128xf32> -> vector<10x128xf32>
    %c13 = arith.constant 13 : index
    %c0_147 = arith.constant 0 : index
    %423 = vector.load %arg6[%c13, %c0_147] : memref<23x128xf32, #tpu.memory_space<vmem>>, vector<1x128xf32>
    %424 = vector.broadcast %423 : vector<1x128xf32> to vector<10x128xf32>
    %425 = arith.addf %422, %424 : vector<10x128xf32>
    %426 = vector.extract_strided_slice %425 {offsets = [0, 0], sizes = [10, 32], strides = [1, 1]} : vector<10x128xf32> to vector<10x32xf32>
    %c7_148 = arith.constant 7 : index
    %c0_149 = arith.constant 0 : index
    %c0_150 = arith.constant 0 : index
    %427 = vector.load %arg4[%c7_148, %c0_149, %c0_150] : memref<10x32x128xf32, #tpu.memory_space<vmem>>, vector<1x32x128xf32>
    %428 = vector.shape_cast %427 : vector<1x32x128xf32> to vector<32x128xf32>
    %cst_151 = arith.constant dense<0.000000e+00> : vector<16x128xf32>
    %429 = tpu.matmul %236, %428, %cst_151 {dimension_numbers = #tpu.dot_dimension_numbers<[1], [0], [0], [1], [0, 0, 1, 1], [], []>} : vector<16x32xf32>, vector<32x128xf32>, vector<16x128xf32> -> vector<16x128xf32>
    %c14 = arith.constant 14 : index
    %c0_152 = arith.constant 0 : index
    %430 = vector.load %arg6[%c14, %c0_152] : memref<23x128xf32, #tpu.memory_space<vmem>>, vector<1x128xf32>
    %431 = vector.broadcast %430 : vector<1x128xf32> to vector<16x128xf32>
    %432 = arith.addf %429, %431 : vector<16x128xf32>
    %433 = tpu.transpose %237, [1, 0] : vector<10x32xf32> -> vector<32x10xf32>
    %434 = tpu.iota {dimensions = array<i32: 0>} : vector<10x10xi32>
    %435 = tpu.iota {dimensions = array<i32: 1>} : vector<10x10xi32>
    %436 = arith.cmpi eq, %434, %435 : vector<10x10xi32>
    %437 = arith.extui %436 : vector<10x10xi1> to vector<10x10xi32>
    %438 = arith.sitofp %437 : vector<10x10xi32> to vector<10x10xf32>
    %439 = vector.extract_strided_slice %432 {offsets = [0, 0], sizes = [8, 32], strides = [1, 1]} : vector<16x128xf32> to vector<8x32xf32>
    %440 = vector.extract_strided_slice %432 {offsets = [0, 32], sizes = [8, 32], strides = [1, 1]} : vector<16x128xf32> to vector<8x32xf32>
    %441 = vector.extract_strided_slice %5 {offsets = [0, 0], sizes = [1, 8], strides = [1, 1]} : vector<2x8xf32> to vector<1x8xf32>
    %442 = tpu.transpose %439, [1, 0] : vector<8x32xf32> -> vector<32x8xf32>
    %443 = tpu.concatenate %442, %442, %442, %442 in 1 : vector<32x8xf32>, vector<32x8xf32>, vector<32x8xf32>, vector<32x8xf32> -> vector<32x32xf32>
    %444 = arith.mulf %443, %44 : vector<32x32xf32>
    %445 = tpu.concatenate %440, %440, %440, %440 in 0 : vector<8x32xf32>, vector<8x32xf32>, vector<8x32xf32>, vector<8x32xf32> -> vector<32x32xf32>
    %446 = arith.mulf %445, %75 : vector<32x32xf32>
    %cst_153 = arith.constant dense<0.000000e+00> : vector<10x32xf32>
    %447 = tpu.matmul %426, %444, %cst_153 {dimension_numbers = #tpu.dot_dimension_numbers<[1], [0], [0], [1], [0, 0, 1, 1], [], []>} : vector<10x32xf32>, vector<32x32xf32>, vector<10x32xf32> -> vector<10x32xf32>
    %cst_154 = arith.constant 0.353553385 : f32
    %448 = vector.broadcast %cst_154 : f32 to vector<10x32xf32>
    %449 = arith.mulf %447, %448 : vector<10x32xf32>
    %450 = tpu.concatenate %441, %441, %441, %441 in 1 : vector<1x8xf32>, vector<1x8xf32>, vector<1x8xf32>, vector<1x8xf32> -> vector<1x32xf32>
    %451 = vector.broadcast %450 : vector<1x32xf32> to vector<10x32xf32>
    %452 = arith.addf %449, %451 : vector<10x32xf32>
    %cst_155 = arith.constant dense<0xFF800000> : vector<10xf32>
    %453 = vector.multi_reduction <maximumf>, %452, %cst_155 [1] : vector<10x32xf32> to vector<10xf32>
    %454 = vector.shape_cast %453 : vector<10xf32> to vector<10x1xf32>
    %455 = vector.broadcast %454 : vector<10x1xf32> to vector<10x32xf32>
    %456 = arith.subf %452, %455 : vector<10x32xf32>
    %457 = math.exp %456 : vector<10x32xf32>
    %cst_156 = arith.constant dense<0.000000e+00> : vector<10x32xf32>
    %458 = tpu.matmul %457, %106, %cst_156 {dimension_numbers = #tpu.dot_dimension_numbers<[1], [0], [0], [1], [0, 0, 1, 1], [], []>} : vector<10x32xf32>, vector<32x32xf32>, vector<10x32xf32> -> vector<10x32xf32>
    %cst_157 = arith.constant 1.000000e-30 : f32
    %459 = vector.broadcast %cst_157 : f32 to vector<10x32xf32>
    %460 = arith.maximumf %458, %459 : vector<10x32xf32>
    %461 = arith.divf %457, %460 : vector<10x32xf32>
    %cst_158 = arith.constant dense<0.000000e+00> : vector<10x32xf32>
    %462 = tpu.matmul %461, %446, %cst_158 {dimension_numbers = #tpu.dot_dimension_numbers<[1], [0], [0], [1], [0, 0, 1, 1], [], []>} : vector<10x32xf32>, vector<32x32xf32>, vector<10x32xf32> -> vector<10x32xf32>
    %c8_159 = arith.constant 8 : index
    %c0_160 = arith.constant 0 : index
    %c0_161 = arith.constant 0 : index
    %463 = vector.load %arg4[%c8_159, %c0_160, %c0_161] : memref<10x32x128xf32, #tpu.memory_space<vmem>>, vector<1x32x128xf32>
    %464 = vector.shape_cast %463 : vector<1x32x128xf32> to vector<32x128xf32>
    %cst_162 = arith.constant dense<0.000000e+00> : vector<10x128xf32>
    %465 = tpu.matmul %462, %464, %cst_162 {dimension_numbers = #tpu.dot_dimension_numbers<[1], [0], [0], [1], [0, 0, 1, 1], [], []>} : vector<10x32xf32>, vector<32x128xf32>, vector<10x128xf32> -> vector<10x128xf32>
    %c15 = arith.constant 15 : index
    %c0_163 = arith.constant 0 : index
    %466 = vector.load %arg6[%c15, %c0_163] : memref<23x128xf32, #tpu.memory_space<vmem>>, vector<1x128xf32>
    %467 = vector.broadcast %466 : vector<1x128xf32> to vector<10x128xf32>
    %468 = arith.addf %465, %467 : vector<10x128xf32>
    %469 = vector.extract_strided_slice %468 {offsets = [0, 0], sizes = [10, 32], strides = [1, 1]} : vector<10x128xf32> to vector<10x32xf32>
    %470 = arith.addf %469, %419 : vector<10x32xf32>
    %c16 = arith.constant 16 : index
    %c0_164 = arith.constant 0 : index
    %471 = vector.load %arg6[%c16, %c0_164] : memref<23x128xf32, #tpu.memory_space<vmem>>, vector<1x32xf32>
    %c17 = arith.constant 17 : index
    %c0_165 = arith.constant 0 : index
    %472 = vector.load %arg6[%c17, %c0_165] : memref<23x128xf32, #tpu.memory_space<vmem>>, vector<1x32xf32>
    %cst_166 = arith.constant dense<0.000000e+00> : vector<10xf32>
    %473 = vector.multi_reduction <add>, %470, %cst_166 [1] : vector<10x32xf32> to vector<10xf32>
    %474 = vector.shape_cast %473 : vector<10xf32> to vector<10x1xf32>
    %cst_167 = arith.constant 3.200000e+01 : f32
    %475 = vector.broadcast %cst_167 : f32 to vector<10x1xf32>
    %476 = arith.divf %474, %475 : vector<10x1xf32>
    %477 = vector.broadcast %476 : vector<10x1xf32> to vector<10x32xf32>
    %478 = arith.subf %470, %477 : vector<10x32xf32>
    %479 = arith.mulf %478, %478 : vector<10x32xf32>
    %cst_168 = arith.constant dense<0.000000e+00> : vector<10xf32>
    %480 = vector.multi_reduction <add>, %479, %cst_168 [1] : vector<10x32xf32> to vector<10xf32>
    %481 = vector.shape_cast %480 : vector<10xf32> to vector<10x1xf32>
    %cst_169 = arith.constant 3.200000e+01 : f32
    %482 = vector.broadcast %cst_169 : f32 to vector<10x1xf32>
    %483 = arith.divf %481, %482 : vector<10x1xf32>
    %484 = vector.broadcast %476 : vector<10x1xf32> to vector<10x32xf32>
    %485 = arith.subf %470, %484 : vector<10x32xf32>
    %cst_170 = arith.constant 9.99999997E-7 : f32
    %486 = vector.broadcast %cst_170 : f32 to vector<10x1xf32>
    %487 = arith.addf %483, %486 : vector<10x1xf32>
    %488 = math.rsqrt %487 : vector<10x1xf32>
    %489 = vector.broadcast %488 : vector<10x1xf32> to vector<10x32xf32>
    %490 = arith.mulf %485, %489 : vector<10x32xf32>
    %491 = vector.broadcast %471 : vector<1x32xf32> to vector<10x32xf32>
    %492 = arith.mulf %490, %491 : vector<10x32xf32>
    %493 = vector.broadcast %472 : vector<1x32xf32> to vector<10x32xf32>
    %494 = arith.addf %492, %493 : vector<10x32xf32>
    %c9_171 = arith.constant 9 : index
    %c0_172 = arith.constant 0 : index
    %c0_173 = arith.constant 0 : index
    %495 = vector.load %arg4[%c9_171, %c0_172, %c0_173] : memref<10x32x128xf32, #tpu.memory_space<vmem>>, vector<1x32x128xf32>
    %496 = vector.shape_cast %495 : vector<1x32x128xf32> to vector<32x128xf32>
    %cst_174 = arith.constant dense<0.000000e+00> : vector<10x128xf32>
    %497 = tpu.matmul %494, %496, %cst_174 {dimension_numbers = #tpu.dot_dimension_numbers<[1], [0], [0], [1], [0, 0, 1, 1], [], []>} : vector<10x32xf32>, vector<32x128xf32>, vector<10x128xf32> -> vector<10x128xf32>
    %c18 = arith.constant 18 : index
    %c0_175 = arith.constant 0 : index
    %498 = vector.load %arg6[%c18, %c0_175] : memref<23x128xf32, #tpu.memory_space<vmem>>, vector<1x128xf32>
    %499 = vector.broadcast %498 : vector<1x128xf32> to vector<10x128xf32>
    %500 = arith.addf %497, %499 : vector<10x128xf32>
    %501 = vector.extract_strided_slice %500 {offsets = [0, 0], sizes = [10, 64], strides = [1, 1]} : vector<10x128xf32> to vector<10x64xf32>
    %cst_176 = arith.constant 0.000000e+00 : f32
    %502 = vector.broadcast %cst_176 : f32 to vector<10x64xf32>
    %503 = arith.maximumf %501, %502 : vector<10x64xf32>
    %c2_177 = arith.constant 2 : index
    %c0_178 = arith.constant 0 : index
    %c0_179 = arith.constant 0 : index
    %504 = vector.load %arg5[%c2_177, %c0_178, %c0_179] : memref<3x64x128xf32, #tpu.memory_space<vmem>>, vector<1x64x128xf32>
    %505 = vector.shape_cast %504 : vector<1x64x128xf32> to vector<64x128xf32>
    %cst_180 = arith.constant dense<0.000000e+00> : vector<10x128xf32>
    %506 = tpu.matmul %503, %505, %cst_180 {dimension_numbers = #tpu.dot_dimension_numbers<[1], [0], [0], [1], [0, 0, 1, 1], [], []>} : vector<10x64xf32>, vector<64x128xf32>, vector<10x128xf32> -> vector<10x128xf32>
    %c19 = arith.constant 19 : index
    %c0_181 = arith.constant 0 : index
    %507 = vector.load %arg6[%c19, %c0_181] : memref<23x128xf32, #tpu.memory_space<vmem>>, vector<1x128xf32>
    %508 = vector.broadcast %507 : vector<1x128xf32> to vector<10x128xf32>
    %509 = arith.addf %506, %508 : vector<10x128xf32>
    %510 = vector.extract_strided_slice %509 {offsets = [0, 0], sizes = [10, 32], strides = [1, 1]} : vector<10x128xf32> to vector<10x32xf32>
    %511 = arith.addf %510, %494 : vector<10x32xf32>
    %c20 = arith.constant 20 : index
    %c0_182 = arith.constant 0 : index
    %512 = vector.load %arg6[%c20, %c0_182] : memref<23x128xf32, #tpu.memory_space<vmem>>, vector<1x32xf32>
    %c21 = arith.constant 21 : index
    %c0_183 = arith.constant 0 : index
    %513 = vector.load %arg6[%c21, %c0_183] : memref<23x128xf32, #tpu.memory_space<vmem>>, vector<1x32xf32>
    %cst_184 = arith.constant dense<0.000000e+00> : vector<10xf32>
    %514 = vector.multi_reduction <add>, %511, %cst_184 [1] : vector<10x32xf32> to vector<10xf32>
    %515 = vector.shape_cast %514 : vector<10xf32> to vector<10x1xf32>
    %cst_185 = arith.constant 3.200000e+01 : f32
    %516 = vector.broadcast %cst_185 : f32 to vector<10x1xf32>
    %517 = arith.divf %515, %516 : vector<10x1xf32>
    %518 = vector.broadcast %517 : vector<10x1xf32> to vector<10x32xf32>
    %519 = arith.subf %511, %518 : vector<10x32xf32>
    %520 = arith.mulf %519, %519 : vector<10x32xf32>
    %cst_186 = arith.constant dense<0.000000e+00> : vector<10xf32>
    %521 = vector.multi_reduction <add>, %520, %cst_186 [1] : vector<10x32xf32> to vector<10xf32>
    %522 = vector.shape_cast %521 : vector<10xf32> to vector<10x1xf32>
    %cst_187 = arith.constant 3.200000e+01 : f32
    %523 = vector.broadcast %cst_187 : f32 to vector<10x1xf32>
    %524 = arith.divf %522, %523 : vector<10x1xf32>
    %525 = vector.broadcast %517 : vector<10x1xf32> to vector<10x32xf32>
    %526 = arith.subf %511, %525 : vector<10x32xf32>
    %cst_188 = arith.constant 9.99999997E-7 : f32
    %527 = vector.broadcast %cst_188 : f32 to vector<10x1xf32>
    %528 = arith.addf %524, %527 : vector<10x1xf32>
    %529 = math.rsqrt %528 : vector<10x1xf32>
    %530 = vector.broadcast %529 : vector<10x1xf32> to vector<10x32xf32>
    %531 = arith.mulf %526, %530 : vector<10x32xf32>
    %532 = vector.broadcast %512 : vector<1x32xf32> to vector<10x32xf32>
    %533 = arith.mulf %531, %532 : vector<10x32xf32>
    %534 = vector.broadcast %513 : vector<1x32xf32> to vector<10x32xf32>
    %535 = arith.addf %533, %534 : vector<10x32xf32>
    %cst_189 = arith.constant dense<0.000000e+00> : vector<10x10xf32>
    %536 = tpu.matmul %535, %433, %cst_189 {dimension_numbers = #tpu.dot_dimension_numbers<[1], [0], [0], [1], [0, 0, 1, 1], [], []>} : vector<10x32xf32>, vector<32x10xf32>, vector<10x10xf32> -> vector<10x10xf32>
    %537 = arith.mulf %536, %438 : vector<10x10xf32>
    %cst_190 = arith.constant dense<0.000000e+00> : vector<10xf32>
    %538 = vector.multi_reduction <add>, %537, %cst_190 [0] : vector<10x10xf32> to vector<10xf32>
    %539 = vector.shape_cast %538 : vector<10xf32> to vector<1x10xf32>
    %540 = vector.extract_strided_slice %432 {offsets = [8, 0], sizes = [8, 32], strides = [1, 1]} : vector<16x128xf32> to vector<8x32xf32>
    %541 = vector.extract_strided_slice %432 {offsets = [8, 32], sizes = [8, 32], strides = [1, 1]} : vector<16x128xf32> to vector<8x32xf32>
    %542 = vector.extract_strided_slice %5 {offsets = [1, 0], sizes = [1, 8], strides = [1, 1]} : vector<2x8xf32> to vector<1x8xf32>
    %543 = tpu.transpose %540, [1, 0] : vector<8x32xf32> -> vector<32x8xf32>
    %544 = tpu.concatenate %543, %543, %543, %543 in 1 : vector<32x8xf32>, vector<32x8xf32>, vector<32x8xf32>, vector<32x8xf32> -> vector<32x32xf32>
    %545 = arith.mulf %544, %44 : vector<32x32xf32>
    %546 = tpu.concatenate %541, %541, %541, %541 in 0 : vector<8x32xf32>, vector<8x32xf32>, vector<8x32xf32>, vector<8x32xf32> -> vector<32x32xf32>
    %547 = arith.mulf %546, %75 : vector<32x32xf32>
    %cst_191 = arith.constant dense<0.000000e+00> : vector<10x32xf32>
    %548 = tpu.matmul %426, %545, %cst_191 {dimension_numbers = #tpu.dot_dimension_numbers<[1], [0], [0], [1], [0, 0, 1, 1], [], []>} : vector<10x32xf32>, vector<32x32xf32>, vector<10x32xf32> -> vector<10x32xf32>
    %cst_192 = arith.constant 0.353553385 : f32
    %549 = vector.broadcast %cst_192 : f32 to vector<10x32xf32>
    %550 = arith.mulf %548, %549 : vector<10x32xf32>
    %551 = tpu.concatenate %542, %542, %542, %542 in 1 : vector<1x8xf32>, vector<1x8xf32>, vector<1x8xf32>, vector<1x8xf32> -> vector<1x32xf32>
    %552 = vector.broadcast %551 : vector<1x32xf32> to vector<10x32xf32>
    %553 = arith.addf %550, %552 : vector<10x32xf32>
    %cst_193 = arith.constant dense<0xFF800000> : vector<10xf32>
    %554 = vector.multi_reduction <maximumf>, %553, %cst_193 [1] : vector<10x32xf32> to vector<10xf32>
    %555 = vector.shape_cast %554 : vector<10xf32> to vector<10x1xf32>
    %556 = vector.broadcast %555 : vector<10x1xf32> to vector<10x32xf32>
    %557 = arith.subf %553, %556 : vector<10x32xf32>
    %558 = math.exp %557 : vector<10x32xf32>
    %cst_194 = arith.constant dense<0.000000e+00> : vector<10x32xf32>
    %559 = tpu.matmul %558, %106, %cst_194 {dimension_numbers = #tpu.dot_dimension_numbers<[1], [0], [0], [1], [0, 0, 1, 1], [], []>} : vector<10x32xf32>, vector<32x32xf32>, vector<10x32xf32> -> vector<10x32xf32>
    %cst_195 = arith.constant 1.000000e-30 : f32
    %560 = vector.broadcast %cst_195 : f32 to vector<10x32xf32>
    %561 = arith.maximumf %559, %560 : vector<10x32xf32>
    %562 = arith.divf %558, %561 : vector<10x32xf32>
    %cst_196 = arith.constant dense<0.000000e+00> : vector<10x32xf32>
    %563 = tpu.matmul %562, %547, %cst_196 {dimension_numbers = #tpu.dot_dimension_numbers<[1], [0], [0], [1], [0, 0, 1, 1], [], []>} : vector<10x32xf32>, vector<32x32xf32>, vector<10x32xf32> -> vector<10x32xf32>
    %c8_197 = arith.constant 8 : index
    %c0_198 = arith.constant 0 : index
    %c0_199 = arith.constant 0 : index
    %564 = vector.load %arg4[%c8_197, %c0_198, %c0_199] : memref<10x32x128xf32, #tpu.memory_space<vmem>>, vector<1x32x128xf32>
    %565 = vector.shape_cast %564 : vector<1x32x128xf32> to vector<32x128xf32>
    %cst_200 = arith.constant dense<0.000000e+00> : vector<10x128xf32>
    %566 = tpu.matmul %563, %565, %cst_200 {dimension_numbers = #tpu.dot_dimension_numbers<[1], [0], [0], [1], [0, 0, 1, 1], [], []>} : vector<10x32xf32>, vector<32x128xf32>, vector<10x128xf32> -> vector<10x128xf32>
    %c15_201 = arith.constant 15 : index
    %c0_202 = arith.constant 0 : index
    %567 = vector.load %arg6[%c15_201, %c0_202] : memref<23x128xf32, #tpu.memory_space<vmem>>, vector<1x128xf32>
    %568 = vector.broadcast %567 : vector<1x128xf32> to vector<10x128xf32>
    %569 = arith.addf %566, %568 : vector<10x128xf32>
    %570 = vector.extract_strided_slice %569 {offsets = [0, 0], sizes = [10, 32], strides = [1, 1]} : vector<10x128xf32> to vector<10x32xf32>
    %571 = arith.addf %570, %419 : vector<10x32xf32>
    %c16_203 = arith.constant 16 : index
    %c0_204 = arith.constant 0 : index
    %572 = vector.load %arg6[%c16_203, %c0_204] : memref<23x128xf32, #tpu.memory_space<vmem>>, vector<1x32xf32>
    %c17_205 = arith.constant 17 : index
    %c0_206 = arith.constant 0 : index
    %573 = vector.load %arg6[%c17_205, %c0_206] : memref<23x128xf32, #tpu.memory_space<vmem>>, vector<1x32xf32>
    %cst_207 = arith.constant dense<0.000000e+00> : vector<10xf32>
    %574 = vector.multi_reduction <add>, %571, %cst_207 [1] : vector<10x32xf32> to vector<10xf32>
    %575 = vector.shape_cast %574 : vector<10xf32> to vector<10x1xf32>
    %cst_208 = arith.constant 3.200000e+01 : f32
    %576 = vector.broadcast %cst_208 : f32 to vector<10x1xf32>
    %577 = arith.divf %575, %576 : vector<10x1xf32>
    %578 = vector.broadcast %577 : vector<10x1xf32> to vector<10x32xf32>
    %579 = arith.subf %571, %578 : vector<10x32xf32>
    %580 = arith.mulf %579, %579 : vector<10x32xf32>
    %cst_209 = arith.constant dense<0.000000e+00> : vector<10xf32>
    %581 = vector.multi_reduction <add>, %580, %cst_209 [1] : vector<10x32xf32> to vector<10xf32>
    %582 = vector.shape_cast %581 : vector<10xf32> to vector<10x1xf32>
    %cst_210 = arith.constant 3.200000e+01 : f32
    %583 = vector.broadcast %cst_210 : f32 to vector<10x1xf32>
    %584 = arith.divf %582, %583 : vector<10x1xf32>
    %585 = vector.broadcast %577 : vector<10x1xf32> to vector<10x32xf32>
    %586 = arith.subf %571, %585 : vector<10x32xf32>
    %cst_211 = arith.constant 9.99999997E-7 : f32
    %587 = vector.broadcast %cst_211 : f32 to vector<10x1xf32>
    %588 = arith.addf %584, %587 : vector<10x1xf32>
    %589 = math.rsqrt %588 : vector<10x1xf32>
    %590 = vector.broadcast %589 : vector<10x1xf32> to vector<10x32xf32>
    %591 = arith.mulf %586, %590 : vector<10x32xf32>
    %592 = vector.broadcast %572 : vector<1x32xf32> to vector<10x32xf32>
    %593 = arith.mulf %591, %592 : vector<10x32xf32>
    %594 = vector.broadcast %573 : vector<1x32xf32> to vector<10x32xf32>
    %595 = arith.addf %593, %594 : vector<10x32xf32>
    %c9_212 = arith.constant 9 : index
    %c0_213 = arith.constant 0 : index
    %c0_214 = arith.constant 0 : index
    %596 = vector.load %arg4[%c9_212, %c0_213, %c0_214] : memref<10x32x128xf32, #tpu.memory_space<vmem>>, vector<1x32x128xf32>
    %597 = vector.shape_cast %596 : vector<1x32x128xf32> to vector<32x128xf32>
    %cst_215 = arith.constant dense<0.000000e+00> : vector<10x128xf32>
    %598 = tpu.matmul %595, %597, %cst_215 {dimension_numbers = #tpu.dot_dimension_numbers<[1], [0], [0], [1], [0, 0, 1, 1], [], []>} : vector<10x32xf32>, vector<32x128xf32>, vector<10x128xf32> -> vector<10x128xf32>
    %c18_216 = arith.constant 18 : index
    %c0_217 = arith.constant 0 : index
    %599 = vector.load %arg6[%c18_216, %c0_217] : memref<23x128xf32, #tpu.memory_space<vmem>>, vector<1x128xf32>
    %600 = vector.broadcast %599 : vector<1x128xf32> to vector<10x128xf32>
    %601 = arith.addf %598, %600 : vector<10x128xf32>
    %602 = vector.extract_strided_slice %601 {offsets = [0, 0], sizes = [10, 64], strides = [1, 1]} : vector<10x128xf32> to vector<10x64xf32>
    %cst_218 = arith.constant 0.000000e+00 : f32
    %603 = vector.broadcast %cst_218 : f32 to vector<10x64xf32>
    %604 = arith.maximumf %602, %603 : vector<10x64xf32>
    %c2_219 = arith.constant 2 : index
    %c0_220 = arith.constant 0 : index
    %c0_221 = arith.constant 0 : index
    %605 = vector.load %arg5[%c2_219, %c0_220, %c0_221] : memref<3x64x128xf32, #tpu.memory_space<vmem>>, vector<1x64x128xf32>
    %606 = vector.shape_cast %605 : vector<1x64x128xf32> to vector<64x128xf32>
    %cst_222 = arith.constant dense<0.000000e+00> : vector<10x128xf32>
    %607 = tpu.matmul %604, %606, %cst_222 {dimension_numbers = #tpu.dot_dimension_numbers<[1], [0], [0], [1], [0, 0, 1, 1], [], []>} : vector<10x64xf32>, vector<64x128xf32>, vector<10x128xf32> -> vector<10x128xf32>
    %c19_223 = arith.constant 19 : index
    %c0_224 = arith.constant 0 : index
    %608 = vector.load %arg6[%c19_223, %c0_224] : memref<23x128xf32, #tpu.memory_space<vmem>>, vector<1x128xf32>
    %609 = vector.broadcast %608 : vector<1x128xf32> to vector<10x128xf32>
    %610 = arith.addf %607, %609 : vector<10x128xf32>
    %611 = vector.extract_strided_slice %610 {offsets = [0, 0], sizes = [10, 32], strides = [1, 1]} : vector<10x128xf32> to vector<10x32xf32>
    %612 = arith.addf %611, %595 : vector<10x32xf32>
    %c20_225 = arith.constant 20 : index
    %c0_226 = arith.constant 0 : index
    %613 = vector.load %arg6[%c20_225, %c0_226] : memref<23x128xf32, #tpu.memory_space<vmem>>, vector<1x32xf32>
    %c21_227 = arith.constant 21 : index
    %c0_228 = arith.constant 0 : index
    %614 = vector.load %arg6[%c21_227, %c0_228] : memref<23x128xf32, #tpu.memory_space<vmem>>, vector<1x32xf32>
    %cst_229 = arith.constant dense<0.000000e+00> : vector<10xf32>
    %615 = vector.multi_reduction <add>, %612, %cst_229 [1] : vector<10x32xf32> to vector<10xf32>
    %616 = vector.shape_cast %615 : vector<10xf32> to vector<10x1xf32>
    %cst_230 = arith.constant 3.200000e+01 : f32
    %617 = vector.broadcast %cst_230 : f32 to vector<10x1xf32>
    %618 = arith.divf %616, %617 : vector<10x1xf32>
    %619 = vector.broadcast %618 : vector<10x1xf32> to vector<10x32xf32>
    %620 = arith.subf %612, %619 : vector<10x32xf32>
    %621 = arith.mulf %620, %620 : vector<10x32xf32>
    %cst_231 = arith.constant dense<0.000000e+00> : vector<10xf32>
    %622 = vector.multi_reduction <add>, %621, %cst_231 [1] : vector<10x32xf32> to vector<10xf32>
    %623 = vector.shape_cast %622 : vector<10xf32> to vector<10x1xf32>
    %cst_232 = arith.constant 3.200000e+01 : f32
    %624 = vector.broadcast %cst_232 : f32 to vector<10x1xf32>
    %625 = arith.divf %623, %624 : vector<10x1xf32>
    %626 = vector.broadcast %618 : vector<10x1xf32> to vector<10x32xf32>
    %627 = arith.subf %612, %626 : vector<10x32xf32>
    %cst_233 = arith.constant 9.99999997E-7 : f32
    %628 = vector.broadcast %cst_233 : f32 to vector<10x1xf32>
    %629 = arith.addf %625, %628 : vector<10x1xf32>
    %630 = math.rsqrt %629 : vector<10x1xf32>
    %631 = vector.broadcast %630 : vector<10x1xf32> to vector<10x32xf32>
    %632 = arith.mulf %627, %631 : vector<10x32xf32>
    %633 = vector.broadcast %613 : vector<1x32xf32> to vector<10x32xf32>
    %634 = arith.mulf %632, %633 : vector<10x32xf32>
    %635 = vector.broadcast %614 : vector<1x32xf32> to vector<10x32xf32>
    %636 = arith.addf %634, %635 : vector<10x32xf32>
    %cst_234 = arith.constant dense<0.000000e+00> : vector<10x10xf32>
    %637 = tpu.matmul %636, %433, %cst_234 {dimension_numbers = #tpu.dot_dimension_numbers<[1], [0], [0], [1], [0, 0, 1, 1], [], []>} : vector<10x32xf32>, vector<32x10xf32>, vector<10x10xf32> -> vector<10x10xf32>
    %638 = arith.mulf %637, %438 : vector<10x10xf32>
    %cst_235 = arith.constant dense<0.000000e+00> : vector<10xf32>
    %639 = vector.multi_reduction <add>, %638, %cst_235 [0] : vector<10x10xf32> to vector<10xf32>
    %640 = vector.shape_cast %639 : vector<10xf32> to vector<1x10xf32>
    %641 = tpu.concatenate %539, %640 in 0 : vector<1x10xf32>, vector<1x10xf32> -> vector<2x10xf32>
    %c22 = arith.constant 22 : index
    %c0_236 = arith.constant 0 : index
    %642 = vector.load %arg6[%c22, %c0_236] : memref<23x128xf32, #tpu.memory_space<vmem>>, vector<1x10xf32>
    %643 = vector.broadcast %642 : vector<1x10xf32> to vector<2x10xf32>
    %644 = arith.addf %641, %643 : vector<2x10xf32>
    %c0_237 = arith.constant 0 : index
    %c0_238 = arith.constant 0 : index
    %645 = vector.load %arg7[%c0_237, %c0_238] : memref<2x10xf32, #tpu.memory_space<vmem>>, vector<2x10xf32>
    tpu.vector_store %arg7[%c0_237, %c0_238], %644 {strides = array<i32>} : memref<2x10xf32, #tpu.memory_space<vmem>>, vector<2x10xf32>,
    return
  }
}

</mosaic_0001>

<llo_original>
// kernel: mrmp_forward.1
$region0: #{mrmp_forward.1}
  #allocation0 [shape = 'u32[]', space=smem, size = 0x4, offset = 0x4, fixed_abs, tag = 'smem constant byte address 0x4 - core index']
  #allocation1 [shape = 'u32[144,128]{1,0:T(1,128)}', space=vmem, size = 0x12000, scoped, tag = 'internal scratch']
  %s0 = inlined_call_operand.vmem [shape: s32[2,8], index: 0, kind: input, shape index: {}]
  %s1 = inlined_call_operand.vmem [shape: s32[16,1], index: 1, kind: input, shape index: {}]
  %s2 = inlined_call_operand.vmem [shape: f32[48,32], index: 2, kind: input, shape index: {}]
  %s3 = inlined_call_operand.vmem [shape: f32[10,16], index: 3, kind: input, shape index: {}]
  %s4 = inlined_call_operand.hbm [shape: f32[10,32,128], index: 4, kind: input, shape index: {}]
  %s5 = inlined_call_operand.hbm [shape: f32[3,64,128], index: 5, kind: input, shape index: {}]
  %s6 = inlined_call_operand.vmem [shape: f32[23,128], index: 6, kind: input, shape index: {}]
  %s7 = inlined_call_operand.hbm [shape: f32[2,10], index: 7, kind: output, shape index: {0}]
  %s8 = inlined_call_operand.hbm [shape: f32[10,32], index: 8, kind: output, shape index: {1}]
  %s9 = inlined_call_operand.hbm [shape: f32[6,32], index: 9, kind: output, shape index: {2}]
  %10 = xla_tuple %s7, %s8, %s9
  %s11 = sld [smem:[#allocation0]]
  $region62: #{mrmp_forward.1} parent=0
    _
  %s13 = ssub.s32 1, %s11
  %s14 = scalar_select 0, %s13, %s11
  $region1: #{mrmp_forward.1} parent=0
    #allocation2 [shape = 'u8[163840]{0}', space=vmem, size = 0x28000, scoped, tag = 'input window, operand 4, single buffered']
    #allocation3 [shape = 's32[1]{0}', space=sflag, size = 0x4, scoped, tag = 'scoped memory for mrmp_forward.1']
    #allocation4 [shape = 's32[1]{0}', space=sflag, size = 0x4, scoped, tag = 'scoped memory for mrmp_forward.1']
    #allocation5 [shape = 'u8[98304]{0}', space=vmem, size = 0x18000, scoped, tag = 'input window, operand 5, single buffered']
    #allocation6 [shape = 's32[1]{0}', space=sflag, size = 0x4, scoped, tag = 'scoped memory for mrmp_forward.1']
    #allocation7 [shape = 'u8[1024]{0}', space=vmem, size = 0x400, scoped, tag = 'output window, operand 0, single buffered']
    #allocation8 [shape = 'u8[8192]{0}', space=vmem, size = 0x2000, scoped, tag = 'output window, operand 1, single buffered']
    #allocation9 [shape = 's32[1]{0}', space=sflag, size = 0x4, scoped, tag = 'scoped memory for mrmp_forward.1']
    #allocation10 [shape = 'u8[4096]{0}', space=vmem, size = 0x1000, scoped, tag = 'output window, operand 2, single buffered']
    %15 = vsyncpa [#allocation3], 0
    %16 = vsyncpa [#allocation6], 0
    %17 = vsyncpa [#allocation4], 0
    %18 = vsyncpa [#allocation9], 0
    // Predicated region
    $region2: #{mrmp_forward.1} parent=1 // pred_check
      _
    $region3: #{mrmp_forward.1} parent=1 // pred_check_branch
      %20 = sbr.rel (0) target = $region5
    $region4: #{mrmp_forward.1} parent=1 // pred_region
      _
    $region5: #{mrmp_forward.1} parent=1 // pred_fallthru
      _
    // Predicated region
    $region6: #{mrmp_forward.1} parent=1 // pred_check
      _
    $region7: #{mrmp_forward.1} parent=1 // pred_check_branch
      %22 = sbr.rel (0) target = $region9
    $region8: #{mrmp_forward.1} parent=1 // pred_region
      _
    $region9: #{mrmp_forward.1} parent=1 // pred_fallthru
      _
    // Predicated region
    $region10: #{mrmp_forward.1} parent=1 // pred_check
      _
    $region11: #{mrmp_forward.1} parent=1 // pred_check_branch
      %24 = sbr.rel (0) target = $region13
    $region12: #{mrmp_forward.1} parent=1 // pred_region
      _
    $region13: #{mrmp_forward.1} parent=1 // pred_fallthru
      _
    // Predicated region
    $region14: #{mrmp_forward.1} parent=1 // pred_check
      _
    $region15: #{mrmp_forward.1} parent=1 // pred_check_branch
      %26 = sbr.rel (0) target = $region17
    $region16: #{mrmp_forward.1} parent=1 // pred_region
      _
    $region17: #{mrmp_forward.1} parent=1 // pred_fallthru
      _
    // Predicated region
    $region18: #{mrmp_forward.1} parent=1 // pred_check
      _
    $region19: #{mrmp_forward.1} parent=1 // pred_check_branch
      %28 = sbr.rel (0) target = $region21
    $region20: #{mrmp_forward.1} parent=1 // pred_region
      %s30 = ssub.s32 5120, 5120
      %31 = vsyncadd [#allocation3], %s30
      %s32 = sshll.u32 [#allocation2], 4
      %s33 = int_to_ptr.vmem [resolvable:$true] %s32
      %38 = dma.hbm_to_vmem [thread:$0]  %s4, 5120, %s33, [#allocation3], 128, 128, 8
    $region21: #{mrmp_forward.1} parent=1 // pred_fallthru
      _
    // Predicated region
    $region22: #{mrmp_forward.1} parent=1 // pred_check
      _
    $region23: #{mrmp_forward.1} parent=1 // pred_check_branch
      %40 = sbr.rel (0) target = $region25
    $region24: #{mrmp_forward.1} parent=1 // pred_region
      %s42 = ssub.s32 3072, 3072
      %43 = vsyncadd [#allocation6], %s42
      %s44 = sshll.u32 [#allocation5], 4
      %s45 = int_to_ptr.vmem [resolvable:$true] %s44
      %50 = dma.hbm_to_vmem [thread:$0]  %s5, 3072, %s45, [#allocation6], 128, 128, 8
    $region25: #{mrmp_forward.1} parent=1 // pred_fallthru
      _
    // Predicated region
    $region26: #{mrmp_forward.1} parent=1 // pred_check
      _
    $region27: #{mrmp_forward.1} parent=1 // pred_check_branch
      %52 = sbr.rel (0) target = $region29
    $region28: #{mrmp_forward.1} parent=1 // pred_region
      _
    $region29: #{mrmp_forward.1} parent=1 // pred_fallthru
      _
    // Predicated region
    $region30: #{mrmp_forward.1} parent=1 // pred_check
      _
    $region31: #{mrmp_forward.1} parent=1 // pred_check_branch
      %54 = sbr.rel (0) target = $region33
    $region32: #{mrmp_forward.1} parent=1 // pred_region
      %55 = dma.done [#allocation3], 5120
    $region33: #{mrmp_forward.1} parent=1 // pred_fallthru
      _
    // Predicated region
    $region34: #{mrmp_forward.1} parent=1 // pred_check
      _
    $region35: #{mrmp_forward.1} parent=1 // pred_check_branch
      %57 = sbr.rel (0) target = $region37
    $region36: #{mrmp_forward.1} parent=1 // pred_region
      %58 = dma.done [#allocation6], 3072
    $region37: #{mrmp_forward.1} parent=1 // pred_fallthru
      _
    %v59 = vld [vmem:[%s0] sm:$0x3]
    %vm60 = vcmp.eq.s32.totalorder %v59, 0
    %v61 = vsel %vm60, -1e+09, 0.0
    %v62 = vld [vmem:[%s2] sm:$0xff]
    %v63 = vld [vmem:[%s2 + $0x8] sm:$0xff]
    %v64 = vld [vmem:[%s2 + $0x10] sm:$0xf]
    %v65 = vld [vmem:[%s1] sm:$0xff]
    %v66 = vld [vmem:[%s1 + $0x8] sm:$0xff]
    %v67 = vlaneseq
    %v68 = vand.u32 %v67, 127
    %69 = vset.pattern.permute.xlu0 0
    %70 = vperm.xlu0 %69, %v65
    %v71 = vpop.permute.xlu0 %70
    %72 = vset.pattern.permute.xlu0 0
    %73 = vperm.xlu0 %72, %v66
    %v74 = vpop.permute.xlu0 %73
    %vm75 = vcmp.eq.s32.totalorder %v71, %v68
    %vm76 = vcmp.eq.s32.totalorder %v74, %v68
    %v77 = vsel %vm75, 1, 0
    %v78 = vsel %vm76, 1, 0
    %v79 = vcvt.s32.f32 %v77
    %v80 = vcvt.s32.f32 %v78
    %vm81 = vcmask 162816
    %v83 = vsel %vm81, %v79, 0
    %v86 = vsel %vm81, %v80, 0
    %vm88 = vcmask 1043456
    %v90 = vsel %vm88, %v64, 0
    %92 = vmatprep.subr.mxu0 0.0
    %93 = vmatpush1.msra.mxu0 %v62
    %94 = vmatprep.subr.mxu0 0.0
    %95 = vmatpush1.msra.mxu0 %v63
    %96 = vmatprep.subr.mxu0 0.0
    %97 = vmatpush1.msra.mxu0 %v90
    %98 = vmatprep.subr.mxu0 0.0
    %99 = vmatpush1.msra.mxu0 0.0
    %100 = vmatprep.subr.mxu0 0.0
    %101 = vmatpush1.msra.mxu0 0.0
    %102 = vmatprep.subr.mxu0 0.0
    %103 = vmatpush1.msra.mxu0 0.0
    %104 = vmatprep.subr.mxu0 0.0
    %105 = vmatpush1.msra.mxu0 0.0
    %106 = vmatprep.subr.mxu0 0.0
    %107 = vmatpush1.msra.mxu0 0.0
    %108 = vmatprep.subr.mxu0 0.0
    %109 = vmatpush1.msra.mxu0 0.0
    %110 = vmatprep.subr.mxu0 0.0
    %111 = vmatpush1.msra.mxu0 0.0
    %112 = vmatprep.subr.mxu0 0.0
    %113 = vmatpush1.msra.mxu0 0.0
    %114 = vmatprep.subr.mxu0 0.0
    %115 = vmatpush1.msra.mxu0 0.0
    %116 = vmatprep.subr.mxu0 0.0
    %117 = vmatpush1.msra.mxu0 0.0
    %118 = vmatprep.subr.mxu0 0.0
    %119 = vmatpush1.msra.mxu0 0.0
    %120 = vmatprep.subr.mxu0 0.0
    %121 = vmatpush1.msra.mxu0 0.0
    %122 = vmatprep.subr.mxu0 0.0
    %123 = vmatpush1.msra.mxu0 0.0
    %124 = vmatprep.subr.mxu0 0.0
    %125 = vmatpush1.msra.mxu0 0.0
    %126 = vmatprep.subr.mxu0 0.0
    %127 = vmatpush1.msra.mxu0 0.0
    %128 = vmatprep.subr.mxu0 0.0
    %129 = vmatpush1.msra.mxu0 0.0
    %130 = vmatprep.subr.mxu0 0.0
    %131 = vmatpush1.msra.mxu0 0.0
    %132 = vmatprep.subr.mxu0 0.0
    %133 = vmatpush1.msra.mxu0 0.0
    %134 = vmatprep.subr.mxu0 0.0
    %135 = vmatpush1.msra.mxu0 0.0
    %136 = vmatprep.subr.mxu0 0.0
    %137 = vmatpush1.msra.mxu0 0.0
    %138 = vmatprep.subr.mxu0 0.0
    %139 = vmatpush1.msra.mxu0 0.0
    %140 = vmatprep.subr.mxu0 0.0
    %141 = vmatpush1.msra.mxu0 0.0
    %142 = vmatprep.subr.mxu0 0.0
    %143 = vmatpush1.msra.mxu0 0.0
    %144 = vmatprep.subr.mxu0 0.0
    %145 = vmatpush1.msra.mxu0 0.0
    %146 = vmatprep.subr.mxu0 0.0
    %147 = vmatpush1.msra.mxu0 0.0
    %148 = vmatprep.subr.mxu0 0.0
    %149 = vmatpush1.msra.mxu0 0.0
    %150 = vmatprep.subr.mxu0 0.0
    %151 = vmatpush1.msra.mxu0 0.0
    %152 = vmatprep.subr.mxu0 0.0
    %153 = vmatpush1.msra.mxu0 0.0
    %154 = vmatprep.subr.mxu0 0.0
    %155 = vmatpush1.msra.mxu0 0.0
    %156 = vmatprep.mubr.f32.mxu0 0.0
    %157 = vmatmul.mubr.f32.gmra.mrb[0].mxu0 %v83
    %v158 = vpop.f32.mrb[0].mxu0
    %v159 = vadd.f32 0.0, %v158
    %v160 = vpop.f32.mrb[0].mxu0
    %161 = vmatprep.mubr.f32.mxu0 0.0
    %162 = vmatmul.mubr.f32.gmra.mrb[0].mxu0 %v86
    %v163 = vpop.f32.mrb[0].mxu0
    %v164 = vadd.f32 0.0, %v163
    %v165 = vpop.f32.mrb[0].mxu0
    %166 = vdwg.mxu0
    %v167 = vlaneseq
    %v168 = vshrl.u32 %v167, 7
    %v169 = vadd.s32 %v168, 8
    %v170 = vadd.s32 %v168, 16
    %v171 = vadd.s32 %v168, 24
    %vm172 = vcmp.ge.s32.totalorder %v168, 8
    %vm173 = vcmp.ge.s32.totalorder %v169, 8
    %vm174 = vcmp.ge.s32.totalorder %v170, 8
    %vm175 = vcmp.ge.s32.totalorder %v171, 8
    %v176 = vsel %vm172, 1, 0
    %v177 = vsel %vm173, 1, 0
    %v178 = vsel %vm174, 1, 0
    %v179 = vsel %vm175, 1, 0
    %vm180 = vcmp.ge.s32.totalorder %v168, 16
    %vm181 = vcmp.ge.s32.totalorder %v169, 16
    %vm182 = vcmp.ge.s32.totalorder %v170, 16
    %vm183 = vcmp.ge.s32.totalorder %v171, 16
    %v184 = vsel %vm180, 1, 0
    %v185 = vsel %vm181, 1, 0
    %v186 = vsel %vm182, 1, 0
    %v187 = vsel %vm183, 1, 0
    %v188 = vadd.s32 %v176, %v184
    %v189 = vadd.s32 %v177, %v185
    %v190 = vadd.s32 %v178, %v186
    %v191 = vadd.s32 %v179, %v187
    %vm192 = vcmp.ge.s32.totalorder %v168, 24
    %vm193 = vcmp.ge.s32.totalorder %v169, 24
    %vm194 = vcmp.ge.s32.totalorder %v170, 24
    %vm195 = vcmp.ge.s32.totalorder %v171, 24
    %v196 = vsel %vm192, 1, 0
    %v197 = vsel %vm193, 1, 0
    %v198 = vsel %vm194, 1, 0
    %v199 = vsel %vm195, 1, 0
    %v200 = vadd.s32 %v188, %v196
    %v201 = vadd.s32 %v189, %v197
    %v202 = vadd.s32 %v190, %v198
    %v203 = vadd.s32 %v191, %v199
    %vm204 = vcmp.ge.s32.totalorder %v68, 8
    %v205 = vsel %vm204, 1, 0
    %vm206 = vcmp.ge.s32.totalorder %v68, 16
    %v207 = vsel %vm206, 1, 0
    %v208 = vadd.s32 %v205, %v207
    %vm209 = vcmp.ge.s32.totalorder %v68, 24
    %v210 = vsel %vm209, 1, 0
    %v211 = vadd.s32 %v208, %v210
    %vm212 = vcmp.eq.s32.totalorder %v200, %v211
    %vm213 = vcmp.eq.s32.totalorder %v201, %v211
    %vm214 = vcmp.eq.s32.totalorder %v202, %v211
    %vm215 = vcmp.eq.s32.totalorder %v203, %v211
    %v216 = vsel %vm212, 1, 0
    %v217 = vsel %vm213, 1, 0
    %v218 = vsel %vm214, 1, 0
    %v219 = vsel %vm215, 1, 0
    %v220 = vcvt.s32.f32 %v216
    %v221 = vcvt.s32.f32 %v217
    %v222 = vcvt.s32.f32 %v218
    %v223 = vcvt.s32.f32 %v219
    %v224 = vld [vmem:[#allocation2] sm:$0xff]
    %v225 = vld [vmem:[#allocation2 + $0x8] sm:$0xff]
    %v226 = vld [vmem:[#allocation2 + $0x10] sm:$0xff]
    %v227 = vld [vmem:[#allocation2 + $0x18] sm:$0xff]
    %v228 = vld [vmem:[%s6] sm:$0x1]
    %v229 = vlaneseq
    %v230 = vshrl.u32 %v229, 7
    %v231 = vsub.s32 0, %v230
    %v232 = vrot.slane %v228, %v231
    %vm233 = vcmask 261120
    %v235 = vsel %vm233, %v159, 0
    %v238 = vsel %vm233, %v164, 0
    %240 = vmatprep.subr.mxu0 0.0
    %241 = vmatpush1.msra.mxu0 %v224
    %242 = vmatprep.subr.mxu0 0.0
    %243 = vmatpush1.msra.mxu0 %v225
    %244 = vmatprep.subr.mxu0 0.0
    %245 = vmatpush1.msra.mxu0 %v226
    %246 = vmatprep.subr.mxu0 0.0
    %247 = vmatpush1.msra.mxu0 %v227
    %248 = vmatprep.subr.mxu0 0.0
    %249 = vmatpush1.msra.mxu0 0.0
    %250 = vmatprep.subr.mxu0 0.0
    %251 = vmatpush1.msra.mxu0 0.0
    %252 = vmatprep.subr.mxu0 0.0
    %253 = vmatpush1.msra.mxu0 0.0
    %254 = vmatprep.subr.mxu0 0.0
    %255 = vmatpush1.msra.mxu0 0.0
    %256 = vmatprep.subr.mxu0 0.0
    %257 = vmatpush1.msra.mxu0 0.0
    %258 = vmatprep.subr.mxu0 0.0
    %259 = vmatpush1.msra.mxu0 0.0
    %260 = vmatprep.subr.mxu0 0.0
    %261 = vmatpush1.msra.mxu0 0.0
    %262 = vmatprep.subr.mxu0 0.0
    %263 = vmatpush1.msra.mxu0 0.0
    %264 = vmatprep.subr.mxu0 0.0
    %265 = vmatpush1.msra.mxu0 0.0
    %266 = vmatprep.subr.mxu0 0.0
    %267 = vmatpush1.msra.mxu0 0.0
    %268 = vmatprep.subr.mxu0 0.0
    %269 = vmatpush1.msra.mxu0 0.0
    %270 = vmatprep.subr.mxu0 0.0
    %271 = vmatpush1.msra.mxu0 0.0
    %272 = vmatprep.subr.mxu0 0.0
    %273 = vmatpush1.msra.mxu0 0.0
    %274 = vmatprep.subr.mxu0 0.0
    %275 = vmatpush1.msra.mxu0 0.0
    %276 = vmatprep.subr.mxu0 0.0
    %277 = vmatpush1.msra.mxu0 0.0
    %278 = vmatprep.subr.mxu0 0.0
    %279 = vmatpush1.msra.mxu0 0.0
    %280 = vmatprep.subr.mxu0 0.0
    %281 = vmatpush1.msra.mxu0 0.0
    %282 = vmatprep.subr.mxu0 0.0
    %283 = vmatpush1.msra.mxu0 0.0
    %284 = vmatprep.subr.mxu0 0.0
    %285 = vmatpush1.msra.mxu0 0.0
    %286 = vmatprep.subr.mxu0 0.0
    %287 = vmatpush1.msra.mxu0 0.0
    %288 = vmatprep.subr.mxu0 0.0
    %289 = vmatpush1.msra.mxu0 0.0
    %290 = vmatprep.subr.mxu0 0.0
    %291 = vmatpush1.msra.mxu0 0.0
    %292 = vmatprep.subr.mxu0 0.0
    %293 = vmatpush1.msra.mxu0 0.0
    %294 = vmatprep.subr.mxu0 0.0
    %295 = vmatpush1.msra.mxu0 0.0
    %296 = vmatprep.subr.mxu0 0.0
    %297 = vmatpush1.msra.mxu0 0.0
    %298 = vmatprep.subr.mxu0 0.0
    %299 = vmatpush1.msra.mxu0 0.0
    %300 = vmatprep.subr.mxu0 0.0
    %301 = vmatpush1.msra.mxu0 0.0
    %302 = vmatprep.subr.mxu0 0.0
    %303 = vmatpush1.msra.mxu0 0.0
    %304 = vmatprep.mubr.f32.mxu0 0.0
    %305 = vmatmul.mubr.f32.gmra.mrb[0].mxu0 %v235
    %v306 = vpop.f32.mrb[0].mxu0
    %v307 = vadd.f32 %v232, %v306
    %v308 = vpop.f32.mrb[0].mxu0
    %309 = vmatprep.mubr.f32.mxu0 0.0
    %310 = vmatmul.mubr.f32.gmra.mrb[0].mxu0 %v238
    %v311 = vpop.f32.mrb[0].mxu0
    %v312 = vadd.f32 %v232, %v311
    %v313 = vpop.f32.mrb[0].mxu0
    %314 = vdwg.mxu0
    %316 = vrot.lane.b32.xlu0 %v307, 96
    %v317 = vpop.permute.xlu0 %316
    %319 = vxpose.xlu0.b32.start [1/16] %v317, 128
    %320 = vxpose.xlu0.b32.cont [2/16] 0.0, 128
    %321 = vxpose.xlu0.b32.cont [3/16] 0.0, 128
    %322 = vxpose.xlu0.b32.cont [4/16] 0.0, 128
    %323 = vxpose.xlu0.b32.cont [5/16] 0.0, 128
    %324 = vxpose.xlu0.b32.cont [6/16] 0.0, 128
    %325 = vxpose.xlu0.b32.cont [7/16] 0.0, 128
    %326 = vxpose.xlu0.b32.cont [8/16] 0.0, 128
    %327 = vxpose.xlu0.b32.cont [9/16] 0.0, 128
    %328 = vxpose.xlu0.b32.cont [10/16] 0.0, 128
    %329 = vxpose.xlu0.b32.cont [11/16] 0.0, 128
    %330 = vxpose.xlu0.b32.cont [12/16] 0.0, 128
    %331 = vxpose.xlu0.b32.cont [13/16] 0.0, 128
    %332 = vxpose.xlu0.b32.cont [14/16] 0.0, 128
    %333 = vxpose.xlu0.b32.cont [15/16] 0.0, 128
    %334 = vxpose.xlu0.b32.end [16/16] 0.0, 128
    %v335 = vpop.trf.xlu0
    %v336 = vpop.trf.xlu0
    %v337 = vpop.trf.xlu0
    %v338 = vpop.trf.xlu0
    %v339 = vpop.trf.xlu0
    %v340 = vpop.trf.xlu0
    %v341 = vpop.trf.xlu0
    %v342 = vpop.trf.xlu0
    %v343 = vpop.trf.xlu0
    %v344 = vpop.trf.xlu0
    %v345 = vpop.trf.xlu0
    %v346 = vpop.trf.xlu0
    %v347 = vpop.trf.xlu0
    %v348 = vpop.trf.xlu0
    %v349 = vpop.trf.xlu0
    %v350 = vpop.trf.xlu0
    %355 = vrot.lane.b32.xlu0 %v335, 8
    %v356 = vpop.permute.xlu0 %355
    %357 = vrot.lane.b32.xlu0 %v336, 8
    %v358 = vpop.permute.xlu0 %357
    %359 = vrot.lane.b32.xlu0 %v337, 8
    %v360 = vpop.permute.xlu0 %359
    %361 = vrot.lane.b32.xlu0 %v338, 8
    %v362 = vpop.permute.xlu0 %361
    %367 = vrot.lane.b32.xlu0 %v335, 16
    %v368 = vpop.permute.xlu0 %367
    %369 = vrot.lane.b32.xlu0 %v336, 16
    %v370 = vpop.permute.xlu0 %369
    %371 = vrot.lane.b32.xlu0 %v337, 16
    %v372 = vpop.permute.xlu0 %371
    %373 = vrot.lane.b32.xlu0 %v338, 16
    %v374 = vpop.permute.xlu0 %373
    %379 = vrot.lane.b32.xlu0 %v335, 24
    %v380 = vpop.permute.xlu0 %379
    %381 = vrot.lane.b32.xlu0 %v336, 24
    %v382 = vpop.permute.xlu0 %381
    %383 = vrot.lane.b32.xlu0 %v337, 24
    %v384 = vpop.permute.xlu0 %383
    %385 = vrot.lane.b32.xlu0 %v338, 24
    %v386 = vpop.permute.xlu0 %385
    %vm391 = vcmask 64512
    %v392 = vsel %vm391, %v335, %v356
    %v393 = vsel %vm391, %v336, %v358
    %v394 = vsel %vm391, %v337, %v360
    %v395 = vsel %vm391, %v338, %v362
    %vm396 = vcmask 130048
    %v397 = vsel %vm396, %v392, %v368
    %v398 = vsel %vm396, %v393, %v370
    %v399 = vsel %vm396, %v394, %v372
    %v400 = vsel %vm396, %v395, %v374
    %vm401 = vcmask 195584
    %v402 = vsel %vm401, %v397, %v380
    %v403 = vsel %vm401, %v398, %v382
    %v404 = vsel %vm401, %v399, %v384
    %v405 = vsel %vm401, %v400, %v386
    %v406 = vmul.f32 %v402, %v220
    %v407 = vmul.f32 %v403, %v221
    %v408 = vmul.f32 %v404, %v222
    %v409 = vmul.f32 %v405, %v223
    %414 = vrot.lane.b32.xlu0 %v220, 64
    %v415 = vpop.permute.xlu0 %414
    %416 = vrot.lane.b32.xlu0 %v221, 64
    %v417 = vpop.permute.xlu0 %416
    %418 = vrot.lane.b32.xlu0 %v222, 64
    %v419 = vpop.permute.xlu0 %418
    %420 = vrot.lane.b32.xlu0 %v223, 64
    %v421 = vpop.permute.xlu0 %420
    %v426 = vmul.f32 %v307, %v415
    %v427 = vmul.f32 %v307, %v417
    %v428 = vmul.f32 %v307, %v419
    %v429 = vmul.f32 %v307, %v421
    %v430 = vsel %vm233, %v307, 0
    %432 = vmatprep.subr.mxu0 0.0
    %433 = vmatpush1.msra.mxu0 %v406
    %434 = vmatprep.subr.mxu0 0.0
    %435 = vmatpush1.msra.mxu0 %v407
    %436 = vmatprep.subr.mxu0 0.0
    %437 = vmatpush1.msra.mxu0 %v408
    %438 = vmatprep.subr.mxu0 0.0
    %439 = vmatpush1.msra.mxu0 %v409
    %440 = vmatprep.subr.mxu0 0.0
    %441 = vmatpush1.msra.mxu0 0.0
    %442 = vmatprep.subr.mxu0 0.0
    %443 = vmatpush1.msra.mxu0 0.0
    %444 = vmatprep.subr.mxu0 0.0
    %445 = vmatpush1.msra.mxu0 0.0
    %446 = vmatprep.subr.mxu0 0.0
    %447 = vmatpush1.msra.mxu0 0.0
    %448 = vmatprep.subr.mxu0 0.0
    %449 = vmatpush1.msra.mxu0 0.0
    %450 = vmatprep.subr.mxu0 0.0
    %451 = vmatpush1.msra.mxu0 0.0
    %452 = vmatprep.subr.mxu0 0.0
    %453 = vmatpush1.msra.mxu0 0.0
    %454 = vmatprep.subr.mxu0 0.0
    %455 = vmatpush1.msra.mxu0 0.0
    %456 = vmatprep.subr.mxu0 0.0
    %457 = vmatpush1.msra.mxu0 0.0
    %458 = vmatprep.subr.mxu0 0.0
    %459 = vmatpush1.msra.mxu0 0.0
    %460 = vmatprep.subr.mxu0 0.0
    %461 = vmatpush1.msra.mxu0 0.0
    %462 = vmatprep.subr.mxu0 0.0
    %463 = vmatpush1.msra.mxu0 0.0
    %464 = vmatprep.subr.mxu0 0.0
    %465 = vmatpush1.msra.mxu0 0.0
    %466 = vmatprep.subr.mxu0 0.0
    %467 = vmatpush1.msra.mxu0 0.0
    %468 = vmatprep.subr.mxu0 0.0
    %469 = vmatpush1.msra.mxu0 0.0
    %470 = vmatprep.subr.mxu0 0.0
    %471 = vmatpush1.msra.mxu0 0.0
    %472 = vmatprep.subr.mxu0 0.0
    %473 = vmatpush1.msra.mxu0 0.0
    %474 = vmatprep.subr.mxu0 0.0
    %475 = vmatpush1.msra.mxu0 0.0
    %476 = vmatprep.subr.mxu0 0.0
    %477 = vmatpush1.msra.mxu0 0.0
    %478 = vmatprep.subr.mxu0 0.0
    %479 = vmatpush1.msra.mxu0 0.0
    %480 = vmatprep.subr.mxu0 0.0
    %481 = vmatpush1.msra.mxu0 0.0
    %482 = vmatprep.subr.mxu0 0.0
    %483 = vmatpush1.msra.mxu0 0.0
    %484 = vmatprep.subr.mxu0 0.0
    %485 = vmatpush1.msra.mxu0 0.0
    %486 = vmatprep.subr.mxu0 0.0
    %487 = vmatpush1.msra.mxu0 0.0
    %488 = vmatprep.subr.mxu0 0.0
    %489 = vmatpush1.msra.mxu0 0.0
    %490 = vmatprep.subr.mxu0 0.0
    %491 = vmatpush1.msra.mxu0 0.0
    %492 = vmatprep.subr.mxu0 0.0
    %493 = vmatpush1.msra.mxu0 0.0
    %494 = vmatprep.subr.mxu0 0.0
    %495 = vmatpush1.msra.mxu0 0.0
    %496 = vmatprep.mubr.f32.mxu0 0.0
    %497 = vmatmul.mubr.f32.gmra.mrb[0].mxu0 %v430
    %v498 = vpop.f32.mrb[0].mxu0
    %v499 = vadd.f32 0.0, %v498
    %v500 = vpop.f32.mrb[0].mxu0
    %501 = vdwg.mxu0
    %v502 = vmul.f32 %v499, 0.35355338
    %504 = vrot.lane.b32.xlu0 %v61, 8
    %v505 = vpop.permute.xlu0 %504
    %507 = vrot.lane.b32.xlu0 %v61, 16
    %v508 = vpop.permute.xlu0 %507
    %510 = vrot.lane.b32.xlu0 %v61, 24
    %v511 = vpop.permute.xlu0 %510
    %v513 = vsel %vm391, %v61, %v505
    %v514 = vsel %vm396, %v513, %v508
    %v515 = vsel %vm401, %v514, %v511
    %v516 = vlaneseq
    %v517 = vshrl.u32 %v516, 7
    %v518 = vsub.s32 0, %v517
    %v519 = vrot.slane %v515, %v518
    %v520 = vadd.f32 %v502, %v519
    %v521 = vsel %vm233, %v520, -inf
    %522 = vmax.xlane.f32.xlu0 %v521
    %v523 = vpop.xlane.xlu0 %522
    %v524 = vsub.f32 %v520, %v523
    %v525 = vmul.f32 %v524, 1.442695
    %v526 = vpow.pop %v525
    %v528 = vsel %vm233, %v526, 0
    %530 = vmatprep.subr.mxu0 0.0
    %531 = vmatpush1.msra.mxu0 %v220
    %532 = vmatprep.subr.mxu0 0.0
    %533 = vmatpush1.msra.mxu0 %v221
    %534 = vmatprep.subr.mxu0 0.0
    %535 = vmatpush1.msra.mxu0 %v222
    %536 = vmatprep.subr.mxu0 0.0
    %537 = vmatpush1.msra.mxu0 %v223
    %538 = vmatprep.subr.mxu0 0.0
    %539 = vmatpush1.msra.mxu0 0.0
    %540 = vmatprep.subr.mxu0 0.0
    %541 = vmatpush1.msra.mxu0 0.0
    %542 = vmatprep.subr.mxu0 0.0
    %543 = vmatpush1.msra.mxu0 0.0
    %544 = vmatprep.subr.mxu0 0.0
    %545 = vmatpush1.msra.mxu0 0.0
    %546 = vmatprep.subr.mxu0 0.0
    %547 = vmatpush1.msra.mxu0 0.0
    %548 = vmatprep.subr.mxu0 0.0
    %549 = vmatpush1.msra.mxu0 0.0
    %550 = vmatprep.subr.mxu0 0.0
    %551 = vmatpush1.msra.mxu0 0.0
    %552 = vmatprep.subr.mxu0 0.0
    %553 = vmatpush1.msra.mxu0 0.0
    %554 = vmatprep.subr.mxu0 0.0
    %555 = vmatpush1.msra.mxu0 0.0
    %556 = vmatprep.subr.mxu0 0.0
    %557 = vmatpush1.msra.mxu0 0.0
    %558 = vmatprep.subr.mxu0 0.0
    %559 = vmatpush1.msra.mxu0 0.0
    %560 = vmatprep.subr.mxu0 0.0
    %561 = vmatpush1.msra.mxu0 0.0
    %562 = vmatprep.subr.mxu0 0.0
    %563 = vmatpush1.msra.mxu0 0.0
    %564 = vmatprep.subr.mxu0 0.0
    %565 = vmatpush1.msra.mxu0 0.0
    %566 = vmatprep.subr.mxu0 0.0
    %567 = vmatpush1.msra.mxu0 0.0
    %568 = vmatprep.subr.mxu0 0.0
    %569 = vmatpush1.msra.mxu0 0.0
    %570 = vmatprep.subr.mxu0 0.0
    %571 = vmatpush1.msra.mxu0 0.0
    %572 = vmatprep.subr.mxu0 0.0
    %573 = vmatpush1.msra.mxu0 0.0
    %574 = vmatprep.subr.mxu0 0.0
    %575 = vmatpush1.msra.mxu0 0.0
    %576 = vmatprep.subr.mxu0 0.0
    %577 = vmatpush1.msra.mxu0 0.0
    %578 = vmatprep.subr.mxu0 0.0
    %579 = vmatpush1.msra.mxu0 0.0
    %580 = vmatprep.subr.mxu0 0.0
    %581 = vmatpush1.msra.mxu0 0.0
    %582 = vmatprep.subr.mxu0 0.0
    %583 = vmatpush1.msra.mxu0 0.0
    %584 = vmatprep.subr.mxu0 0.0
    %585 = vmatpush1.msra.mxu0 0.0
    %586 = vmatprep.subr.mxu0 0.0
    %587 = vmatpush1.msra.mxu0 0.0
    %588 = vmatprep.subr.mxu0 0.0
    %589 = vmatpush1.msra.mxu0 0.0
    %590 = vmatprep.subr.mxu0 0.0
    %591 = vmatpush1.msra.mxu0 0.0
    %592 = vmatprep.subr.mxu0 0.0
    %593 = vmatpush1.msra.mxu0 0.0
    %594 = vmatprep.mubr.f32.mxu0 0.0
    %595 = vmatmul.mubr.f32.gmra.mrb[0].mxu0 %v528
    %v596 = vpop.f32.mrb[0].mxu0
    %v597 = vadd.f32 0.0, %v596
    %v598 = vpop.f32.mrb[0].mxu0
    %599 = vdwg.mxu0
    %v600 = vmax.f32 %v597, 1e-30
    %v601 = vrcp.pop %v600
    %v602 = vmul.f32 %v526, %v601
    %607 = vrot.lane.b32.xlu0 %v426, 64
    %v608 = vpop.permute.xlu0 %607
    %609 = vrot.lane.b32.xlu0 %v427, 64
    %v610 = vpop.permute.xlu0 %609
    %611 = vrot.lane.b32.xlu0 %v428, 64
    %v612 = vpop.permute.xlu0 %611
    %613 = vrot.lane.b32.xlu0 %v429, 64
    %v614 = vpop.permute.xlu0 %613
    %v620 = vsel %vm233, %v602, 0
    %622 = vmatprep.subr.mxu0 0.0
    %623 = vmatpush1.msra.mxu0 %v608
    %624 = vmatprep.subr.mxu0 0.0
    %625 = vmatpush1.msra.mxu0 %v610
    %626 = vmatprep.subr.mxu0 0.0
    %627 = vmatpush1.msra.mxu0 %v612
    %628 = vmatprep.subr.mxu0 0.0
    %629 = vmatpush1.msra.mxu0 %v614
    %630 = vmatprep.subr.mxu0 0.0
    %631 = vmatpush1.msra.mxu0 0.0
    %632 = vmatprep.subr.mxu0 0.0
    %633 = vmatpush1.msra.mxu0 0.0
    %634 = vmatprep.subr.mxu0 0.0
    %635 = vmatpush1.msra.mxu0 0.0
    %636 = vmatprep.subr.mxu0 0.0
    %637 = vmatpush1.msra.mxu0 0.0
    %638 = vmatprep.subr.mxu0 0.0
    %639 = vmatpush1.msra.mxu0 0.0
    %640 = vmatprep.subr.mxu0 0.0
    %641 = vmatpush1.msra.mxu0 0.0
    %642 = vmatprep.subr.mxu0 0.0
    %643 = vmatpush1.msra.mxu0 0.0
    %644 = vmatprep.subr.mxu0 0.0
    %645 = vmatpush1.msra.mxu0 0.0
    %646 = vmatprep.subr.mxu0 0.0
    %647 = vmatpush1.msra.mxu0 0.0
    %648 = vmatprep.subr.mxu0 0.0
    %649 = vmatpush1.msra.mxu0 0.0
    %650 = vmatprep.subr.mxu0 0.0
    %651 = vmatpush1.msra.mxu0 0.0
    %652 = vmatprep.subr.mxu0 0.0
    %653 = vmatpush1.msra.mxu0 0.0
    %654 = vmatprep.subr.mxu0 0.0
    %655 = vmatpush1.msra.mxu0 0.0
    %656 = vmatprep.subr.mxu0 0.0
    %657 = vmatpush1.msra.mxu0 0.0
    %658 = vmatprep.subr.mxu0 0.0
    %659 = vmatpush1.msra.mxu0 0.0
    %660 = vmatprep.subr.mxu0 0.0
    %661 = vmatpush1.msra.mxu0 0.0
    %662 = vmatprep.subr.mxu0 0.0
    %663 = vmatpush1.msra.mxu0 0.0
    %664 = vmatprep.subr.mxu0 0.0
    %665 = vmatpush1.msra.mxu0 0.0
    %666 = vmatprep.subr.mxu0 0.0
    %667 = vmatpush1.msra.mxu0 0.0
    %668 = vmatprep.subr.mxu0 0.0
    %669 = vmatpush1.msra.mxu0 0.0
    %670 = vmatprep.subr.mxu0 0.0
    %671 = vmatpush1.msra.mxu0 0.0
    %672 = vmatprep.subr.mxu0 0.0
    %673 = vmatpush1.msra.mxu0 0.0
    %674 = vmatprep.subr.mxu0 0.0
    %675 = vmatpush1.msra.mxu0 0.0
    %676 = vmatprep.subr.mxu0 0.0
    %677 = vmatpush1.msra.mxu0 0.0
    %678 = vmatprep.subr.mxu0 0.0
    %679 = vmatpush1.msra.mxu0 0.0
    %680 = vmatprep.subr.mxu0 0.0
    %681 = vmatpush1.msra.mxu0 0.0
    %682 = vmatprep.subr.mxu0 0.0
    %683 = vmatpush1.msra.mxu0 0.0
    %684 = vmatprep.subr.mxu0 0.0
    %685 = vmatpush1.msra.mxu0 0.0
    %686 = vmatprep.mubr.f32.mxu0 0.0
    %687 = vmatmul.mubr.f32.gmra.mrb[0].mxu0 %v620
    %v688 = vpop.f32.mrb[0].mxu0
    %v689 = vadd.f32 0.0, %v688
    %v690 = vpop.f32.mrb[0].mxu0
    %691 = vdwg.mxu0
    %693 = vrot.lane.b32.xlu0 %v312, 96
    %v694 = vpop.permute.xlu0 %693
    %696 = vxpose.xlu0.b32.start [1/16] %v694, 128
    %697 = vxpose.xlu0.b32.cont [2/16] 0.0, 128
    %698 = vxpose.xlu0.b32.cont [3/16] 0.0, 128
    %699 = vxpose.xlu0.b32.cont [4/16] 0.0, 128
    %700 = vxpose.xlu0.b32.cont [5/16] 0.0, 128
    %701 = vxpose.xlu0.b32.cont [6/16] 0.0, 128
    %702 = vxpose.xlu0.b32.cont [7/16] 0.0, 128
    %703 = vxpose.xlu0.b32.cont [8/16] 0.0, 128
    %704 = vxpose.xlu0.b32.cont [9/16] 0.0, 128
    %705 = vxpose.xlu0.b32.cont [10/16] 0.0, 128
    %706 = vxpose.xlu0.b32.cont [11/16] 0.0, 128
    %707 = vxpose.xlu0.b32.cont [12/16] 0.0, 128
    %708 = vxpose.xlu0.b32.cont [13/16] 0.0, 128
    %709 = vxpose.xlu0.b32.cont [14/16] 0.0, 128
    %710 = vxpose.xlu0.b32.cont [15/16] 0.0, 128
    %711 = vxpose.xlu0.b32.end [16/16] 0.0, 128
    %v712 = vpop.trf.xlu0
    %v713 = vpop.trf.xlu0
    %v714 = vpop.trf.xlu0
    %v715 = vpop.trf.xlu0
    %v716 = vpop.trf.xlu0
    %v717 = vpop.trf.xlu0
    %v718 = vpop.trf.xlu0
    %v719 = vpop.trf.xlu0
    %v720 = vpop.trf.xlu0
    %v721 = vpop.trf.xlu0
    %v722 = vpop.trf.xlu0
    %v723 = vpop.trf.xlu0
    %v724 = vpop.trf.xlu0
    %v725 = vpop.trf.xlu0
    %v726 = vpop.trf.xlu0
    %v727 = vpop.trf.xlu0
    %732 = vrot.lane.b32.xlu0 %v712, 8
    %v733 = vpop.permute.xlu0 %732
    %734 = vrot.lane.b32.xlu0 %v713, 8
    %v735 = vpop.permute.xlu0 %734
    %736 = vrot.lane.b32.xlu0 %v714, 8
    %v737 = vpop.permute.xlu0 %736
    %738 = vrot.lane.b32.xlu0 %v715, 8
    %v739 = vpop.permute.xlu0 %738
    %744 = vrot.lane.b32.xlu0 %v712, 16
    %v745 = vpop.permute.xlu0 %744
    %746 = vrot.lane.b32.xlu0 %v713, 16
    %v747 = vpop.permute.xlu0 %746
    %748 = vrot.lane.b32.xlu0 %v714, 16
    %v749 = vpop.permute.xlu0 %748
    %750 = vrot.lane.b32.xlu0 %v715, 16
    %v751 = vpop.permute.xlu0 %750
    %756 = vrot.lane.b32.xlu0 %v712, 24
    %v757 = vpop.permute.xlu0 %756
    %758 = vrot.lane.b32.xlu0 %v713, 24
    %v759 = vpop.permute.xlu0 %758
    %760 = vrot.lane.b32.xlu0 %v714, 24
    %v761 = vpop.permute.xlu0 %760
    %762 = vrot.lane.b32.xlu0 %v715, 24
    %v763 = vpop.permute.xlu0 %762
    %v768 = vsel %vm391, %v712, %v733
    %v769 = vsel %vm391, %v713, %v735
    %v770 = vsel %vm391, %v714, %v737
    %v771 = vsel %vm391, %v715, %v739
    %v772 = vsel %vm396, %v768, %v745
    %v773 = vsel %vm396, %v769, %v747
    %v774 = vsel %vm396, %v770, %v749
    %v775 = vsel %vm396, %v771, %v751
    %v776 = vsel %vm401, %v772, %v757
    %v777 = vsel %vm401, %v773, %v759
    %v778 = vsel %vm401, %v774, %v761
    %v779 = vsel %vm401, %v775, %v763
    %v780 = vmul.f32 %v776, %v220
    %v781 = vmul.f32 %v777, %v221
    %v782 = vmul.f32 %v778, %v222
    %v783 = vmul.f32 %v779, %v223
    %v784 = vmul.f32 %v312, %v415
    %v785 = vmul.f32 %v312, %v417
    %v786 = vmul.f32 %v312, %v419
    %v787 = vmul.f32 %v312, %v421
    %v788 = vsel %vm233, %v312, 0
    %790 = vmatprep.subr.mxu0 0.0
    %791 = vmatpush1.msra.mxu0 %v780
    %792 = vmatprep.subr.mxu0 0.0
    %793 = vmatpush1.msra.mxu0 %v781
    %794 = vmatprep.subr.mxu0 0.0
    %795 = vmatpush1.msra.mxu0 %v782
    %796 = vmatprep.subr.mxu0 0.0
    %797 = vmatpush1.msra.mxu0 %v783
    %798 = vmatprep.subr.mxu0 0.0
    %799 = vmatpush1.msra.mxu0 0.0
    %800 = vmatprep.subr.mxu0 0.0
    %801 = vmatpush1.msra.mxu0 0.0
    %802 = vmatprep.subr.mxu0 0.0
    %803 = vmatpush1.msra.mxu0 0.0
    %804 = vmatprep.subr.mxu0 0.0
    %805 = vmatpush1.msra.mxu0 0.0
    %806 = vmatprep.subr.mxu0 0.0
    %807 = vmatpush1.msra.mxu0 0.0
    %808 = vmatprep.subr.mxu0 0.0
    %809 = vmatpush1.msra.mxu0 0.0
    %810 = vmatprep.subr.mxu0 0.0
    %811 = vmatpush1.msra.mxu0 0.0
    %812 = vmatprep.subr.mxu0 0.0
    %813 = vmatpush1.msra.mxu0 0.0
    %814 = vmatprep.subr.mxu0 0.0
    %815 = vmatpush1.msra.mxu0 0.0
    %816 = vmatprep.subr.mxu0 0.0
    %817 = vmatpush1.msra.mxu0 0.0
    %818 = vmatprep.subr.mxu0 0.0
    %819 = vmatpush1.msra.mxu0 0.0
    %820 = vmatprep.subr.mxu0 0.0
    %821 = vmatpush1.msra.mxu0 0.0
    %822 = vmatprep.subr.mxu0 0.0
    %823 = vmatpush1.msra.mxu0 0.0
    %824 = vmatprep.subr.mxu0 0.0
    %825 = vmatpush1.msra.mxu0 0.0
    %826 = vmatprep.subr.mxu0 0.0
    %827 = vmatpush1.msra.mxu0 0.0
    %828 = vmatprep.subr.mxu0 0.0
    %829 = vmatpush1.msra.mxu0 0.0
    %830 = vmatprep.subr.mxu0 0.0
    %831 = vmatpush1.msra.mxu0 0.0
    %832 = vmatprep.subr.mxu0 0.0
    %833 = vmatpush1.msra.mxu0 0.0
    %834 = vmatprep.subr.mxu0 0.0
    %835 = vmatpush1.msra.mxu0 0.0
    %836 = vmatprep.subr.mxu0 0.0
    %837 = vmatpush1.msra.mxu0 0.0
    %838 = vmatprep.subr.mxu0 0.0
    %839 = vmatpush1.msra.mxu0 0.0
    %840 = vmatprep.subr.mxu0 0.0
    %841 = vmatpush1.msra.mxu0 0.0
    %842 = vmatprep.subr.mxu0 0.0
    %843 = vmatpush1.msra.mxu0 0.0
    %844 = vmatprep.subr.mxu0 0.0
    %845 = vmatpush1.msra.mxu0 0.0
    %846 = vmatprep.subr.mxu0 0.0
    %847 = vmatpush1.msra.mxu0 0.0
    %848 = vmatprep.subr.mxu0 0.0
    %849 = vmatpush1.msra.mxu0 0.0
    %850 = vmatprep.subr.mxu0 0.0
    %851 = vmatpush1.msra.mxu0 0.0
    %852 = vmatprep.subr.mxu0 0.0
    %853 = vmatpush1.msra.mxu0 0.0
    %854 = vmatprep.mubr.f32.mxu0 0.0
    %855 = vmatmul.mubr.f32.gmra.mrb[0].mxu0 %v788
    %v856 = vpop.f32.mrb[0].mxu0
    %v857 = vadd.f32 0.0, %v856
    %v858 = vpop.f32.mrb[0].mxu0
    %859 = vdwg.mxu0
    %v860 = vmul.f32 %v857, 0.35355338
    %v861 = vlaneseq
    %v862 = vshrl.u32 %v861, 7
    %v863 = vsub.s32 1, %v862
    %v864 = vrot.slane %v515, %v863
    %v865 = vadd.f32 %v860, %v864
    %v866 = vsel %vm233, %v865, -inf
    %867 = vmax.xlane.f32.xlu0 %v866
    %v868 = vpop.xlane.xlu0 %867
    %v869 = vsub.f32 %v865, %v868
    %v870 = vmul.f32 %v869, 1.442695
    %v871 = vpow.pop %v870
    %v873 = vsel %vm233, %v871, 0
    %875 = vmatprep.subr.mxu0 0.0
    %876 = vmatpush1.msra.mxu0 %v220
    %877 = vmatprep.subr.mxu0 0.0
    %878 = vmatpush1.msra.mxu0 %v221
    %879 = vmatprep.subr.mxu0 0.0
    %880 = vmatpush1.msra.mxu0 %v222
    %881 = vmatprep.subr.mxu0 0.0
    %882 = vmatpush1.msra.mxu0 %v223
    %883 = vmatprep.subr.mxu0 0.0
    %884 = vmatpush1.msra.mxu0 0.0
    %885 = vmatprep.subr.mxu0 0.0
    %886 = vmatpush1.msra.mxu0 0.0
    %887 = vmatprep.subr.mxu0 0.0
    %888 = vmatpush1.msra.mxu0 0.0
    %889 = vmatprep.subr.mxu0 0.0
    %890 = vmatpush1.msra.mxu0 0.0
    %891 = vmatprep.subr.mxu0 0.0
    %892 = vmatpush1.msra.mxu0 0.0
    %893 = vmatprep.subr.mxu0 0.0
    %894 = vmatpush1.msra.mxu0 0.0
    %895 = vmatprep.subr.mxu0 0.0
    %896 = vmatpush1.msra.mxu0 0.0
    %897 = vmatprep.subr.mxu0 0.0
    %898 = vmatpush1.msra.mxu0 0.0
    %899 = vmatprep.subr.mxu0 0.0
    %900 = vmatpush1.msra.mxu0 0.0
    %901 = vmatprep.subr.mxu0 0.0
    %902 = vmatpush1.msra.mxu0 0.0
    %903 = vmatprep.subr.mxu0 0.0
    %904 = vmatpush1.msra.mxu0 0.0
    %905 = vmatprep.subr.mxu0 0.0
    %906 = vmatpush1.msra.mxu0 0.0
    %907 = vmatprep.subr.mxu0 0.0
    %908 = vmatpush1.msra.mxu0 0.0
    %909 = vmatprep.subr.mxu0 0.0
    %910 = vmatpush1.msra.mxu0 0.0
    %911 = vmatprep.subr.mxu0 0.0
    %912 = vmatpush1.msra.mxu0 0.0
    %913 = vmatprep.subr.mxu0 0.0
    %914 = vmatpush1.msra.mxu0 0.0
    %915 = vmatprep.subr.mxu0 0.0
    %916 = vmatpush1.msra.mxu0 0.0
    %917 = vmatprep.subr.mxu0 0.0
    %918 = vmatpush1.msra.mxu0 0.0
    %919 = vmatprep.subr.mxu0 0.0
    %920 = vmatpush1.msra.mxu0 0.0
    %921 = vmatprep.subr.mxu0 0.0
    %922 = vmatpush1.msra.mxu0 0.0
    %923 = vmatprep.subr.mxu0 0.0
    %924 = vmatpush1.msra.mxu0 0.0
    %925 = vmatprep.subr.mxu0 0.0
    %926 = vmatpush1.msra.mxu0 0.0
    %927 = vmatprep.subr.mxu0 0.0
    %928 = vmatpush1.msra.mxu0 0.0
    %929 = vmatprep.subr.mxu0 0.0
    %930 = vmatpush1.msra.mxu0 0.0
    %931 = vmatprep.subr.mxu0 0.0
    %932 = vmatpush1.msra.mxu0 0.0
    %933 = vmatprep.subr.mxu0 0.0
    %934 = vmatpush1.msra.mxu0 0.0
    %935 = vmatprep.subr.mxu0 0.0
    %936 = vmatpush1.msra.mxu0 0.0
    %937 = vmatprep.subr.mxu0 0.0
    %938 = vmatpush1.msra.mxu0 0.0
    %939 = vmatprep.mubr.f32.mxu0 0.0
    %940 = vmatmul.mubr.f32.gmra.mrb[0].mxu0 %v873
    %v941 = vpop.f32.mrb[0].mxu0
    %v942 = vadd.f32 0.0, %v941
    %v943 = vpop.f32.mrb[0].mxu0
    %944 = vdwg.mxu0
    %v945 = vmax.f32 %v942, 1e-30
    %v946 = vrcp.pop %v945
    %v947 = vmul.f32 %v871, %v946
    %952 = vrot.lane.b32.xlu0 %v784, 64
    %v953 = vpop.permute.xlu0 %952
    %954 = vrot.lane.b32.xlu0 %v785, 64
    %v955 = vpop.permute.xlu0 %954
    %956 = vrot.lane.b32.xlu0 %v786, 64
    %v957 = vpop.permute.xlu0 %956
    %958 = vrot.lane.b32.xlu0 %v787, 64
    %v959 = vpop.permute.xlu0 %958
    %v965 = vsel %vm233, %v947, 0
    %967 = vmatprep.subr.mxu0 0.0
    %968 = vmatpush1.msra.mxu0 %v953
    %969 = vmatprep.subr.mxu0 0.0
    %970 = vmatpush1.msra.mxu0 %v955
    %971 = vmatprep.subr.mxu0 0.0
    %972 = vmatpush1.msra.mxu0 %v957
    %973 = vmatprep.subr.mxu0 0.0
    %974 = vmatpush1.msra.mxu0 %v959
    %975 = vmatprep.subr.mxu0 0.0
    %976 = vmatpush1.msra.mxu0 0.0
    %977 = vmatprep.subr.mxu0 0.0
    %978 = vmatpush1.msra.mxu0 0.0
    %979 = vmatprep.subr.mxu0 0.0
    %980 = vmatpush1.msra.mxu0 0.0
    %981 = vmatprep.subr.mxu0 0.0
    %982 = vmatpush1.msra.mxu0 0.0
    %983 = vmatprep.subr.mxu0 0.0
    %984 = vmatpush1.msra.mxu0 0.0
    %985 = vmatprep.subr.mxu0 0.0
    %986 = vmatpush1.msra.mxu0 0.0
    %987 = vmatprep.subr.mxu0 0.0
    %988 = vmatpush1.msra.mxu0 0.0
    %989 = vmatprep.subr.mxu0 0.0
    %990 = vmatpush1.msra.mxu0 0.0
    %991 = vmatprep.subr.mxu0 0.0
    %992 = vmatpush1.msra.mxu0 0.0
    %993 = vmatprep.subr.mxu0 0.0
    %994 = vmatpush1.msra.mxu0 0.0
    %995 = vmatprep.subr.mxu0 0.0
    %996 = vmatpush1.msra.mxu0 0.0
    %997 = vmatprep.subr.mxu0 0.0
    %998 = vmatpush1.msra.mxu0 0.0
    %999 = vmatprep.subr.mxu0 0.0
    %1000 = vmatpush1.msra.mxu0 0.0
    %1001 = vmatprep.subr.mxu0 0.0
    %1002 = vmatpush1.msra.mxu0 0.0
    %1003 = vmatprep.subr.mxu0 0.0
    %1004 = vmatpush1.msra.mxu0 0.0
    %1005 = vmatprep.subr.mxu0 0.0
    %1006 = vmatpush1.msra.mxu0 0.0
    %1007 = vmatprep.subr.mxu0 0.0
    %1008 = vmatpush1.msra.mxu0 0.0
    %1009 = vmatprep.subr.mxu0 0.0
    %1010 = vmatpush1.msra.mxu0 0.0
    %1011 = vmatprep.subr.mxu0 0.0
    %1012 = vmatpush1.msra.mxu0 0.0
    %1013 = vmatprep.subr.mxu0 0.0
    %1014 = vmatpush1.msra.mxu0 0.0
    %1015 = vmatprep.subr.mxu0 0.0
    %1016 = vmatpush1.msra.mxu0 0.0
    %1017 = vmatprep.subr.mxu0 0.0
    %1018 = vmatpush1.msra.mxu0 0.0
    %1019 = vmatprep.subr.mxu0 0.0
    %1020 = vmatpush1.msra.mxu0 0.0
    %1021 = vmatprep.subr.mxu0 0.0
    %1022 = vmatpush1.msra.mxu0 0.0
    %1023 = vmatprep.subr.mxu0 0.0
    %1024 = vmatpush1.msra.mxu0 0.0
    %1025 = vmatprep.subr.mxu0 0.0
    %1026 = vmatpush1.msra.mxu0 0.0
    %1027 = vmatprep.subr.mxu0 0.0
    %1028 = vmatpush1.msra.mxu0 0.0
    %1029 = vmatprep.subr.mxu0 0.0
    %1030 = vmatpush1.msra.mxu0 0.0
    %1031 = vmatprep.mubr.f32.mxu0 0.0
    %1032 = vmatmul.mubr.f32.gmra.mrb[0].mxu0 %v965
    %v1033 = vpop.f32.mrb[0].mxu0
    %v1034 = vadd.f32 0.0, %v1033
    %v1035 = vpop.f32.mrb[0].mxu0
    %1036 = vdwg.mxu0
    %s1037 = scalar_lea.vmem [#allocation2], 32
    %v1038 = vld [vmem:[%s1037] sm:$0xff]
    %v1039 = vld [vmem:[%s1037 + $0x8] sm:$0xff]
    %v1040 = vld [vmem:[%s1037 + $0x10] sm:$0xff]
    %v1041 = vld [vmem:[%s1037 + $0x18] sm:$0xff]
    %v1042 = vld [vmem:[%s6 + $0x1] sm:$0x1]
    %v1043 = vlaneseq
    %v1044 = vshrl.u32 %v1043, 7
    %v1045 = vsub.s32 0, %v1044
    %v1046 = vrot.slane %v1042, %v1045
    %v1048 = vsel %vm233, %v689, 0
    %v1051 = vsel %vm233, %v1034, 0
    %1053 = vmatprep.subr.mxu0 0.0
    %1054 = vmatpush1.msra.mxu0 %v1038
    %1055 = vmatprep.subr.mxu0 0.0
    %1056 = vmatpush1.msra.mxu0 %v1039
    %1057 = vmatprep.subr.mxu0 0.0
    %1058 = vmatpush1.msra.mxu0 %v1040
    %1059 = vmatprep.subr.mxu0 0.0
    %1060 = vmatpush1.msra.mxu0 %v1041
    %1061 = vmatprep.subr.mxu0 0.0
    %1062 = vmatpush1.msra.mxu0 0.0
    %1063 = vmatprep.subr.mxu0 0.0
    %1064 = vmatpush1.msra.mxu0 0.0
    %1065 = vmatprep.subr.mxu0 0.0
    %1066 = vmatpush1.msra.mxu0 0.0
    %1067 = vmatprep.subr.mxu0 0.0
    %1068 = vmatpush1.msra.mxu0 0.0
    %1069 = vmatprep.subr.mxu0 0.0
    %1070 = vmatpush1.msra.mxu0 0.0
    %1071 = vmatprep.subr.mxu0 0.0
    %1072 = vmatpush1.msra.mxu0 0.0
    %1073 = vmatprep.subr.mxu0 0.0
    %1074 = vmatpush1.msra.mxu0 0.0
    %1075 = vmatprep.subr.mxu0 0.0
    %1076 = vmatpush1.msra.mxu0 0.0
    %1077 = vmatprep.subr.mxu0 0.0
    %1078 = vmatpush1.msra.mxu0 0.0
    %1079 = vmatprep.subr.mxu0 0.0
    %1080 = vmatpush1.msra.mxu0 0.0
    %1081 = vmatprep.subr.mxu0 0.0
    %1082 = vmatpush1.msra.mxu0 0.0
    %1083 = vmatprep.subr.mxu0 0.0
    %1084 = vmatpush1.msra.mxu0 0.0
    %1085 = vmatprep.subr.mxu0 0.0
    %1086 = vmatpush1.msra.mxu0 0.0
    %1087 = vmatprep.subr.mxu0 0.0
    %1088 = vmatpush1.msra.mxu0 0.0
    %1089 = vmatprep.subr.mxu0 0.0
    %1090 = vmatpush1.msra.mxu0 0.0
    %1091 = vmatprep.subr.mxu0 0.0
    %1092 = vmatpush1.msra.mxu0 0.0
    %1093 = vmatprep.subr.mxu0 0.0
    %1094 = vmatpush1.msra.mxu0 0.0
    %1095 = vmatprep.subr.mxu0 0.0
    %1096 = vmatpush1.msra.mxu0 0.0
    %1097 = vmatprep.subr.mxu0 0.0
    %1098 = vmatpush1.msra.mxu0 0.0
    %1099 = vmatprep.subr.mxu0 0.0
    %1100 = vmatpush1.msra.mxu0 0.0
    %1101 = vmatprep.subr.mxu0 0.0
    %1102 = vmatpush1.msra.mxu0 0.0
    %1103 = vmatprep.subr.mxu0 0.0
    %1104 = vmatpush1.msra.mxu0 0.0
    %1105 = vmatprep.subr.mxu0 0.0
    %1106 = vmatpush1.msra.mxu0 0.0
    %1107 = vmatprep.subr.mxu0 0.0
    %1108 = vmatpush1.msra.mxu0 0.0
    %1109 = vmatprep.subr.mxu0 0.0
    %1110 = vmatpush1.msra.mxu0 0.0
    %1111 = vmatprep.subr.mxu0 0.0
    %1112 = vmatpush1.msra.mxu0 0.0
    %1113 = vmatprep.subr.mxu0 0.0
    %1114 = vmatpush1.msra.mxu0 0.0
    %1115 = vmatprep.subr.mxu0 0.0
    %1116 = vmatpush1.msra.mxu0 0.0
    %1117 = vmatprep.mubr.f32.mxu0 0.0
    %1118 = vmatmul.mubr.f32.gmra.mrb[0].mxu0 %v1048
    %v1119 = vpop.f32.mrb[0].mxu0
    %v1120 = vadd.f32 %v1046, %v1119
    %v1121 = vpop.f32.mrb[0].mxu0
    %1122 = vmatprep.mubr.f32.mxu0 0.0
    %1123 = vmatmul.mubr.f32.gmra.mrb[0].mxu0 %v1051
    %v1124 = vpop.f32.mrb[0].mxu0
    %v1125 = vadd.f32 %v1046, %v1124
    %v1126 = vpop.f32.mrb[0].mxu0
    %1127 = vdwg.mxu0
    %v1128 = vadd.f32 %v1120, %v159
    %v1129 = vadd.f32 %v1125, %v164
    %v1130 = vld [vmem:[%s6 + $0x2] sm:$0x1]
    %v1131 = vld [vmem:[%s6 + $0x3] sm:$0x1]
    %v1132 = vsel %vm233, %v1128, 0.0
    %1133 = vadd.xlane.f32.xlu0 %v1132
    %v1134 = vpop.xlane.xlu0 %1133
    %v1135 = vsel %vm233, %v1129, 0.0
    %1136 = vadd.xlane.f32.xlu0 %v1135
    %v1137 = vpop.xlane.xlu0 %1136
    %v1138 = vrcp.pop 32.0
    %v1139 = vmul.f32 %v1134, %v1138
    %v1140 = vmul.f32 %v1137, %v1138
    %v1141 = vsub.f32 %v1128, %v1139
    %v1142 = vsub.f32 %v1129, %v1140
    %v1143 = vmul.f32 %v1141, %v1141
    %v1144 = vmul.f32 %v1142, %v1142
    %v1145 = vsel %vm233, %v1143, 0.0
    %1146 = vadd.xlane.f32.xlu0 %v1145
    %v1147 = vpop.xlane.xlu0 %1146
    %v1148 = vsel %vm233, %v1144, 0.0
    %1149 = vadd.xlane.f32.xlu0 %v1148
    %v1150 = vpop.xlane.xlu0 %1149
    %v1151 = vmul.f32 %v1147, %v1138
    %v1152 = vmul.f32 %v1150, %v1138
    %v1153 = vadd.f32 %v1151, 1e-06
    %v1154 = vadd.f32 %v1152, 1e-06
    %v1155 = vrsqrt.pop %v1153
    %v1156 = vrsqrt.pop %v1154
    %v1157 = vmul.f32 %v1141, %v1155
    %v1158 = vmul.f32 %v1142, %v1156
    %v1159 = vlaneseq
    %v1160 = vshrl.u32 %v1159, 7
    %v1161 = vsub.s32 0, %v1160
    %v1162 = vrot.slane %v1130, %v1161
    %v1163 = vmul.f32 %v1157, %v1162
    %v1164 = vmul.f32 %v1158, %v1162
    %v1165 = vlaneseq
    %v1166 = vshrl.u32 %v1165, 7
    %v1167 = vsub.s32 0, %v1166
    %v1168 = vrot.slane %v1131, %v1167
    %v1169 = vadd.f32 %v1163, %v1168
    %v1170 = vadd.f32 %v1164, %v1168
    %s1171 = scalar_lea.vmem [#allocation2], 64
    %v1172 = vld [vmem:[%s1171] sm:$0xff]
    %v1173 = vld [vmem:[%s1171 + $0x8] sm:$0xff]
    %v1174 = vld [vmem:[%s1171 + $0x10] sm:$0xff]
    %v1175 = vld [vmem:[%s1171 + $0x18] sm:$0xff]
    %v1176 = vld [vmem:[%s6 + $0x4] sm:$0x1]
    %v1177 = vlaneseq
    %v1178 = vshrl.u32 %v1177, 7
    %v1179 = vsub.s32 0, %v1178
    %v1180 = vrot.slane %v1176, %v1179
    %v1182 = vsel %vm233, %v1169, 0
    %v1185 = vsel %vm233, %v1170, 0
    %1187 = vmatprep.subr.mxu0 0.0
    %1188 = vmatpush1.msra.mxu0 %v1172
    %1189 = vmatprep.subr.mxu0 0.0
    %1190 = vmatpush1.msra.mxu0 %v1173
    %1191 = vmatprep.subr.mxu0 0.0
    %1192 = vmatpush1.msra.mxu0 %v1174
    %1193 = vmatprep.subr.mxu0 0.0
    %1194 = vmatpush1.msra.mxu0 %v1175
    %1195 = vmatprep.subr.mxu0 0.0
    %1196 = vmatpush1.msra.mxu0 0.0
    %1197 = vmatprep.subr.mxu0 0.0
    %1198 = vmatpush1.msra.mxu0 0.0
    %1199 = vmatprep.subr.mxu0 0.0
    %1200 = vmatpush1.msra.mxu0 0.0
    %1201 = vmatprep.subr.mxu0 0.0
    %1202 = vmatpush1.msra.mxu0 0.0
    %1203 = vmatprep.subr.mxu0 0.0
    %1204 = vmatpush1.msra.mxu0 0.0
    %1205 = vmatprep.subr.mxu0 0.0
    %1206 = vmatpush1.msra.mxu0 0.0
    %1207 = vmatprep.subr.mxu0 0.0
    %1208 = vmatpush1.msra.mxu0 0.0
    %1209 = vmatprep.subr.mxu0 0.0
    %1210 = vmatpush1.msra.mxu0 0.0
    %1211 = vmatprep.subr.mxu0 0.0
    %1212 = vmatpush1.msra.mxu0 0.0
    %1213 = vmatprep.subr.mxu0 0.0
    %1214 = vmatpush1.msra.mxu0 0.0
    %1215 = vmatprep.subr.mxu0 0.0
    %1216 = vmatpush1.msra.mxu0 0.0
    %1217 = vmatprep.subr.mxu0 0.0
    %1218 = vmatpush1.msra.mxu0 0.0
    %1219 = vmatprep.subr.mxu0 0.0
    %1220 = vmatpush1.msra.mxu0 0.0
    %1221 = vmatprep.subr.mxu0 0.0
    %1222 = vmatpush1.msra.mxu0 0.0
    %1223 = vmatprep.subr.mxu0 0.0
    %1224 = vmatpush1.msra.mxu0 0.0
    %1225 = vmatprep.subr.mxu0 0.0
    %1226 = vmatpush1.msra.mxu0 0.0
    %1227 = vmatprep.subr.mxu0 0.0
    %1228 = vmatpush1.msra.mxu0 0.0
    %1229 = vmatprep.subr.mxu0 0.0
    %1230 = vmatpush1.msra.mxu0 0.0
    %1231 = vmatprep.subr.mxu0 0.0
    %1232 = vmatpush1.msra.mxu0 0.0
    %1233 = vmatprep.subr.mxu0 0.0
    %1234 = vmatpush1.msra.mxu0 0.0
    %1235 = vmatprep.subr.mxu0 0.0
    %1236 = vmatpush1.msra.mxu0 0.0
    %1237 = vmatprep.subr.mxu0 0.0
    %1238 = vmatpush1.msra.mxu0 0.0
    %1239 = vmatprep.subr.mxu0 0.0
    %1240 = vmatpush1.msra.mxu0 0.0
    %1241 = vmatprep.subr.mxu0 0.0
    %1242 = vmatpush1.msra.mxu0 0.0
    %1243 = vmatprep.subr.mxu0 0.0
    %1244 = vmatpush1.msra.mxu0 0.0
    %1245 = vmatprep.subr.mxu0 0.0
    %1246 = vmatpush1.msra.mxu0 0.0
    %1247 = vmatprep.subr.mxu0 0.0
    %1248 = vmatpush1.msra.mxu0 0.0
    %1249 = vmatprep.subr.mxu0 0.0
    %1250 = vmatpush1.msra.mxu0 0.0
    %1251 = vmatprep.mubr.f32.mxu0 0.0
    %1252 = vmatmul.mubr.f32.gmra.mrb[0].mxu0 %v1182
    %v1253 = vpop.f32.mrb[0].mxu0
    %v1254 = vadd.f32 %v1180, %v1253
    %v1255 = vpop.f32.mrb[0].mxu0
    %1256 = vmatprep.mubr.f32.mxu0 0.0
    %1257 = vmatmul.mubr.f32.gmra.mrb[0].mxu0 %v1185
    %v1258 = vpop.f32.mrb[0].mxu0
    %v1259 = vadd.f32 %v1180, %v1258
    %v1260 = vpop.f32.mrb[0].mxu0
    %1261 = vdwg.mxu0
    %v1262 = vmax.f32 %v1254, 0.0
    %v1263 = vmax.f32 %v1259, 0.0
    %v1264 = vld [vmem:[#allocation5] sm:$0xff]
    %v1265 = vld [vmem:[#allocation5 + $0x8] sm:$0xff]
    %v1266 = vld [vmem:[#allocation5 + $0x10] sm:$0xff]
    %v1267 = vld [vmem:[#allocation5 + $0x18] sm:$0xff]
    %v1268 = vld [vmem:[#allocation5 + $0x20] sm:$0xff]
    %v1269 = vld [vmem:[#allocation5 + $0x28] sm:$0xff]
    %v1270 = vld [vmem:[#allocation5 + $0x30] sm:$0xff]
    %v1271 = vld [vmem:[#allocation5 + $0x38] sm:$0xff]
    %v1272 = vld [vmem:[%s6 + $0x5] sm:$0x1]
    %v1273 = vlaneseq
    %v1274 = vshrl.u32 %v1273, 7
    %v1275 = vsub.s32 0, %v1274
    %v1276 = vrot.slane %v1272, %v1275
    %vm1277 = vcmask 523264
    %v1279 = vsel %vm1277, %v1262, 0
    %v1282 = vsel %vm1277, %v1263, 0
    %1284 = vmatprep.subr.mxu0 0.0
    %1285 = vmatpush1.msra.mxu0 %v1264
    %1286 = vmatprep.subr.mxu0 0.0
    %1287 = vmatpush1.msra.mxu0 %v1265
    %1288 = vmatprep.subr.mxu0 0.0
    %1289 = vmatpush1.msra.mxu0 %v1266
    %1290 = vmatprep.subr.mxu0 0.0
    %1291 = vmatpush1.msra.mxu0 %v1267
    %1292 = vmatprep.subr.mxu0 0.0
    %1293 = vmatpush1.msra.mxu0 %v1268
    %1294 = vmatprep.subr.mxu0 0.0
    %1295 = vmatpush1.msra.mxu0 %v1269
    %1296 = vmatprep.subr.mxu0 0.0
    %1297 = vmatpush1.msra.mxu0 %v1270
    %1298 = vmatprep.subr.mxu0 0.0
    %1299 = vmatpush1.msra.mxu0 %v1271
    %1300 = vmatprep.subr.mxu0 0.0
    %1301 = vmatpush1.msra.mxu0 0.0
    %1302 = vmatprep.subr.mxu0 0.0
    %1303 = vmatpush1.msra.mxu0 0.0
    %1304 = vmatprep.subr.mxu0 0.0
    %1305 = vmatpush1.msra.mxu0 0.0
    %1306 = vmatprep.subr.mxu0 0.0
    %1307 = vmatpush1.msra.mxu0 0.0
    %1308 = vmatprep.subr.mxu0 0.0
    %1309 = vmatpush1.msra.mxu0 0.0
    %1310 = vmatprep.subr.mxu0 0.0
    %1311 = vmatpush1.msra.mxu0 0.0
    %1312 = vmatprep.subr.mxu0 0.0
    %1313 = vmatpush1.msra.mxu0 0.0
    %1314 = vmatprep.subr.mxu0 0.0
    %1315 = vmatpush1.msra.mxu0 0.0
    %1316 = vmatprep.subr.mxu0 0.0
    %1317 = vmatpush1.msra.mxu0 0.0
    %1318 = vmatprep.subr.mxu0 0.0
    %1319 = vmatpush1.msra.mxu0 0.0
    %1320 = vmatprep.subr.mxu0 0.0
    %1321 = vmatpush1.msra.mxu0 0.0
    %1322 = vmatprep.subr.mxu0 0.0
    %1323 = vmatpush1.msra.mxu0 0.0
    %1324 = vmatprep.subr.mxu0 0.0
    %1325 = vmatpush1.msra.mxu0 0.0
    %1326 = vmatprep.subr.mxu0 0.0
    %1327 = vmatpush1.msra.mxu0 0.0
    %1328 = vmatprep.subr.mxu0 0.0
    %1329 = vmatpush1.msra.mxu0 0.0
    %1330 = vmatprep.subr.mxu0 0.0
    %1331 = vmatpush1.msra.mxu0 0.0
    %1332 = vmatprep.subr.mxu0 0.0
    %1333 = vmatpush1.msra.mxu0 0.0
    %1334 = vmatprep.subr.mxu0 0.0
    %1335 = vmatpush1.msra.mxu0 0.0
    %1336 = vmatprep.subr.mxu0 0.0
    %1337 = vmatpush1.msra.mxu0 0.0
    %1338 = vmatprep.subr.mxu0 0.0
    %1339 = vmatpush1.msra.mxu0 0.0
    %1340 = vmatprep.subr.mxu0 0.0
    %1341 = vmatpush1.msra.mxu0 0.0
    %1342 = vmatprep.subr.mxu0 0.0
    %1343 = vmatpush1.msra.mxu0 0.0
    %1344 = vmatprep.subr.mxu0 0.0
    %1345 = vmatpush1.msra.mxu0 0.0
    %1346 = vmatprep.subr.mxu0 0.0
    %1347 = vmatpush1.msra.mxu0 0.0
    %1348 = vmatprep.mubr.f32.mxu0 0.0
    %1349 = vmatmul.mubr.f32.gmra.mrb[0].mxu0 %v1279
    %v1350 = vpop.f32.mrb[0].mxu0
    %v1351 = vadd.f32 %v1276, %v1350
    %v1352 = vpop.f32.mrb[0].mxu0
    %1353 = vmatprep.mubr.f32.mxu0 0.0
    %1354 = vmatmul.mubr.f32.gmra.mrb[0].mxu0 %v1282
    %v1355 = vpop.f32.mrb[0].mxu0
    %v1356 = vadd.f32 %v1276, %v1355
    %v1357 = vpop.f32.mrb[0].mxu0
    %1358 = vdwg.mxu0
    %v1359 = vadd.f32 %v1351, %v1169
    %v1360 = vadd.f32 %v1356, %v1170
    %v1361 = vld [vmem:[%s6 + $0x6] sm:$0x1]
    %v1362 = vld [vmem:[%s6 + $0x7] sm:$0x1]
    %v1363 = vsel %vm233, %v1359, 0.0
    %1364 = vadd.xlane.f32.xlu0 %v1363
    %v1365 = vpop.xlane.xlu0 %1364
    %v1366 = vsel %vm233, %v1360, 0.0
    %1367 = vadd.xlane.f32.xlu0 %v1366
    %v1368 = vpop.xlane.xlu0 %1367
    %v1369 = vmul.f32 %v1365, %v1138
    %v1370 = vmul.f32 %v1368, %v1138
    %v1371 = vsub.f32 %v1359, %v1369
    %v1372 = vsub.f32 %v1360, %v1370
    %v1373 = vmul.f32 %v1371, %v1371
    %v1374 = vmul.f32 %v1372, %v1372
    %v1375 = vsel %vm233, %v1373, 0.0
    %1376 = vadd.xlane.f32.xlu0 %v1375
    %v1377 = vpop.xlane.xlu0 %1376
    %v1378 = vsel %vm233, %v1374, 0.0
    %1379 = vadd.xlane.f32.xlu0 %v1378
    %v1380 = vpop.xlane.xlu0 %1379
    %v1381 = vmul.f32 %v1377, %v1138
    %v1382 = vmul.f32 %v1380, %v1138
    %v1383 = vadd.f32 %v1381, 1e-06
    %v1384 = vadd.f32 %v1382, 1e-06
    %v1385 = vrsqrt.pop %v1383
    %v1386 = vrsqrt.pop %v1384
    %v1387 = vmul.f32 %v1371, %v1385
    %v1388 = vmul.f32 %v1372, %v1386
    %v1389 = vlaneseq
    %v1390 = vshrl.u32 %v1389, 7
    %v1391 = vsub.s32 0, %v1390
    %v1392 = vrot.slane %v1361, %v1391
    %v1393 = vmul.f32 %v1387, %v1392
    %v1394 = vmul.f32 %v1388, %v1392
    %v1395 = vlaneseq
    %v1396 = vshrl.u32 %v1395, 7
    %v1397 = vsub.s32 0, %v1396
    %v1398 = vrot.slane %v1362, %v1397
    %v1399 = vadd.f32 %v1393, %v1398
    %v1400 = vadd.f32 %v1394, %v1398
    %v1401 = vld [vmem:[%s2 + $0x18] sm:$0xff]
    %v1402 = vld [vmem:[%s2 + $0x20] sm:$0x3]
    %v1403 = vld [vmem:[%s2 + $0x28] sm:$0x3f]
    %v1404 = vld [vmem:[%s3] sm:$0xff]
    %v1405 = vld [vmem:[%s3 + $0x8] sm:$0x3]
    %vm1406 = vcmask 80896
    %v1408 = vsel %vm1406, %v1404, 0
    %v1411 = vsel %vm1406, %v1405, 0
    %vm1413 = vcmask 1041408
    %v1415 = vsel %vm1413, %v1402, 0
    %1417 = vmatprep.subr.mxu0 0.0
    %1418 = vmatpush1.msra.mxu0 %v1401
    %1419 = vmatprep.subr.mxu0 0.0
    %1420 = vmatpush1.msra.mxu0 %v1415
    %1421 = vmatprep.subr.mxu0 0.0
    %1422 = vmatpush1.msra.mxu0 0.0
    %1423 = vmatprep.subr.mxu0 0.0
    %1424 = vmatpush1.msra.mxu0 0.0
    %1425 = vmatprep.subr.mxu0 0.0
    %1426 = vmatpush1.msra.mxu0 0.0
    %1427 = vmatprep.subr.mxu0 0.0
    %1428 = vmatpush1.msra.mxu0 0.0
    %1429 = vmatprep.subr.mxu0 0.0
    %1430 = vmatpush1.msra.mxu0 0.0
    %1431 = vmatprep.subr.mxu0 0.0
    %1432 = vmatpush1.msra.mxu0 0.0
    %1433 = vmatprep.subr.mxu0 0.0
    %1434 = vmatpush1.msra.mxu0 0.0
    %1435 = vmatprep.subr.mxu0 0.0
    %1436 = vmatpush1.msra.mxu0 0.0
    %1437 = vmatprep.subr.mxu0 0.0
    %1438 = vmatpush1.msra.mxu0 0.0
    %1439 = vmatprep.subr.mxu0 0.0
    %1440 = vmatpush1.msra.mxu0 0.0
    %1441 = vmatprep.subr.mxu0 0.0
    %1442 = vmatpush1.msra.mxu0 0.0
    %1443 = vmatprep.subr.mxu0 0.0
    %1444 = vmatpush1.msra.mxu0 0.0
    %1445 = vmatprep.subr.mxu0 0.0
    %1446 = vmatpush1.msra.mxu0 0.0
    %1447 = vmatprep.subr.mxu0 0.0
    %1448 = vmatpush1.msra.mxu0 0.0
    %1449 = vmatprep.subr.mxu0 0.0
    %1450 = vmatpush1.msra.mxu0 0.0
    %1451 = vmatprep.subr.mxu0 0.0
    %1452 = vmatpush1.msra.mxu0 0.0
    %1453 = vmatprep.subr.mxu0 0.0
    %1454 = vmatpush1.msra.mxu0 0.0
    %1455 = vmatprep.subr.mxu0 0.0
    %1456 = vmatpush1.msra.mxu0 0.0
    %1457 = vmatprep.subr.mxu0 0.0
    %1458 = vmatpush1.msra.mxu0 0.0
    %1459 = vmatprep.subr.mxu0 0.0
    %1460 = vmatpush1.msra.mxu0 0.0
    %1461 = vmatprep.subr.mxu0 0.0
    %1462 = vmatpush1.msra.mxu0 0.0
    %1463 = vmatprep.subr.mxu0 0.0
    %1464 = vmatpush1.msra.mxu0 0.0
    %1465 = vmatprep.subr.mxu0 0.0
    %1466 = vmatpush1.msra.mxu0 0.0
    %1467 = vmatprep.subr.mxu0 0.0
    %1468 = vmatpush1.msra.mxu0 0.0
    %1469 = vmatprep.subr.mxu0 0.0
    %1470 = vmatpush1.msra.mxu0 0.0
    %1471 = vmatprep.subr.mxu0 0.0
    %1472 = vmatpush1.msra.mxu0 0.0
    %1473 = vmatprep.subr.mxu0 0.0
    %1474 = vmatpush1.msra.mxu0 0.0
    %1475 = vmatprep.subr.mxu0 0.0
    %1476 = vmatpush1.msra.mxu0 0.0
    %1477 = vmatprep.subr.mxu0 0.0
    %1478 = vmatpush1.msra.mxu0 0.0
    %1479 = vmatprep.subr.mxu0 0.0
    %1480 = vmatpush1.msra.mxu0 0.0
    %1481 = vmatprep.mubr.f32.mxu0 0.0
    %1482 = vmatmul.mubr.f32.gmra.mrb[0].mxu0 %v1408
    %v1483 = vpop.f32.mrb[0].mxu0
    %v1484 = vadd.f32 0.0, %v1483
    %v1485 = vpop.f32.mrb[0].mxu0
    %1486 = vmatprep.mubr.f32.mxu0 0.0
    %1487 = vmatmul.mubr.f32.gmra.mrb[0].mxu0 %v1411
    %v1488 = vpop.f32.mrb[0].mxu0
    %v1489 = vadd.f32 0.0, %v1488
    %v1490 = vpop.f32.mrb[0].mxu0
    %1491 = vdwg.mxu0
    %1492 = vrot.lane.b32.xlu0 %v1404, 118
    %v1493 = vpop.permute.xlu0 %1492
    %1494 = vrot.lane.b32.xlu0 %v1405, 118
    %v1495 = vpop.permute.xlu0 %1494
    %vm1496 = vcmask 31744
    %v1497 = vsel %vm1496, %v1493, 0
    %v1499 = vsel %vm1496, %v1495, 0
    %v1502 = vsel %vm88, %v1403, 0
    %1504 = vmatprep.subr.mxu0 0.0
    %1505 = vmatpush1.msra.mxu0 %v1502
    %1506 = vmatprep.subr.mxu0 0.0
    %1507 = vmatpush1.msra.mxu0 0.0
    %1508 = vmatprep.subr.mxu0 0.0
    %1509 = vmatpush1.msra.mxu0 0.0
    %1510 = vmatprep.subr.mxu0 0.0
    %1511 = vmatpush1.msra.mxu0 0.0
    %1512 = vmatprep.subr.mxu0 0.0
    %1513 = vmatpush1.msra.mxu0 0.0
    %1514 = vmatprep.subr.mxu0 0.0
    %1515 = vmatpush1.msra.mxu0 0.0
    %1516 = vmatprep.subr.mxu0 0.0
    %1517 = vmatpush1.msra.mxu0 0.0
    %1518 = vmatprep.subr.mxu0 0.0
    %1519 = vmatpush1.msra.mxu0 0.0
    %1520 = vmatprep.subr.mxu0 0.0
    %1521 = vmatpush1.msra.mxu0 0.0
    %1522 = vmatprep.subr.mxu0 0.0
    %1523 = vmatpush1.msra.mxu0 0.0
    %1524 = vmatprep.subr.mxu0 0.0
    %1525 = vmatpush1.msra.mxu0 0.0
    %1526 = vmatprep.subr.mxu0 0.0
    %1527 = vmatpush1.msra.mxu0 0.0
    %1528 = vmatprep.subr.mxu0 0.0
    %1529 = vmatpush1.msra.mxu0 0.0
    %1530 = vmatprep.subr.mxu0 0.0
    %1531 = vmatpush1.msra.mxu0 0.0
    %1532 = vmatprep.subr.mxu0 0.0
    %1533 = vmatpush1.msra.mxu0 0.0
    %1534 = vmatprep.subr.mxu0 0.0
    %1535 = vmatpush1.msra.mxu0 0.0
    %1536 = vmatprep.subr.mxu0 0.0
    %1537 = vmatpush1.msra.mxu0 0.0
    %1538 = vmatprep.subr.mxu0 0.0
    %1539 = vmatpush1.msra.mxu0 0.0
    %1540 = vmatprep.subr.mxu0 0.0
    %1541 = vmatpush1.msra.mxu0 0.0
    %1542 = vmatprep.subr.mxu0 0.0
    %1543 = vmatpush1.msra.mxu0 0.0
    %1544 = vmatprep.subr.mxu0 0.0
    %1545 = vmatpush1.msra.mxu0 0.0
    %1546 = vmatprep.subr.mxu0 0.0
    %1547 = vmatpush1.msra.mxu0 0.0
    %1548 = vmatprep.subr.mxu0 0.0
    %1549 = vmatpush1.msra.mxu0 0.0
    %1550 = vmatprep.subr.mxu0 0.0
    %1551 = vmatpush1.msra.mxu0 0.0
    %1552 = vmatprep.subr.mxu0 0.0
    %1553 = vmatpush1.msra.mxu0 0.0
    %1554 = vmatprep.subr.mxu0 0.0
    %1555 = vmatpush1.msra.mxu0 0.0
    %1556 = vmatprep.subr.mxu0 0.0
    %1557 = vmatpush1.msra.mxu0 0.0
    %1558 = vmatprep.subr.mxu0 0.0
    %1559 = vmatpush1.msra.mxu0 0.0
    %1560 = vmatprep.subr.mxu0 0.0
    %1561 = vmatpush1.msra.mxu0 0.0
    %1562 = vmatprep.subr.mxu0 0.0
    %1563 = vmatpush1.msra.mxu0 0.0
    %1564 = vmatprep.subr.mxu0 0.0
    %1565 = vmatpush1.msra.mxu0 0.0
    %1566 = vmatprep.subr.mxu0 0.0
    %1567 = vmatpush1.msra.mxu0 0.0
    %1568 = vmatprep.mubr.f32.mxu0 0.0
    %1569 = vmatmul.mubr.f32.gmra.mrb[0].mxu0 %v1497
    %v1570 = vpop.f32.mrb[0].mxu0
    %v1571 = vadd.f32 0.0, %v1570
    %v1572 = vpop.f32.mrb[0].mxu0
    %1573 = vmatprep.mubr.f32.mxu0 0.0
    %1574 = vmatmul.mubr.f32.gmra.mrb[0].mxu0 %v1499
    %v1575 = vpop.f32.mrb[0].mxu0
    %v1576 = vadd.f32 0.0, %v1575
    %v1577 = vpop.f32.mrb[0].mxu0
    %1578 = vdwg.mxu0
    %v1579 = vsub.f32 %v1484, %v1571
    %v1580 = vsub.f32 %v1489, %v1576
    %v1581 = vrot.slane %v1403, 4
    %vm1583 = vcmask 254976
    %v1584 = vsel %vm1583, %v1581, 0.0
    %v1585 = vrot.slane %v1584, 4
    %v1586 = vadd.f32 %v1584, %v1585
    %v1587 = vrot.slane %v1586, 2
    %v1588 = vadd.f32 %v1586, %v1587
    %v1589 = vrot.slane %v1588, 1
    %v1590 = vadd.f32 %v1588, %v1589
    %v1591 = vrcp.pop 2.0
    %v1592 = vmul.f32 %v1590, %v1591
    %v1593 = vsub.f32 %v1401, %v1592
    %v1594 = vsub.f32 %v1402, %v1592
    %1597 = vrot.lane.b32.xlu0 %v1593, 32
    %v1598 = vpop.permute.xlu0 %1597
    %1599 = vrot.lane.b32.xlu0 %v1594, 32
    %v1600 = vpop.permute.xlu0 %1599
    %v1603 = vsel %vm233, %v1579, %v1598
    %v1604 = vsel %vm233, %v1580, %v1600
    %s1605 = scalar_lea.vmem [#allocation5], 64
    %v1606 = vld [vmem:[%s1605] sm:$0xff]
    %v1607 = vld [vmem:[%s1605 + $0x8] sm:$0xff]
    %v1608 = vld [vmem:[%s1605 + $0x10] sm:$0xff]
    %v1609 = vld [vmem:[%s1605 + $0x18] sm:$0xff]
    %v1610 = vld [vmem:[%s1605 + $0x20] sm:$0xff]
    %v1611 = vld [vmem:[%s1605 + $0x28] sm:$0xff]
    %v1612 = vld [vmem:[%s1605 + $0x30] sm:$0xff]
    %v1613 = vld [vmem:[%s1605 + $0x38] sm:$0xff]
    %v1614 = vld [vmem:[%s6 + $0x8] sm:$0x1]
    %v1615 = vlaneseq
    %v1616 = vshrl.u32 %v1615, 7
    %v1617 = vsub.s32 0, %v1616
    %v1618 = vrot.slane %v1614, %v1617
    %v1620 = vsel %vm1277, %v1603, 0
    %v1623 = vsel %vm1277, %v1604, 0
    %1625 = vmatprep.subr.mxu0 0.0
    %1626 = vmatpush1.msra.mxu0 %v1606
    %1627 = vmatprep.subr.mxu0 0.0
    %1628 = vmatpush1.msra.mxu0 %v1607
    %1629 = vmatprep.subr.mxu0 0.0
    %1630 = vmatpush1.msra.mxu0 %v1608
    %1631 = vmatprep.subr.mxu0 0.0
    %1632 = vmatpush1.msra.mxu0 %v1609
    %1633 = vmatprep.subr.mxu0 0.0
    %1634 = vmatpush1.msra.mxu0 %v1610
    %1635 = vmatprep.subr.mxu0 0.0
    %1636 = vmatpush1.msra.mxu0 %v1611
    %1637 = vmatprep.subr.mxu0 0.0
    %1638 = vmatpush1.msra.mxu0 %v1612
    %1639 = vmatprep.subr.mxu0 0.0
    %1640 = vmatpush1.msra.mxu0 %v1613
    %1641 = vmatprep.subr.mxu0 0.0
    %1642 = vmatpush1.msra.mxu0 0.0
    %1643 = vmatprep.subr.mxu0 0.0
    %1644 = vmatpush1.msra.mxu0 0.0
    %1645 = vmatprep.subr.mxu0 0.0
    %1646 = vmatpush1.msra.mxu0 0.0
    %1647 = vmatprep.subr.mxu0 0.0
    %1648 = vmatpush1.msra.mxu0 0.0
    %1649 = vmatprep.subr.mxu0 0.0
    %1650 = vmatpush1.msra.mxu0 0.0
    %1651 = vmatprep.subr.mxu0 0.0
    %1652 = vmatpush1.msra.mxu0 0.0
    %1653 = vmatprep.subr.mxu0 0.0
    %1654 = vmatpush1.msra.mxu0 0.0
    %1655 = vmatprep.subr.mxu0 0.0
    %1656 = vmatpush1.msra.mxu0 0.0
    %1657 = vmatprep.subr.mxu0 0.0
    %1658 = vmatpush1.msra.mxu0 0.0
    %1659 = vmatprep.subr.mxu0 0.0
    %1660 = vmatpush1.msra.mxu0 0.0
    %1661 = vmatprep.subr.mxu0 0.0
    %1662 = vmatpush1.msra.mxu0 0.0
    %1663 = vmatprep.subr.mxu0 0.0
    %1664 = vmatpush1.msra.mxu0 0.0
    %1665 = vmatprep.subr.mxu0 0.0
    %1666 = vmatpush1.msra.mxu0 0.0
    %1667 = vmatprep.subr.mxu0 0.0
    %1668 = vmatpush1.msra.mxu0 0.0
    %1669 = vmatprep.subr.mxu0 0.0
    %1670 = vmatpush1.msra.mxu0 0.0
    %1671 = vmatprep.subr.mxu0 0.0
    %1672 = vmatpush1.msra.mxu0 0.0
    %1673 = vmatprep.subr.mxu0 0.0
    %1674 = vmatpush1.msra.mxu0 0.0
    %1675 = vmatprep.subr.mxu0 0.0
    %1676 = vmatpush1.msra.mxu0 0.0
    %1677 = vmatprep.subr.mxu0 0.0
    %1678 = vmatpush1.msra.mxu0 0.0
    %1679 = vmatprep.subr.mxu0 0.0
    %1680 = vmatpush1.msra.mxu0 0.0
    %1681 = vmatprep.subr.mxu0 0.0
    %1682 = vmatpush1.msra.mxu0 0.0
    %1683 = vmatprep.subr.mxu0 0.0
    %1684 = vmatpush1.msra.mxu0 0.0
    %1685 = vmatprep.subr.mxu0 0.0
    %1686 = vmatpush1.msra.mxu0 0.0
    %1687 = vmatprep.subr.mxu0 0.0
    %1688 = vmatpush1.msra.mxu0 0.0
    %1689 = vmatprep.mubr.f32.mxu0 0.0
    %1690 = vmatmul.mubr.f32.gmra.mrb[0].mxu0 %v1620
    %v1691 = vpop.f32.mrb[0].mxu0
    %v1692 = vadd.f32 %v1618, %v1691
    %v1693 = vpop.f32.mrb[0].mxu0
    %1694 = vmatprep.mubr.f32.mxu0 0.0
    %1695 = vmatmul.mubr.f32.gmra.mrb[0].mxu0 %v1623
    %v1696 = vpop.f32.mrb[0].mxu0
    %v1697 = vadd.f32 %v1618, %v1696
    %v1698 = vpop.f32.mrb[0].mxu0
    %1699 = vdwg.mxu0
    %v1700 = vtanh.pop %v1692
    %v1701 = vtanh.pop %v1697
    %s1702 = scalar_lea.vmem [#allocation2], 96
    %v1703 = vld [vmem:[%s1702] sm:$0xff]
    %v1704 = vld [vmem:[%s1702 + $0x8] sm:$0xff]
    %v1705 = vld [vmem:[%s1702 + $0x10] sm:$0xff]
    %v1706 = vld [vmem:[%s1702 + $0x18] sm:$0xff]
    %v1707 = vsel %vm233, %v1403, 0
    %1709 = vmatprep.subr.mxu0 0.0
    %1710 = vmatpush1.msra.mxu0 %v1703
    %1711 = vmatprep.subr.mxu0 0.0
    %1712 = vmatpush1.msra.mxu0 %v1704
    %1713 = vmatprep.subr.mxu0 0.0
    %1714 = vmatpush1.msra.mxu0 %v1705
    %1715 = vmatprep.subr.mxu0 0.0
    %1716 = vmatpush1.msra.mxu0 %v1706
    %1717 = vmatprep.subr.mxu0 0.0
    %1718 = vmatpush1.msra.mxu0 0.0
    %1719 = vmatprep.subr.mxu0 0.0
    %1720 = vmatpush1.msra.mxu0 0.0
    %1721 = vmatprep.subr.mxu0 0.0
    %1722 = vmatpush1.msra.mxu0 0.0
    %1723 = vmatprep.subr.mxu0 0.0
    %1724 = vmatpush1.msra.mxu0 0.0
    %1725 = vmatprep.subr.mxu0 0.0
    %1726 = vmatpush1.msra.mxu0 0.0
    %1727 = vmatprep.subr.mxu0 0.0
    %1728 = vmatpush1.msra.mxu0 0.0
    %1729 = vmatprep.subr.mxu0 0.0
    %1730 = vmatpush1.msra.mxu0 0.0
    %1731 = vmatprep.subr.mxu0 0.0
    %1732 = vmatpush1.msra.mxu0 0.0
    %1733 = vmatprep.subr.mxu0 0.0
    %1734 = vmatpush1.msra.mxu0 0.0
    %1735 = vmatprep.subr.mxu0 0.0
    %1736 = vmatpush1.msra.mxu0 0.0
    %1737 = vmatprep.subr.mxu0 0.0
    %1738 = vmatpush1.msra.mxu0 0.0
    %1739 = vmatprep.subr.mxu0 0.0
    %1740 = vmatpush1.msra.mxu0 0.0
    %1741 = vmatprep.subr.mxu0 0.0
    %1742 = vmatpush1.msra.mxu0 0.0
    %1743 = vmatprep.subr.mxu0 0.0
    %1744 = vmatpush1.msra.mxu0 0.0
    %1745 = vmatprep.subr.mxu0 0.0
    %1746 = vmatpush1.msra.mxu0 0.0
    %1747 = vmatprep.subr.mxu0 0.0
    %1748 = vmatpush1.msra.mxu0 0.0
    %1749 = vmatprep.subr.mxu0 0.0
    %1750 = vmatpush1.msra.mxu0 0.0
    %1751 = vmatprep.subr.mxu0 0.0
    %1752 = vmatpush1.msra.mxu0 0.0
    %1753 = vmatprep.subr.mxu0 0.0
    %1754 = vmatpush1.msra.mxu0 0.0
    %1755 = vmatprep.subr.mxu0 0.0
    %1756 = vmatpush1.msra.mxu0 0.0
    %1757 = vmatprep.subr.mxu0 0.0
    %1758 = vmatpush1.msra.mxu0 0.0
    %1759 = vmatprep.subr.mxu0 0.0
    %1760 = vmatpush1.msra.mxu0 0.0
    %1761 = vmatprep.subr.mxu0 0.0
    %1762 = vmatpush1.msra.mxu0 0.0
    %1763 = vmatprep.subr.mxu0 0.0
    %1764 = vmatpush1.msra.mxu0 0.0
    %1765 = vmatprep.subr.mxu0 0.0
    %1766 = vmatpush1.msra.mxu0 0.0
    %1767 = vmatprep.subr.mxu0 0.0
    %1768 = vmatpush1.msra.mxu0 0.0
    %1769 = vmatprep.subr.mxu0 0.0
    %1770 = vmatpush1.msra.mxu0 0.0
    %1771 = vmatprep.subr.mxu0 0.0
    %1772 = vmatpush1.msra.mxu0 0.0
    %1773 = vmatprep.mubr.f32.mxu0 0.0
    %1774 = vmatmul.mubr.f32.gmra.mrb[0].mxu0 %v1707
    %v1775 = vpop.f32.mrb[0].mxu0
    %v1776 = vadd.f32 0.0, %v1775
    %v1777 = vpop.f32.mrb[0].mxu0
    %1778 = vdwg.mxu0
    %v1779 = vtanh.pop %v1776
    %1780 = vst.msk [vmem:[#allocation8] sm:$0xff] %vm233, %v1700
    %1781 = vst.msk [vmem:[#allocation8 + $0x8] sm:$0x3] %vm1583, %v1701
    %vm1782 = vcmask 259072
    %1783 = vst.msk [vmem:[#allocation10] sm:$0x3f] %vm1782, %v1779
    %vm1784 = vcmp.ge.s32.totalorder %v68, 10
    %v1785 = vsel %vm1784, 1, 0
    %vm1786 = vcmp.ge.s32.totalorder %v68, 20
    %v1787 = vsel %vm1786, 1, 0
    %v1788 = vadd.s32 %v1785, %v1787
    %vm1789 = vcmp.ge.s32.totalorder %v68, 30
    %v1790 = vsel %vm1789, 1, 0
    %v1791 = vadd.s32 %v1788, %v1790
    %vm1792 = vcmp.eq.s32.totalorder %v200, %v1791
    %vm1793 = vcmp.eq.s32.totalorder %v201, %v1791
    %vm1794 = vcmp.eq.s32.totalorder %v202, %v1791
    %vm1795 = vcmp.eq.s32.totalorder %v203, %v1791
    %v1796 = vsel %vm1792, 1, 0
    %v1797 = vsel %vm1793, 1, 0
    %v1798 = vsel %vm1794, 1, 0
    %v1799 = vsel %vm1795, 1, 0
    %v1800 = vcvt.s32.f32 %v1796
    %v1801 = vcvt.s32.f32 %v1797
    %v1802 = vcvt.s32.f32 %v1798
    %v1803 = vcvt.s32.f32 %v1799
    %v1804 = vadd.s32 %v168, 32
    %vm1805 = vcmp.ge.s32.totalorder %v168, 10
    %vm1806 = vcmp.ge.s32.totalorder %v169, 10
    %vm1807 = vcmp.ge.s32.totalorder %v170, 10
    %vm1808 = vcmp.ge.s32.totalorder %v171, 10
    %vm1809 = vcmp.ge.s32.totalorder %v1804, 10
    %v1810 = vsel %vm1805, 1, 0
    %v1811 = vsel %vm1806, 1, 0
    %v1812 = vsel %vm1807, 1, 0
    %v1813 = vsel %vm1808, 1, 0
    %v1814 = vsel %vm1809, 1, 0
    %vm1815 = vcmp.ge.s32.totalorder %v168, 20
    %vm1816 = vcmp.ge.s32.totalorder %v169, 20
    %vm1817 = vcmp.ge.s32.totalorder %v170, 20
    %vm1818 = vcmp.ge.s32.totalorder %v171, 20
    %vm1819 = vcmp.ge.s32.totalorder %v1804, 20
    %v1820 = vsel %vm1815, 1, 0
    %v1821 = vsel %vm1816, 1, 0
    %v1822 = vsel %vm1817, 1, 0
    %v1823 = vsel %vm1818, 1, 0
    %v1824 = vsel %vm1819, 1, 0
    %v1825 = vadd.s32 %v1810, %v1820
    %v1826 = vadd.s32 %v1811, %v1821
    %v1827 = vadd.s32 %v1812, %v1822
    %v1828 = vadd.s32 %v1813, %v1823
    %v1829 = vadd.s32 %v1814, %v1824
    %vm1830 = vcmp.ge.s32.totalorder %v168, 30
    %vm1831 = vcmp.ge.s32.totalorder %v169, 30
    %vm1832 = vcmp.ge.s32.totalorder %v170, 30
    %vm1833 = vcmp.ge.s32.totalorder %v171, 30
    %vm1834 = vcmp.ge.s32.totalorder %v1804, 30
    %v1835 = vsel %vm1830, 1, 0
    %v1836 = vsel %vm1831, 1, 0
    %v1837 = vsel %vm1832, 1, 0
    %v1838 = vsel %vm1833, 1, 0
    %v1839 = vsel %vm1834, 1, 0
    %v1840 = vadd.s32 %v1825, %v1835
    %v1841 = vadd.s32 %v1826, %v1836
    %v1842 = vadd.s32 %v1827, %v1837
    %v1843 = vadd.s32 %v1828, %v1838
    %v1844 = vadd.s32 %v1829, %v1839
    %vm1845 = vcmp.eq.s32.totalorder %v1840, %v211
    %vm1846 = vcmp.eq.s32.totalorder %v1841, %v211
    %vm1847 = vcmp.eq.s32.totalorder %v1842, %v211
    %vm1848 = vcmp.eq.s32.totalorder %v1843, %v211
    %vm1849 = vcmp.eq.s32.totalorder %v1844, %v211
    %v1850 = vsel %vm1845, 1, 0
    %v1851 = vsel %vm1846, 1, 0
    %v1852 = vsel %vm1847, 1, 0
    %v1853 = vsel %vm1848, 1, 0
    %v1854 = vsel %vm1849, 1, 0
    %v1855 = vcvt.s32.f32 %v1850
    %v1856 = vcvt.s32.f32 %v1851
    %v1857 = vcvt.s32.f32 %v1852
    %v1858 = vcvt.s32.f32 %v1853
    %v1859 = vcvt.s32.f32 %v1854
    %vm1860 = vcmp.eq.s32.totalorder %v1840, %v1791
    %vm1861 = vcmp.eq.s32.totalorder %v1841, %v1791
    %vm1862 = vcmp.eq.s32.totalorder %v1842, %v1791
    %vm1863 = vcmp.eq.s32.totalorder %v1843, %v1791
    %vm1864 = vcmp.eq.s32.totalorder %v1844, %v1791
    %v1865 = vsel %vm1860, 1, 0
    %v1866 = vsel %vm1861, 1, 0
    %v1867 = vsel %vm1862, 1, 0
    %v1868 = vsel %vm1863, 1, 0
    %v1869 = vsel %vm1864, 1, 0
    %v1870 = vcvt.s32.f32 %v1865
    %v1871 = vcvt.s32.f32 %v1866
    %v1872 = vcvt.s32.f32 %v1867
    %v1873 = vcvt.s32.f32 %v1868
    %v1874 = vcvt.s32.f32 %v1869
    %s1875 = scalar_lea.vmem [#allocation2], 128
    %v1876 = vld [vmem:[%s1875] sm:$0xff]
    %v1877 = vld [vmem:[%s1875 + $0x8] sm:$0xff]
    %v1878 = vld [vmem:[%s1875 + $0x10] sm:$0xff]
    %v1879 = vld [vmem:[%s1875 + $0x18] sm:$0xff]
    %v1880 = vld [vmem:[%s6 + $0x9] sm:$0x1]
    %v1881 = vlaneseq
    %v1882 = vshrl.u32 %v1881, 7
    %v1883 = vsub.s32 0, %v1882
    %v1884 = vrot.slane %v1880, %v1883
    %v1886 = vsel %vm233, %v1700, 0
    %v1889 = vsel %vm233, %v1701, 0
    %1891 = vmatprep.subr.mxu0 0.0
    %1892 = vmatpush1.msra.mxu0 %v1876
    %1893 = vmatprep.subr.mxu0 0.0
    %1894 = vmatpush1.msra.mxu0 %v1877
    %1895 = vmatprep.subr.mxu0 0.0
    %1896 = vmatpush1.msra.mxu0 %v1878
    %1897 = vmatprep.subr.mxu0 0.0
    %1898 = vmatpush1.msra.mxu0 %v1879
    %1899 = vmatprep.subr.mxu0 0.0
    %1900 = vmatpush1.msra.mxu0 0.0
    %1901 = vmatprep.subr.mxu0 0.0
    %1902 = vmatpush1.msra.mxu0 0.0
    %1903 = vmatprep.subr.mxu0 0.0
    %1904 = vmatpush1.msra.mxu0 0.0
    %1905 = vmatprep.subr.mxu0 0.0
    %1906 = vmatpush1.msra.mxu0 0.0
    %1907 = vmatprep.subr.mxu0 0.0
    %1908 = vmatpush1.msra.mxu0 0.0
    %1909 = vmatprep.subr.mxu0 0.0
    %1910 = vmatpush1.msra.mxu0 0.0
    %1911 = vmatprep.subr.mxu0 0.0
    %1912 = vmatpush1.msra.mxu0 0.0
    %1913 = vmatprep.subr.mxu0 0.0
    %1914 = vmatpush1.msra.mxu0 0.0
    %1915 = vmatprep.subr.mxu0 0.0
    %1916 = vmatpush1.msra.mxu0 0.0
    %1917 = vmatprep.subr.mxu0 0.0
    %1918 = vmatpush1.msra.mxu0 0.0
    %1919 = vmatprep.subr.mxu0 0.0
    %1920 = vmatpush1.msra.mxu0 0.0
    %1921 = vmatprep.subr.mxu0 0.0
    %1922 = vmatpush1.msra.mxu0 0.0
    %1923 = vmatprep.subr.mxu0 0.0
    %1924 = vmatpush1.msra.mxu0 0.0
    %1925 = vmatprep.subr.mxu0 0.0
    %1926 = vmatpush1.msra.mxu0 0.0
    %1927 = vmatprep.subr.mxu0 0.0
    %1928 = vmatpush1.msra.mxu0 0.0
    %1929 = vmatprep.subr.mxu0 0.0
    %1930 = vmatpush1.msra.mxu0 0.0
    %1931 = vmatprep.subr.mxu0 0.0
    %1932 = vmatpush1.msra.mxu0 0.0
    %1933 = vmatprep.subr.mxu0 0.0
    %1934 = vmatpush1.msra.mxu0 0.0
    %1935 = vmatprep.subr.mxu0 0.0
    %1936 = vmatpush1.msra.mxu0 0.0
    %1937 = vmatprep.subr.mxu0 0.0
    %1938 = vmatpush1.msra.mxu0 0.0
    %1939 = vmatprep.subr.mxu0 0.0
    %1940 = vmatpush1.msra.mxu0 0.0
    %1941 = vmatprep.subr.mxu0 0.0
    %1942 = vmatpush1.msra.mxu0 0.0
    %1943 = vmatprep.subr.mxu0 0.0
    %1944 = vmatpush1.msra.mxu0 0.0
    %1945 = vmatprep.subr.mxu0 0.0
    %1946 = vmatpush1.msra.mxu0 0.0
    %1947 = vmatprep.subr.mxu0 0.0
    %1948 = vmatpush1.msra.mxu0 0.0
    %1949 = vmatprep.subr.mxu0 0.0
    %1950 = vmatpush1.msra.mxu0 0.0
    %1951 = vmatprep.subr.mxu0 0.0
    %1952 = vmatpush1.msra.mxu0 0.0
    %1953 = vmatprep.subr.mxu0 0.0
    %1954 = vmatpush1.msra.mxu0 0.0
    %1955 = vmatprep.mubr.f32.mxu0 0.0
    %1956 = vmatmul.mubr.f32.gmra.mrb[0].mxu0 %v1886
    %v1957 = vpop.f32.mrb[0].mxu0
    %v1958 = vadd.f32 %v1884, %v1957
    %v1959 = vpop.f32.mrb[0].mxu0
    %1960 = vmatprep.mubr.f32.mxu0 0.0
    %1961 = vmatmul.mubr.f32.gmra.mrb[0].mxu0 %v1889
    %v1962 = vpop.f32.mrb[0].mxu0
    %v1963 = vadd.f32 %v1884, %v1962
    %v1964 = vpop.f32.mrb[0].mxu0
    %1965 = vdwg.mxu0
    %1968 = vrot.lane.b32.xlu0 %v1958, 96
    %v1969 = vpop.permute.xlu0 %1968
    %1970 = vrot.lane.b32.xlu0 %v1963, 96
    %v1971 = vpop.permute.xlu0 %1970
    %1974 = vxpose.xlu0.b32.start [1/16] %v1969, 128
    %1975 = vxpose.xlu0.b32.cont [2/16] %v1971, 128
    %1976 = vxpose.xlu0.b32.cont [3/16] 0.0, 128
    %1977 = vxpose.xlu0.b32.cont [4/16] 0.0, 128
    %1978 = vxpose.xlu0.b32.cont [5/16] 0.0, 128
    %1979 = vxpose.xlu0.b32.cont [6/16] 0.0, 128
    %1980 = vxpose.xlu0.b32.cont [7/16] 0.0, 128
    %1981 = vxpose.xlu0.b32.cont [8/16] 0.0, 128
    %1982 = vxpose.xlu0.b32.cont [9/16] 0.0, 128
    %1983 = vxpose.xlu0.b32.cont [10/16] 0.0, 128
    %1984 = vxpose.xlu0.b32.cont [11/16] 0.0, 128
    %1985 = vxpose.xlu0.b32.cont [12/16] 0.0, 128
    %1986 = vxpose.xlu0.b32.cont [13/16] 0.0, 128
    %1987 = vxpose.xlu0.b32.cont [14/16] 0.0, 128
    %1988 = vxpose.xlu0.b32.cont [15/16] 0.0, 128
    %1989 = vxpose.xlu0.b32.end [16/16] 0.0, 128
    %v1990 = vpop.trf.xlu0
    %v1991 = vpop.trf.xlu0
    %v1992 = vpop.trf.xlu0
    %v1993 = vpop.trf.xlu0
    %v1994 = vpop.trf.xlu0
    %v1995 = vpop.trf.xlu0
    %v1996 = vpop.trf.xlu0
    %v1997 = vpop.trf.xlu0
    %v1998 = vpop.trf.xlu0
    %v1999 = vpop.trf.xlu0
    %v2000 = vpop.trf.xlu0
    %v2001 = vpop.trf.xlu0
    %v2002 = vpop.trf.xlu0
    %v2003 = vpop.trf.xlu0
    %v2004 = vpop.trf.xlu0
    %v2005 = vpop.trf.xlu0
    %2010 = vrot.lane.b32.xlu0 %v1990, 10
    %v2011 = vpop.permute.xlu0 %2010
    %2012 = vrot.lane.b32.xlu0 %v1991, 10
    %v2013 = vpop.permute.xlu0 %2012
    %2014 = vrot.lane.b32.xlu0 %v1992, 10
    %v2015 = vpop.permute.xlu0 %2014
    %2016 = vrot.lane.b32.xlu0 %v1993, 10
    %v2017 = vpop.permute.xlu0 %2016
    %2022 = vrot.lane.b32.xlu0 %v1990, 20
    %v2023 = vpop.permute.xlu0 %2022
    %2024 = vrot.lane.b32.xlu0 %v1991, 20
    %v2025 = vpop.permute.xlu0 %2024
    %2026 = vrot.lane.b32.xlu0 %v1992, 20
    %v2027 = vpop.permute.xlu0 %2026
    %2028 = vrot.lane.b32.xlu0 %v1993, 20
    %v2029 = vpop.permute.xlu0 %2028
    %2034 = vrot.lane.b32.xlu0 %v1990, 30
    %v2035 = vpop.permute.xlu0 %2034
    %2036 = vrot.lane.b32.xlu0 %v1991, 30
    %v2037 = vpop.permute.xlu0 %2036
    %2038 = vrot.lane.b32.xlu0 %v1992, 30
    %v2039 = vpop.permute.xlu0 %2038
    %2040 = vrot.lane.b32.xlu0 %v1993, 30
    %v2041 = vpop.permute.xlu0 %2040
    %v2046 = vsel %vm1406, %v1990, %v2011
    %v2047 = vsel %vm1406, %v1991, %v2013
    %v2048 = vsel %vm1406, %v1992, %v2015
    %v2049 = vsel %vm1406, %v1993, %v2017
    %v2050 = vsel %vm81, %v2046, %v2023
    %v2051 = vsel %vm81, %v2047, %v2025
    %v2052 = vsel %vm81, %v2048, %v2027
    %v2053 = vsel %vm81, %v2049, %v2029
    %vm2054 = vcmask 244736
    %v2055 = vsel %vm2054, %v2050, %v2035
    %v2056 = vsel %vm2054, %v2051, %v2037
    %v2057 = vsel %vm2054, %v2052, %v2039
    %v2058 = vsel %vm2054, %v2053, %v2041
    %v2059 = vmul.f32 %v2055, %v1800
    %v2060 = vmul.f32 %v2056, %v1801
    %v2061 = vmul.f32 %v2057, %v1802
    %v2062 = vmul.f32 %v2058, %v1803
    %v2063 = vrot.slane %v1958, 6
    %v2064 = vrot.slane %v1963, 6
    %v2065 = vsel %vm1413, %v2063, %v2064
    %v2068 = vrot.slane %v1958, 4
    %v2069 = vrot.slane %v1963, 4
    %v2070 = vsel %vm88, %v2068, %v2069
    %vm2073 = vcmask 1045504
    %v2074 = vrot.slane %v1958, 2
    %v2075 = vrot.slane %v1963, 2
    %v2076 = vsel %vm2073, %v2074, %v2075
    %v2079 = vsel %vm1413, %v1963, %v2063
    %v2080 = vsel %vm88, %v2065, %v2068
    %v2081 = vsel %vm2073, %v2070, %v2074
    %2087 = vrot.lane.b32.xlu0 %v1855, 64
    %v2088 = vpop.permute.xlu0 %2087
    %2089 = vrot.lane.b32.xlu0 %v1856, 64
    %v2090 = vpop.permute.xlu0 %2089
    %2091 = vrot.lane.b32.xlu0 %v1857, 64
    %v2092 = vpop.permute.xlu0 %2091
    %2093 = vrot.lane.b32.xlu0 %v1858, 64
    %v2094 = vpop.permute.xlu0 %2093
    %2095 = vrot.lane.b32.xlu0 %v1859, 64
    %v2096 = vpop.permute.xlu0 %2095
    %v2102 = vmul.f32 %v1958, %v2088
    %v2103 = vmul.f32 %v2079, %v2090
    %v2104 = vmul.f32 %v2080, %v2092
    %v2105 = vmul.f32 %v2081, %v2094
    %v2106 = vmul.f32 %v2076, %v2096
    %v2107 = vsel %vm233, %v1958, 0
    %v2109 = vsel %vm233, %v1963, 0
    %2111 = vmatprep.subr.mxu0 0.0
    %2112 = vmatpush1.msra.mxu0 %v2059
    %2113 = vmatprep.subr.mxu0 0.0
    %2114 = vmatpush1.msra.mxu0 %v2060
    %2115 = vmatprep.subr.mxu0 0.0
    %2116 = vmatpush1.msra.mxu0 %v2061
    %2117 = vmatprep.subr.mxu0 0.0
    %2118 = vmatpush1.msra.mxu0 %v2062
    %2119 = vmatprep.subr.mxu0 0.0
    %2120 = vmatpush1.msra.mxu0 0.0
    %2121 = vmatprep.subr.mxu0 0.0
    %2122 = vmatpush1.msra.mxu0 0.0
    %2123 = vmatprep.subr.mxu0 0.0
    %2124 = vmatpush1.msra.mxu0 0.0
    %2125 = vmatprep.subr.mxu0 0.0
    %2126 = vmatpush1.msra.mxu0 0.0
    %2127 = vmatprep.subr.mxu0 0.0
    %2128 = vmatpush1.msra.mxu0 0.0
    %2129 = vmatprep.subr.mxu0 0.0
    %2130 = vmatpush1.msra.mxu0 0.0
    %2131 = vmatprep.subr.mxu0 0.0
    %2132 = vmatpush1.msra.mxu0 0.0
    %2133 = vmatprep.subr.mxu0 0.0
    %2134 = vmatpush1.msra.mxu0 0.0
    %2135 = vmatprep.subr.mxu0 0.0
    %2136 = vmatpush1.msra.mxu0 0.0
    %2137 = vmatprep.subr.mxu0 0.0
    %2138 = vmatpush1.msra.mxu0 0.0
    %2139 = vmatprep.subr.mxu0 0.0
    %2140 = vmatpush1.msra.mxu0 0.0
    %2141 = vmatprep.subr.mxu0 0.0
    %2142 = vmatpush1.msra.mxu0 0.0
    %2143 = vmatprep.subr.mxu0 0.0
    %2144 = vmatpush1.msra.mxu0 0.0
    %2145 = vmatprep.subr.mxu0 0.0
    %2146 = vmatpush1.msra.mxu0 0.0
    %2147 = vmatprep.subr.mxu0 0.0
    %2148 = vmatpush1.msra.mxu0 0.0
    %2149 = vmatprep.subr.mxu0 0.0
    %2150 = vmatpush1.msra.mxu0 0.0
    %2151 = vmatprep.subr.mxu0 0.0
    %2152 = vmatpush1.msra.mxu0 0.0
    %2153 = vmatprep.subr.mxu0 0.0
    %2154 = vmatpush1.msra.mxu0 0.0
    %2155 = vmatprep.subr.mxu0 0.0
    %2156 = vmatpush1.msra.mxu0 0.0
    %2157 = vmatprep.subr.mxu0 0.0
    %2158 = vmatpush1.msra.mxu0 0.0
    %2159 = vmatprep.subr.mxu0 0.0
    %2160 = vmatpush1.msra.mxu0 0.0
    %2161 = vmatprep.subr.mxu0 0.0
    %2162 = vmatpush1.msra.mxu0 0.0
    %2163 = vmatprep.subr.mxu0 0.0
    %2164 = vmatpush1.msra.mxu0 0.0
    %2165 = vmatprep.subr.mxu0 0.0
    %2166 = vmatpush1.msra.mxu0 0.0
    %2167 = vmatprep.subr.mxu0 0.0
    %2168 = vmatpush1.msra.mxu0 0.0
    %2169 = vmatprep.subr.mxu0 0.0
    %2170 = vmatpush1.msra.mxu0 0.0
    %2171 = vmatprep.subr.mxu0 0.0
    %2172 = vmatpush1.msra.mxu0 0.0
    %2173 = vmatprep.subr.mxu0 0.0
    %2174 = vmatpush1.msra.mxu0 0.0
    %2175 = vmatprep.mubr.f32.mxu0 0.0
    %2176 = vmatmul.mubr.f32.gmra.mrb[0].mxu0 %v2107
    %v2177 = vpop.f32.mrb[0].mxu0
    %v2178 = vadd.f32 0.0, %v2177
    %v2179 = vpop.f32.mrb[0].mxu0
    %2180 = vmatprep.mubr.f32.mxu0 0.0
    %2181 = vmatmul.mubr.f32.gmra.mrb[0].mxu0 %v2109
    %v2182 = vpop.f32.mrb[0].mxu0
    %v2183 = vadd.f32 0.0, %v2182
    %v2184 = vpop.f32.mrb[0].mxu0
    %2185 = vdwg.mxu0
    %v2186 = vmul.f32 %v2178, 0.35355338
    %v2187 = vmul.f32 %v2183, 0.35355338
    %vm2188 = vcmask 326656
    %v2189 = vsel %vm2188, %v2186, -inf
    %2190 = vmax.xlane.f32.xlu0 %v2189
    %v2191 = vpop.xlane.xlu0 %2190
    %vm2192 = vcmask 320512
    %v2193 = vsel %vm2192, %v2187, -inf
    %2194 = vmax.xlane.f32.xlu0 %v2193
    %v2195 = vpop.xlane.xlu0 %2194
    %v2196 = vsub.f32 %v2186, %v2191
    %v2197 = vsub.f32 %v2187, %v2195
    %v2198 = vmul.f32 %v2196, 1.442695
    %v2199 = vpow.pop %v2198
    %v2200 = vmul.f32 %v2197, 1.442695
    %v2201 = vpow.pop %v2200
    %v2203 = vsel %vm2188, %v2199, 0
    %v2206 = vsel %vm2188, %v2201, 0
    %2208 = vmatprep.subr.mxu0 0.0
    %2209 = vmatpush1.msra.mxu0 %v1870
    %2210 = vmatprep.subr.mxu0 0.0
    %2211 = vmatpush1.msra.mxu0 %v1871
    %2212 = vmatprep.subr.mxu0 0.0
    %2213 = vmatpush1.msra.mxu0 %v1872
    %2214 = vmatprep.subr.mxu0 0.0
    %2215 = vmatpush1.msra.mxu0 %v1873
    %2216 = vmatprep.subr.mxu0 0.0
    %2217 = vmatpush1.msra.mxu0 %v1874
    %2218 = vmatprep.subr.mxu0 0.0
    %2219 = vmatpush1.msra.mxu0 0.0
    %2220 = vmatprep.subr.mxu0 0.0
    %2221 = vmatpush1.msra.mxu0 0.0
    %2222 = vmatprep.subr.mxu0 0.0
    %2223 = vmatpush1.msra.mxu0 0.0
    %2224 = vmatprep.subr.mxu0 0.0
    %2225 = vmatpush1.msra.mxu0 0.0
    %2226 = vmatprep.subr.mxu0 0.0
    %2227 = vmatpush1.msra.mxu0 0.0
    %2228 = vmatprep.subr.mxu0 0.0
    %2229 = vmatpush1.msra.mxu0 0.0
    %2230 = vmatprep.subr.mxu0 0.0
    %2231 = vmatpush1.msra.mxu0 0.0
    %2232 = vmatprep.subr.mxu0 0.0
    %2233 = vmatpush1.msra.mxu0 0.0
    %2234 = vmatprep.subr.mxu0 0.0
    %2235 = vmatpush1.msra.mxu0 0.0
    %2236 = vmatprep.subr.mxu0 0.0
    %2237 = vmatpush1.msra.mxu0 0.0
    %2238 = vmatprep.subr.mxu0 0.0
    %2239 = vmatpush1.msra.mxu0 0.0
    %2240 = vmatprep.subr.mxu0 0.0
    %2241 = vmatpush1.msra.mxu0 0.0
    %2242 = vmatprep.subr.mxu0 0.0
    %2243 = vmatpush1.msra.mxu0 0.0
    %2244 = vmatprep.subr.mxu0 0.0
    %2245 = vmatpush1.msra.mxu0 0.0
    %2246 = vmatprep.subr.mxu0 0.0
    %2247 = vmatpush1.msra.mxu0 0.0
    %2248 = vmatprep.subr.mxu0 0.0
    %2249 = vmatpush1.msra.mxu0 0.0
    %2250 = vmatprep.subr.mxu0 0.0
    %2251 = vmatpush1.msra.mxu0 0.0
    %2252 = vmatprep.subr.mxu0 0.0
    %2253 = vmatpush1.msra.mxu0 0.0
    %2254 = vmatprep.subr.mxu0 0.0
    %2255 = vmatpush1.msra.mxu0 0.0
    %2256 = vmatprep.subr.mxu0 0.0
    %2257 = vmatpush1.msra.mxu0 0.0
    %2258 = vmatprep.subr.mxu0 0.0
    %2259 = vmatpush1.msra.mxu0 0.0
    %2260 = vmatprep.subr.mxu0 0.0
    %2261 = vmatpush1.msra.mxu0 0.0
    %2262 = vmatprep.subr.mxu0 0.0
    %2263 = vmatpush1.msra.mxu0 0.0
    %2264 = vmatprep.subr.mxu0 0.0
    %2265 = vmatpush1.msra.mxu0 0.0
    %2266 = vmatprep.subr.mxu0 0.0
    %2267 = vmatpush1.msra.mxu0 0.0
    %2268 = vmatprep.subr.mxu0 0.0
    %2269 = vmatpush1.msra.mxu0 0.0
    %2270 = vmatprep.subr.mxu0 0.0
    %2271 = vmatpush1.msra.mxu0 0.0
    %2272 = vmatprep.mubr.f32.mxu0 0.0
    %2273 = vmatmul.mubr.f32.gmra.mrb[0].mxu0 %v2203
    %v2274 = vpop.f32.mrb[0].mxu0
    %v2275 = vadd.f32 0.0, %v2274
    %v2276 = vpop.f32.mrb[0].mxu0
    %2277 = vmatprep.mubr.f32.mxu0 0.0
    %2278 = vmatmul.mubr.f32.gmra.mrb[0].mxu0 %v2206
    %v2279 = vpop.f32.mrb[0].mxu0
    %v2280 = vadd.f32 0.0, %v2279
    %v2281 = vpop.f32.mrb[0].mxu0
    %2282 = vdwg.mxu0
    %v2283 = vmax.f32 %v2275, 1e-30
    %v2284 = vmax.f32 %v2280, 1e-30
    %v2285 = vrcp.pop %v2283
    %v2286 = vmul.f32 %v2199, %v2285
    %v2287 = vrcp.pop %v2284
    %v2288 = vmul.f32 %v2201, %v2287
    %2294 = vrot.lane.b32.xlu0 %v2102, 64
    %v2295 = vpop.permute.xlu0 %2294
    %2296 = vrot.lane.b32.xlu0 %v2103, 64
    %v2297 = vpop.permute.xlu0 %2296
    %2298 = vrot.lane.b32.xlu0 %v2104, 64
    %v2299 = vpop.permute.xlu0 %2298
    %2300 = vrot.lane.b32.xlu0 %v2105, 64
    %v2301 = vpop.permute.xlu0 %2300
    %2302 = vrot.lane.b32.xlu0 %v2106, 64
    %v2303 = vpop.permute.xlu0 %2302
    %v2310 = vsel %vm2188, %v2286, 0
    %v2313 = vsel %vm2188, %v2288, 0
    %2315 = vmatprep.subr.mxu0 0.0
    %2316 = vmatpush1.msra.mxu0 %v2295
    %2317 = vmatprep.subr.mxu0 0.0
    %2318 = vmatpush1.msra.mxu0 %v2297
    %2319 = vmatprep.subr.mxu0 0.0
    %2320 = vmatpush1.msra.mxu0 %v2299
    %2321 = vmatprep.subr.mxu0 0.0
    %2322 = vmatpush1.msra.mxu0 %v2301
    %2323 = vmatprep.subr.mxu0 0.0
    %2324 = vmatpush1.msra.mxu0 %v2303
    %2325 = vmatprep.subr.mxu0 0.0
    %2326 = vmatpush1.msra.mxu0 0.0
    %2327 = vmatprep.subr.mxu0 0.0
    %2328 = vmatpush1.msra.mxu0 0.0
    %2329 = vmatprep.subr.mxu0 0.0
    %2330 = vmatpush1.msra.mxu0 0.0
    %2331 = vmatprep.subr.mxu0 0.0
    %2332 = vmatpush1.msra.mxu0 0.0
    %2333 = vmatprep.subr.mxu0 0.0
    %2334 = vmatpush1.msra.mxu0 0.0
    %2335 = vmatprep.subr.mxu0 0.0
    %2336 = vmatpush1.msra.mxu0 0.0
    %2337 = vmatprep.subr.mxu0 0.0
    %2338 = vmatpush1.msra.mxu0 0.0
    %2339 = vmatprep.subr.mxu0 0.0
    %2340 = vmatpush1.msra.mxu0 0.0
    %2341 = vmatprep.subr.mxu0 0.0
    %2342 = vmatpush1.msra.mxu0 0.0
    %2343 = vmatprep.subr.mxu0 0.0
    %2344 = vmatpush1.msra.mxu0 0.0
    %2345 = vmatprep.subr.mxu0 0.0
    %2346 = vmatpush1.msra.mxu0 0.0
    %2347 = vmatprep.subr.mxu0 0.0
    %2348 = vmatpush1.msra.mxu0 0.0
    %2349 = vmatprep.subr.mxu0 0.0
    %2350 = vmatpush1.msra.mxu0 0.0
    %2351 = vmatprep.subr.mxu0 0.0
    %2352 = vmatpush1.msra.mxu0 0.0
    %2353 = vmatprep.subr.mxu0 0.0
    %2354 = vmatpush1.msra.mxu0 0.0
    %2355 = vmatprep.subr.mxu0 0.0
    %2356 = vmatpush1.msra.mxu0 0.0
    %2357 = vmatprep.subr.mxu0 0.0
    %2358 = vmatpush1.msra.mxu0 0.0
    %2359 = vmatprep.subr.mxu0 0.0
    %2360 = vmatpush1.msra.mxu0 0.0
    %2361 = vmatprep.subr.mxu0 0.0
    %2362 = vmatpush1.msra.mxu0 0.0
    %2363 = vmatprep.subr.mxu0 0.0
    %2364 = vmatpush1.msra.mxu0 0.0
    %2365 = vmatprep.subr.mxu0 0.0
    %2366 = vmatpush1.msra.mxu0 0.0
    %2367 = vmatprep.subr.mxu0 0.0
    %2368 = vmatpush1.msra.mxu0 0.0
    %2369 = vmatprep.subr.mxu0 0.0
    %2370 = vmatpush1.msra.mxu0 0.0
    %2371 = vmatprep.subr.mxu0 0.0
    %2372 = vmatpush1.msra.mxu0 0.0
    %2373 = vmatprep.subr.mxu0 0.0
    %2374 = vmatpush1.msra.mxu0 0.0
    %2375 = vmatprep.subr.mxu0 0.0
    %2376 = vmatpush1.msra.mxu0 0.0
    %2377 = vmatprep.subr.mxu0 0.0
    %2378 = vmatpush1.msra.mxu0 0.0
    %2379 = vmatprep.mubr.f32.mxu0 0.0
    %2380 = vmatmul.mubr.f32.gmra.mrb[0].mxu0 %v2310
    %v2381 = vpop.f32.mrb[0].mxu0
    %v2382 = vadd.f32 0.0, %v2381
    %v2383 = vpop.f32.mrb[0].mxu0
    %2384 = vmatprep.mubr.f32.mxu0 0.0
    %2385 = vmatmul.mubr.f32.gmra.mrb[0].mxu0 %v2313
    %v2386 = vpop.f32.mrb[0].mxu0
    %v2387 = vadd.f32 0.0, %v2386
    %v2388 = vpop.f32.mrb[0].mxu0
    %2389 = vdwg.mxu0
    %s2390 = scalar_lea.vmem [#allocation2], 160
    %v2391 = vld [vmem:[%s2390] sm:$0xff]
    %v2392 = vld [vmem:[%s2390 + $0x8] sm:$0xff]
    %v2393 = vld [vmem:[%s2390 + $0x10] sm:$0xff]
    %v2394 = vld [vmem:[%s2390 + $0x18] sm:$0xff]
    %v2395 = vld [vmem:[%s6 + $0xa] sm:$0x1]
    %v2396 = vlaneseq
    %v2397 = vshrl.u32 %v2396, 7
    %v2398 = vsub.s32 0, %v2397
    %v2399 = vrot.slane %v2395, %v2398
    %v2401 = vsel %vm233, %v2382, 0
    %v2404 = vsel %vm233, %v2387, 0
    %2406 = vmatprep.subr.mxu0 0.0
    %2407 = vmatpush1.msra.mxu0 %v2391
    %2408 = vmatprep.subr.mxu0 0.0
    %2409 = vmatpush1.msra.mxu0 %v2392
    %2410 = vmatprep.subr.mxu0 0.0
    %2411 = vmatpush1.msra.mxu0 %v2393
    %2412 = vmatprep.subr.mxu0 0.0
    %2413 = vmatpush1.msra.mxu0 %v2394
    %2414 = vmatprep.subr.mxu0 0.0
    %2415 = vmatpush1.msra.mxu0 0.0
    %2416 = vmatprep.subr.mxu0 0.0
    %2417 = vmatpush1.msra.mxu0 0.0
    %2418 = vmatprep.subr.mxu0 0.0
    %2419 = vmatpush1.msra.mxu0 0.0
    %2420 = vmatprep.subr.mxu0 0.0
    %2421 = vmatpush1.msra.mxu0 0.0
    %2422 = vmatprep.subr.mxu0 0.0
    %2423 = vmatpush1.msra.mxu0 0.0
    %2424 = vmatprep.subr.mxu0 0.0
    %2425 = vmatpush1.msra.mxu0 0.0
    %2426 = vmatprep.subr.mxu0 0.0
    %2427 = vmatpush1.msra.mxu0 0.0
    %2428 = vmatprep.subr.mxu0 0.0
    %2429 = vmatpush1.msra.mxu0 0.0
    %2430 = vmatprep.subr.mxu0 0.0
    %2431 = vmatpush1.msra.mxu0 0.0
    %2432 = vmatprep.subr.mxu0 0.0
    %2433 = vmatpush1.msra.mxu0 0.0
    %2434 = vmatprep.subr.mxu0 0.0
    %2435 = vmatpush1.msra.mxu0 0.0
    %2436 = vmatprep.subr.mxu0 0.0
    %2437 = vmatpush1.msra.mxu0 0.0
    %2438 = vmatprep.subr.mxu0 0.0
    %2439 = vmatpush1.msra.mxu0 0.0
    %2440 = vmatprep.subr.mxu0 0.0
    %2441 = vmatpush1.msra.mxu0 0.0
    %2442 = vmatprep.subr.mxu0 0.0
    %2443 = vmatpush1.msra.mxu0 0.0
    %2444 = vmatprep.subr.mxu0 0.0
    %2445 = vmatpush1.msra.mxu0 0.0
    %2446 = vmatprep.subr.mxu0 0.0
    %2447 = vmatpush1.msra.mxu0 0.0
    %2448 = vmatprep.subr.mxu0 0.0
    %2449 = vmatpush1.msra.mxu0 0.0
    %2450 = vmatprep.subr.mxu0 0.0
    %2451 = vmatpush1.msra.mxu0 0.0
    %2452 = vmatprep.subr.mxu0 0.0
    %2453 = vmatpush1.msra.mxu0 0.0
    %2454 = vmatprep.subr.mxu0 0.0
    %2455 = vmatpush1.msra.mxu0 0.0
    %2456 = vmatprep.subr.mxu0 0.0
    %2457 = vmatpush1.msra.mxu0 0.0
    %2458 = vmatprep.subr.mxu0 0.0
    %2459 = vmatpush1.msra.mxu0 0.0
    %2460 = vmatprep.subr.mxu0 0.0
    %2461 = vmatpush1.msra.mxu0 0.0
    %2462 = vmatprep.subr.mxu0 0.0
    %2463 = vmatpush1.msra.mxu0 0.0
    %2464 = vmatprep.subr.mxu0 0.0
    %2465 = vmatpush1.msra.mxu0 0.0
    %2466 = vmatprep.subr.mxu0 0.0
    %2467 = vmatpush1.msra.mxu0 0.0
    %2468 = vmatprep.subr.mxu0 0.0
    %2469 = vmatpush1.msra.mxu0 0.0
    %2470 = vmatprep.mubr.f32.mxu0 0.0
    %2471 = vmatmul.mubr.f32.gmra.mrb[0].mxu0 %v2401
    %v2472 = vpop.f32.mrb[0].mxu0
    %v2473 = vadd.f32 %v2399, %v2472
    %v2474 = vpop.f32.mrb[0].mxu0
    %2475 = vmatprep.mubr.f32.mxu0 0.0
    %2476 = vmatmul.mubr.f32.gmra.mrb[0].mxu0 %v2404
    %v2477 = vpop.f32.mrb[0].mxu0
    %v2478 = vadd.f32 %v2399, %v2477
    %v2479 = vpop.f32.mrb[0].mxu0
    %2480 = vdwg.mxu0
    %v2481 = vadd.f32 %v2473, %v1700
    %v2482 = vadd.f32 %v2478, %v1701
    %v2483 = vld [vmem:[%s6 + $0xb] sm:$0x1]
    %v2484 = vld [vmem:[%s6 + $0xc] sm:$0x1]
    %v2485 = vsel %vm233, %v2481, 0.0
    %2486 = vadd.xlane.f32.xlu0 %v2485
    %v2487 = vpop.xlane.xlu0 %2486
    %v2488 = vsel %vm1583, %v2482, 0.0
    %2489 = vadd.xlane.f32.xlu0 %v2488
    %v2490 = vpop.xlane.xlu0 %2489
    %v2491 = vmul.f32 %v2487, %v1138
    %v2492 = vmul.f32 %v2490, %v1138
    %v2493 = vsub.f32 %v2481, %v2491
    %v2494 = vsub.f32 %v2482, %v2492
    %v2495 = vmul.f32 %v2493, %v2493
    %v2496 = vmul.f32 %v2494, %v2494
    %v2497 = vsel %vm233, %v2495, 0.0
    %2498 = vadd.xlane.f32.xlu0 %v2497
    %v2499 = vpop.xlane.xlu0 %2498
    %v2500 = vsel %vm1583, %v2496, 0.0
    %2501 = vadd.xlane.f32.xlu0 %v2500
    %v2502 = vpop.xlane.xlu0 %2501
    %v2503 = vmul.f32 %v2499, %v1138
    %v2504 = vmul.f32 %v2502, %v1138
    %v2505 = vadd.f32 %v2503, 1e-06
    %v2506 = vadd.f32 %v2504, 1e-06
    %v2507 = vrsqrt.pop %v2505
    %v2508 = vrsqrt.pop %v2506
    %v2509 = vmul.f32 %v2493, %v2507
    %v2510 = vmul.f32 %v2494, %v2508
    %v2511 = vlaneseq
    %v2512 = vshrl.u32 %v2511, 7
    %v2513 = vsub.s32 0, %v2512
    %v2514 = vrot.slane %v2483, %v2513
    %v2515 = vmul.f32 %v2509, %v2514
    %v2516 = vmul.f32 %v2510, %v2514
    %v2517 = vlaneseq
    %v2518 = vshrl.u32 %v2517, 7
    %v2519 = vsub.s32 0, %v2518
    %v2520 = vrot.slane %v2484, %v2519
    %v2521 = vadd.f32 %v2515, %v2520
    %v2522 = vadd.f32 %v2516, %v2520
    %s2523 = scalar_lea.vmem [#allocation2], 192
    %v2524 = vld [vmem:[%s2523] sm:$0xff]
    %v2525 = vld [vmem:[%s2523 + $0x8] sm:$0xff]
    %v2526 = vld [vmem:[%s2523 + $0x10] sm:$0xff]
    %v2527 = vld [vmem:[%s2523 + $0x18] sm:$0xff]
    %v2528 = vld [vmem:[%s6 + $0xd] sm:$0x1]
    %v2529 = vlaneseq
    %v2530 = vshrl.u32 %v2529, 7
    %v2531 = vsub.s32 0, %v2530
    %v2532 = vrot.slane %v2528, %v2531
    %v2534 = vsel %vm233, %v2521, 0
    %v2537 = vsel %vm233, %v2522, 0
    %2539 = vmatprep.subr.mxu0 0.0
    %2540 = vmatpush1.msra.mxu0 %v2524
    %2541 = vmatprep.subr.mxu0 0.0
    %2542 = vmatpush1.msra.mxu0 %v2525
    %2543 = vmatprep.subr.mxu0 0.0
    %2544 = vmatpush1.msra.mxu0 %v2526
    %2545 = vmatprep.subr.mxu0 0.0
    %2546 = vmatpush1.msra.mxu0 %v2527
    %2547 = vmatprep.subr.mxu0 0.0
    %2548 = vmatpush1.msra.mxu0 0.0
    %2549 = vmatprep.subr.mxu0 0.0
    %2550 = vmatpush1.msra.mxu0 0.0
    %2551 = vmatprep.subr.mxu0 0.0
    %2552 = vmatpush1.msra.mxu0 0.0
    %2553 = vmatprep.subr.mxu0 0.0
    %2554 = vmatpush1.msra.mxu0 0.0
    %2555 = vmatprep.subr.mxu0 0.0
    %2556 = vmatpush1.msra.mxu0 0.0
    %2557 = vmatprep.subr.mxu0 0.0
    %2558 = vmatpush1.msra.mxu0 0.0
    %2559 = vmatprep.subr.mxu0 0.0
    %2560 = vmatpush1.msra.mxu0 0.0
    %2561 = vmatprep.subr.mxu0 0.0
    %2562 = vmatpush1.msra.mxu0 0.0
    %2563 = vmatprep.subr.mxu0 0.0
    %2564 = vmatpush1.msra.mxu0 0.0
    %2565 = vmatprep.subr.mxu0 0.0
    %2566 = vmatpush1.msra.mxu0 0.0
    %2567 = vmatprep.subr.mxu0 0.0
    %2568 = vmatpush1.msra.mxu0 0.0
    %2569 = vmatprep.subr.mxu0 0.0
    %2570 = vmatpush1.msra.mxu0 0.0
    %2571 = vmatprep.subr.mxu0 0.0
    %2572 = vmatpush1.msra.mxu0 0.0
    %2573 = vmatprep.subr.mxu0 0.0
    %2574 = vmatpush1.msra.mxu0 0.0
    %2575 = vmatprep.subr.mxu0 0.0
    %2576 = vmatpush1.msra.mxu0 0.0
    %2577 = vmatprep.subr.mxu0 0.0
    %2578 = vmatpush1.msra.mxu0 0.0
    %2579 = vmatprep.subr.mxu0 0.0
    %2580 = vmatpush1.msra.mxu0 0.0
    %2581 = vmatprep.subr.mxu0 0.0
    %2582 = vmatpush1.msra.mxu0 0.0
    %2583 = vmatprep.subr.mxu0 0.0
    %2584 = vmatpush1.msra.mxu0 0.0
    %2585 = vmatprep.subr.mxu0 0.0
    %2586 = vmatpush1.msra.mxu0 0.0
    %2587 = vmatprep.subr.mxu0 0.0
    %2588 = vmatpush1.msra.mxu0 0.0
    %2589 = vmatprep.subr.mxu0 0.0
    %2590 = vmatpush1.msra.mxu0 0.0
    %2591 = vmatprep.subr.mxu0 0.0
    %2592 = vmatpush1.msra.mxu0 0.0
    %2593 = vmatprep.subr.mxu0 0.0
    %2594 = vmatpush1.msra.mxu0 0.0
    %2595 = vmatprep.subr.mxu0 0.0
    %2596 = vmatpush1.msra.mxu0 0.0
    %2597 = vmatprep.subr.mxu0 0.0
    %2598 = vmatpush1.msra.mxu0 0.0
    %2599 = vmatprep.subr.mxu0 0.0
    %2600 = vmatpush1.msra.mxu0 0.0
    %2601 = vmatprep.subr.mxu0 0.0
    %2602 = vmatpush1.msra.mxu0 0.0
    %2603 = vmatprep.mubr.f32.mxu0 0.0
    %2604 = vmatmul.mubr.f32.gmra.mrb[0].mxu0 %v2534
    %v2605 = vpop.f32.mrb[0].mxu0
    %v2606 = vadd.f32 %v2532, %v2605
    %v2607 = vpop.f32.mrb[0].mxu0
    %2608 = vmatprep.mubr.f32.mxu0 0.0
    %2609 = vmatmul.mubr.f32.gmra.mrb[0].mxu0 %v2537
    %v2610 = vpop.f32.mrb[0].mxu0
    %v2611 = vadd.f32 %v2532, %v2610
    %v2612 = vpop.f32.mrb[0].mxu0
    %2613 = vdwg.mxu0
    %s2614 = scalar_lea.vmem [#allocation2], 224
    %v2615 = vld [vmem:[%s2614] sm:$0xff]
    %v2616 = vld [vmem:[%s2614 + $0x8] sm:$0xff]
    %v2617 = vld [vmem:[%s2614 + $0x10] sm:$0xff]
    %v2618 = vld [vmem:[%s2614 + $0x18] sm:$0xff]
    %v2619 = vld [vmem:[%s6 + $0xe] sm:$0x1]
    %v2620 = vlaneseq
    %v2621 = vshrl.u32 %v2620, 7
    %v2622 = vsub.s32 0, %v2621
    %v2623 = vrot.slane %v2619, %v2622
    %v2625 = vsel %vm233, %v1399, 0
    %v2628 = vsel %vm233, %v1400, 0
    %2630 = vmatprep.subr.mxu0 0.0
    %2631 = vmatpush1.msra.mxu0 %v2615
    %2632 = vmatprep.subr.mxu0 0.0
    %2633 = vmatpush1.msra.mxu0 %v2616
    %2634 = vmatprep.subr.mxu0 0.0
    %2635 = vmatpush1.msra.mxu0 %v2617
    %2636 = vmatprep.subr.mxu0 0.0
    %2637 = vmatpush1.msra.mxu0 %v2618
    %2638 = vmatprep.subr.mxu0 0.0
    %2639 = vmatpush1.msra.mxu0 0.0
    %2640 = vmatprep.subr.mxu0 0.0
    %2641 = vmatpush1.msra.mxu0 0.0
    %2642 = vmatprep.subr.mxu0 0.0
    %2643 = vmatpush1.msra.mxu0 0.0
    %2644 = vmatprep.subr.mxu0 0.0
    %2645 = vmatpush1.msra.mxu0 0.0
    %2646 = vmatprep.subr.mxu0 0.0
    %2647 = vmatpush1.msra.mxu0 0.0
    %2648 = vmatprep.subr.mxu0 0.0
    %2649 = vmatpush1.msra.mxu0 0.0
    %2650 = vmatprep.subr.mxu0 0.0
    %2651 = vmatpush1.msra.mxu0 0.0
    %2652 = vmatprep.subr.mxu0 0.0
    %2653 = vmatpush1.msra.mxu0 0.0
    %2654 = vmatprep.subr.mxu0 0.0
    %2655 = vmatpush1.msra.mxu0 0.0
    %2656 = vmatprep.subr.mxu0 0.0
    %2657 = vmatpush1.msra.mxu0 0.0
    %2658 = vmatprep.subr.mxu0 0.0
    %2659 = vmatpush1.msra.mxu0 0.0
    %2660 = vmatprep.subr.mxu0 0.0
    %2661 = vmatpush1.msra.mxu0 0.0
    %2662 = vmatprep.subr.mxu0 0.0
    %2663 = vmatpush1.msra.mxu0 0.0
    %2664 = vmatprep.subr.mxu0 0.0
    %2665 = vmatpush1.msra.mxu0 0.0
    %2666 = vmatprep.subr.mxu0 0.0
    %2667 = vmatpush1.msra.mxu0 0.0
    %2668 = vmatprep.subr.mxu0 0.0
    %2669 = vmatpush1.msra.mxu0 0.0
    %2670 = vmatprep.subr.mxu0 0.0
    %2671 = vmatpush1.msra.mxu0 0.0
    %2672 = vmatprep.subr.mxu0 0.0
    %2673 = vmatpush1.msra.mxu0 0.0
    %2674 = vmatprep.subr.mxu0 0.0
    %2675 = vmatpush1.msra.mxu0 0.0
    %2676 = vmatprep.subr.mxu0 0.0
    %2677 = vmatpush1.msra.mxu0 0.0
    %2678 = vmatprep.subr.mxu0 0.0
    %2679 = vmatpush1.msra.mxu0 0.0
    %2680 = vmatprep.subr.mxu0 0.0
    %2681 = vmatpush1.msra.mxu0 0.0
    %2682 = vmatprep.subr.mxu0 0.0
    %2683 = vmatpush1.msra.mxu0 0.0
    %2684 = vmatprep.subr.mxu0 0.0
    %2685 = vmatpush1.msra.mxu0 0.0
    %2686 = vmatprep.subr.mxu0 0.0
    %2687 = vmatpush1.msra.mxu0 0.0
    %2688 = vmatprep.subr.mxu0 0.0
    %2689 = vmatpush1.msra.mxu0 0.0
    %2690 = vmatprep.subr.mxu0 0.0
    %2691 = vmatpush1.msra.mxu0 0.0
    %2692 = vmatprep.subr.mxu0 0.0
    %2693 = vmatpush1.msra.mxu0 0.0
    %2694 = vmatprep.mubr.f32.mxu0 0.0
    %2695 = vmatmul.mubr.f32.gmra.mrb[0].mxu0 %v2625
    %v2696 = vpop.f32.mrb[0].mxu0
    %v2697 = vadd.f32 %v2623, %v2696
    %v2698 = vpop.f32.mrb[0].mxu0
    %2699 = vmatprep.mubr.f32.mxu0 0.0
    %2700 = vmatmul.mubr.f32.gmra.mrb[0].mxu0 %v2628
    %v2701 = vpop.f32.mrb[0].mxu0
    %v2702 = vadd.f32 %v2623, %v2701
    %v2703 = vpop.f32.mrb[0].mxu0
    %2704 = vdwg.mxu0
    %vm2705 = vcmp.eq.s32.totalorder %v168, %v68
    %vm2706 = vcmp.eq.s32.totalorder %v169, %v68
    %v2707 = vsel %vm2705, 1, 0
    %v2708 = vsel %vm2706, 1, 0
    %v2709 = vcvt.s32.f32 %v2707
    %v2710 = vcvt.s32.f32 %v2708
    %2711 = vxpose.xlu0.b32.start [1/16] %v2697, 128
    %2712 = vxpose.xlu0.b32.cont [2/16] 0.0, 128
    %2713 = vxpose.xlu0.b32.cont [3/16] 0.0, 128
    %2714 = vxpose.xlu0.b32.cont [4/16] 0.0, 128
    %2715 = vxpose.xlu0.b32.cont [5/16] 0.0, 128
    %2716 = vxpose.xlu0.b32.cont [6/16] 0.0, 128
    %2717 = vxpose.xlu0.b32.cont [7/16] 0.0, 128
    %2718 = vxpose.xlu0.b32.cont [8/16] 0.0, 128
    %2719 = vxpose.xlu0.b32.cont [9/16] 0.0, 128
    %2720 = vxpose.xlu0.b32.cont [10/16] 0.0, 128
    %2721 = vxpose.xlu0.b32.cont [11/16] 0.0, 128
    %2722 = vxpose.xlu0.b32.cont [12/16] 0.0, 128
    %2723 = vxpose.xlu0.b32.cont [13/16] 0.0, 128
    %2724 = vxpose.xlu0.b32.cont [14/16] 0.0, 128
    %2725 = vxpose.xlu0.b32.cont [15/16] 0.0, 128
    %2726 = vxpose.xlu0.b32.end [16/16] 0.0, 128
    %v2727 = vpop.trf.xlu0
    %v2728 = vpop.trf.xlu0
    %v2729 = vpop.trf.xlu0
    %v2730 = vpop.trf.xlu0
    %v2731 = vpop.trf.xlu0
    %v2732 = vpop.trf.xlu0
    %v2733 = vpop.trf.xlu0
    %v2734 = vpop.trf.xlu0
    %v2735 = vpop.trf.xlu0
    %v2736 = vpop.trf.xlu0
    %v2737 = vpop.trf.xlu0
    %v2738 = vpop.trf.xlu0
    %v2739 = vpop.trf.xlu0
    %v2740 = vpop.trf.xlu0
    %v2741 = vpop.trf.xlu0
    %v2742 = vpop.trf.xlu0
    %2747 = vrot.lane.b32.xlu0 %v2727, 8
    %v2748 = vpop.permute.xlu0 %2747
    %2749 = vrot.lane.b32.xlu0 %v2728, 8
    %v2750 = vpop.permute.xlu0 %2749
    %2751 = vrot.lane.b32.xlu0 %v2729, 8
    %v2752 = vpop.permute.xlu0 %2751
    %2753 = vrot.lane.b32.xlu0 %v2730, 8
    %v2754 = vpop.permute.xlu0 %2753
    %2759 = vrot.lane.b32.xlu0 %v2727, 16
    %v2760 = vpop.permute.xlu0 %2759
    %2761 = vrot.lane.b32.xlu0 %v2728, 16
    %v2762 = vpop.permute.xlu0 %2761
    %2763 = vrot.lane.b32.xlu0 %v2729, 16
    %v2764 = vpop.permute.xlu0 %2763
    %2765 = vrot.lane.b32.xlu0 %v2730, 16
    %v2766 = vpop.permute.xlu0 %2765
    %2771 = vrot.lane.b32.xlu0 %v2727, 24
    %v2772 = vpop.permute.xlu0 %2771
    %2773 = vrot.lane.b32.xlu0 %v2728, 24
    %v2774 = vpop.permute.xlu0 %2773
    %2775 = vrot.lane.b32.xlu0 %v2729, 24
    %v2776 = vpop.permute.xlu0 %2775
    %2777 = vrot.lane.b32.xlu0 %v2730, 24
    %v2778 = vpop.permute.xlu0 %2777
    %v2783 = vsel %vm391, %v2727, %v2748
    %v2784 = vsel %vm391, %v2728, %v2750
    %v2785 = vsel %vm391, %v2729, %v2752
    %v2786 = vsel %vm391, %v2730, %v2754
    %v2787 = vsel %vm396, %v2783, %v2760
    %v2788 = vsel %vm396, %v2784, %v2762
    %v2789 = vsel %vm396, %v2785, %v2764
    %v2790 = vsel %vm396, %v2786, %v2766
    %v2791 = vsel %vm401, %v2787, %v2772
    %v2792 = vsel %vm401, %v2788, %v2774
    %v2793 = vsel %vm401, %v2789, %v2776
    %v2794 = vsel %vm401, %v2790, %v2778
    %v2795 = vmul.f32 %v2791, %v220
    %v2796 = vmul.f32 %v2792, %v221
    %v2797 = vmul.f32 %v2793, %v222
    %v2798 = vmul.f32 %v2794, %v223
    %2799 = vrot.lane.b32.xlu0 %v220, 32
    %v2800 = vpop.permute.xlu0 %2799
    %2801 = vrot.lane.b32.xlu0 %v221, 32
    %v2802 = vpop.permute.xlu0 %2801
    %2803 = vrot.lane.b32.xlu0 %v222, 32
    %v2804 = vpop.permute.xlu0 %2803
    %2805 = vrot.lane.b32.xlu0 %v223, 32
    %v2806 = vpop.permute.xlu0 %2805
    %v2811 = vmul.f32 %v2697, %v2800
    %v2812 = vmul.f32 %v2697, %v2802
    %v2813 = vmul.f32 %v2697, %v2804
    %v2814 = vmul.f32 %v2697, %v2806
    %v2816 = vsel %vm233, %v2606, 0
    %v2819 = vsel %vm233, %v2611, 0
    %2821 = vmatprep.subr.mxu0 0.0
    %2822 = vmatpush1.msra.mxu0 %v2795
    %2823 = vmatprep.subr.mxu0 0.0
    %2824 = vmatpush1.msra.mxu0 %v2796
    %2825 = vmatprep.subr.mxu0 0.0
    %2826 = vmatpush1.msra.mxu0 %v2797
    %2827 = vmatprep.subr.mxu0 0.0
    %2828 = vmatpush1.msra.mxu0 %v2798
    %2829 = vmatprep.subr.mxu0 0.0
    %2830 = vmatpush1.msra.mxu0 0.0
    %2831 = vmatprep.subr.mxu0 0.0
    %2832 = vmatpush1.msra.mxu0 0.0
    %2833 = vmatprep.subr.mxu0 0.0
    %2834 = vmatpush1.msra.mxu0 0.0
    %2835 = vmatprep.subr.mxu0 0.0
    %2836 = vmatpush1.msra.mxu0 0.0
    %2837 = vmatprep.subr.mxu0 0.0
    %2838 = vmatpush1.msra.mxu0 0.0
    %2839 = vmatprep.subr.mxu0 0.0
    %2840 = vmatpush1.msra.mxu0 0.0
    %2841 = vmatprep.subr.mxu0 0.0
    %2842 = vmatpush1.msra.mxu0 0.0
    %2843 = vmatprep.subr.mxu0 0.0
    %2844 = vmatpush1.msra.mxu0 0.0
    %2845 = vmatprep.subr.mxu0 0.0
    %2846 = vmatpush1.msra.mxu0 0.0
    %2847 = vmatprep.subr.mxu0 0.0
    %2848 = vmatpush1.msra.mxu0 0.0
    %2849 = vmatprep.subr.mxu0 0.0
    %2850 = vmatpush1.msra.mxu0 0.0
    %2851 = vmatprep.subr.mxu0 0.0
    %2852 = vmatpush1.msra.mxu0 0.0
    %2853 = vmatprep.subr.mxu0 0.0
    %2854 = vmatpush1.msra.mxu0 0.0
    %2855 = vmatprep.subr.mxu0 0.0
    %2856 = vmatpush1.msra.mxu0 0.0
    %2857 = vmatprep.subr.mxu0 0.0
    %2858 = vmatpush1.msra.mxu0 0.0
    %2859 = vmatprep.subr.mxu0 0.0
    %2860 = vmatpush1.msra.mxu0 0.0
    %2861 = vmatprep.subr.mxu0 0.0
    %2862 = vmatpush1.msra.mxu0 0.0
    %2863 = vmatprep.subr.mxu0 0.0
    %2864 = vmatpush1.msra.mxu0 0.0
    %2865 = vmatprep.subr.mxu0 0.0
    %2866 = vmatpush1.msra.mxu0 0.0
    %2867 = vmatprep.subr.mxu0 0.0
    %2868 = vmatpush1.msra.mxu0 0.0
    %2869 = vmatprep.subr.mxu0 0.0
    %2870 = vmatpush1.msra.mxu0 0.0
    %2871 = vmatprep.subr.mxu0 0.0
    %2872 = vmatpush1.msra.mxu0 0.0
    %2873 = vmatprep.subr.mxu0 0.0
    %2874 = vmatpush1.msra.mxu0 0.0
    %2875 = vmatprep.subr.mxu0 0.0
    %2876 = vmatpush1.msra.mxu0 0.0
    %2877 = vmatprep.subr.mxu0 0.0
    %2878 = vmatpush1.msra.mxu0 0.0
    %2879 = vmatprep.subr.mxu0 0.0
    %2880 = vmatpush1.msra.mxu0 0.0
    %2881 = vmatprep.subr.mxu0 0.0
    %2882 = vmatpush1.msra.mxu0 0.0
    %2883 = vmatprep.subr.mxu0 0.0
    %2884 = vmatpush1.msra.mxu0 0.0
    %2885 = vmatprep.mubr.f32.mxu0 0.0
    %2886 = vmatmul.mubr.f32.gmra.mrb[0].mxu0 %v2816
    %v2887 = vpop.f32.mrb[0].mxu0
    %v2888 = vadd.f32 0.0, %v2887
    %v2889 = vpop.f32.mrb[0].mxu0
    %2890 = vmatprep.mubr.f32.mxu0 0.0
    %2891 = vmatmul.mubr.f32.gmra.mrb[0].mxu0 %v2819
    %v2892 = vpop.f32.mrb[0].mxu0
    %v2893 = vadd.f32 0.0, %v2892
    %v2894 = vpop.f32.mrb[0].mxu0
    %2895 = vdwg.mxu0
    %v2896 = vmul.f32 %v2888, 0.35355338
    %v2897 = vmul.f32 %v2893, 0.35355338
    %v2898 = vadd.f32 %v2896, %v519
    %v2899 = vadd.f32 %v2897, %v519
    %v2900 = vsel %vm233, %v2898, -inf
    %2901 = vmax.xlane.f32.xlu0 %v2900
    %v2902 = vpop.xlane.xlu0 %2901
    %v2903 = vsel %vm1583, %v2899, -inf
    %2904 = vmax.xlane.f32.xlu0 %v2903
    %v2905 = vpop.xlane.xlu0 %2904
    %v2906 = vsub.f32 %v2898, %v2902
    %v2907 = vsub.f32 %v2899, %v2905
    %v2908 = vmul.f32 %v2906, 1.442695
    %v2909 = vpow.pop %v2908
    %v2910 = vmul.f32 %v2907, 1.442695
    %v2911 = vpow.pop %v2910
    %v2913 = vsel %vm233, %v2909, 0
    %v2916 = vsel %vm233, %v2911, 0
    %2918 = vmatprep.subr.mxu0 0.0
    %2919 = vmatpush1.msra.mxu0 %v220
    %2920 = vmatprep.subr.mxu0 0.0
    %2921 = vmatpush1.msra.mxu0 %v221
    %2922 = vmatprep.subr.mxu0 0.0
    %2923 = vmatpush1.msra.mxu0 %v222
    %2924 = vmatprep.subr.mxu0 0.0
    %2925 = vmatpush1.msra.mxu0 %v223
    %2926 = vmatprep.subr.mxu0 0.0
    %2927 = vmatpush1.msra.mxu0 0.0
    %2928 = vmatprep.subr.mxu0 0.0
    %2929 = vmatpush1.msra.mxu0 0.0
    %2930 = vmatprep.subr.mxu0 0.0
    %2931 = vmatpush1.msra.mxu0 0.0
    %2932 = vmatprep.subr.mxu0 0.0
    %2933 = vmatpush1.msra.mxu0 0.0
    %2934 = vmatprep.subr.mxu0 0.0
    %2935 = vmatpush1.msra.mxu0 0.0
    %2936 = vmatprep.subr.mxu0 0.0
    %2937 = vmatpush1.msra.mxu0 0.0
    %2938 = vmatprep.subr.mxu0 0.0
    %2939 = vmatpush1.msra.mxu0 0.0
    %2940 = vmatprep.subr.mxu0 0.0
    %2941 = vmatpush1.msra.mxu0 0.0
    %2942 = vmatprep.subr.mxu0 0.0
    %2943 = vmatpush1.msra.mxu0 0.0
    %2944 = vmatprep.subr.mxu0 0.0
    %2945 = vmatpush1.msra.mxu0 0.0
    %2946 = vmatprep.subr.mxu0 0.0
    %2947 = vmatpush1.msra.mxu0 0.0
    %2948 = vmatprep.subr.mxu0 0.0
    %2949 = vmatpush1.msra.mxu0 0.0
    %2950 = vmatprep.subr.mxu0 0.0
    %2951 = vmatpush1.msra.mxu0 0.0
    %2952 = vmatprep.subr.mxu0 0.0
    %2953 = vmatpush1.msra.mxu0 0.0
    %2954 = vmatprep.subr.mxu0 0.0
    %2955 = vmatpush1.msra.mxu0 0.0
    %2956 = vmatprep.subr.mxu0 0.0
    %2957 = vmatpush1.msra.mxu0 0.0
    %2958 = vmatprep.subr.mxu0 0.0
    %2959 = vmatpush1.msra.mxu0 0.0
    %2960 = vmatprep.subr.mxu0 0.0
    %2961 = vmatpush1.msra.mxu0 0.0
    %2962 = vmatprep.subr.mxu0 0.0
    %2963 = vmatpush1.msra.mxu0 0.0
    %2964 = vmatprep.subr.mxu0 0.0
    %2965 = vmatpush1.msra.mxu0 0.0
    %2966 = vmatprep.subr.mxu0 0.0
    %2967 = vmatpush1.msra.mxu0 0.0
    %2968 = vmatprep.subr.mxu0 0.0
    %2969 = vmatpush1.msra.mxu0 0.0
    %2970 = vmatprep.subr.mxu0 0.0
    %2971 = vmatpush1.msra.mxu0 0.0
    %2972 = vmatprep.subr.mxu0 0.0
    %2973 = vmatpush1.msra.mxu0 0.0
    %2974 = vmatprep.subr.mxu0 0.0
    %2975 = vmatpush1.msra.mxu0 0.0
    %2976 = vmatprep.subr.mxu0 0.0
    %2977 = vmatpush1.msra.mxu0 0.0
    %2978 = vmatprep.subr.mxu0 0.0
    %2979 = vmatpush1.msra.mxu0 0.0
    %2980 = vmatprep.subr.mxu0 0.0
    %2981 = vmatpush1.msra.mxu0 0.0
    %2982 = vmatprep.mubr.f32.mxu0 0.0
    %2983 = vmatmul.mubr.f32.gmra.mrb[0].mxu0 %v2913
    %v2984 = vpop.f32.mrb[0].mxu0
    %v2985 = vadd.f32 0.0, %v2984
    %v2986 = vpop.f32.mrb[0].mxu0
    %2987 = vmatprep.mubr.f32.mxu0 0.0
    %2988 = vmatmul.mubr.f32.gmra.mrb[0].mxu0 %v2916
    %v2989 = vpop.f32.mrb[0].mxu0
    %v2990 = vadd.f32 0.0, %v2989
    %v2991 = vpop.f32.mrb[0].mxu0
    %2992 = vdwg.mxu0
    %v2993 = vmax.f32 %v2985, 1e-30
    %v2994 = vmax.f32 %v2990, 1e-30
    %v2995 = vrcp.pop %v2993
    %v2996 = vmul.f32 %v2909, %v2995
    %v2997 = vrcp.pop %v2994
    %v2998 = vmul.f32 %v2911, %v2997
    %3003 = vrot.lane.b32.xlu0 %v2811, 96
    %v3004 = vpop.permute.xlu0 %3003
    %3005 = vrot.lane.b32.xlu0 %v2812, 96
    %v3006 = vpop.permute.xlu0 %3005
    %3007 = vrot.lane.b32.xlu0 %v2813, 96
    %v3008 = vpop.permute.xlu0 %3007
    %3009 = vrot.lane.b32.xlu0 %v2814, 96
    %v3010 = vpop.permute.xlu0 %3009
    %v3016 = vsel %vm233, %v2996, 0
    %v3019 = vsel %vm233, %v2998, 0
    %3021 = vmatprep.subr.mxu0 0.0
    %3022 = vmatpush1.msra.mxu0 %v3004
    %3023 = vmatprep.subr.mxu0 0.0
    %3024 = vmatpush1.msra.mxu0 %v3006
    %3025 = vmatprep.subr.mxu0 0.0
    %3026 = vmatpush1.msra.mxu0 %v3008
    %3027 = vmatprep.subr.mxu0 0.0
    %3028 = vmatpush1.msra.mxu0 %v3010
    %3029 = vmatprep.subr.mxu0 0.0
    %3030 = vmatpush1.msra.mxu0 0.0
    %3031 = vmatprep.subr.mxu0 0.0
    %3032 = vmatpush1.msra.mxu0 0.0
    %3033 = vmatprep.subr.mxu0 0.0
    %3034 = vmatpush1.msra.mxu0 0.0
    %3035 = vmatprep.subr.mxu0 0.0
    %3036 = vmatpush1.msra.mxu0 0.0
    %3037 = vmatprep.subr.mxu0 0.0
    %3038 = vmatpush1.msra.mxu0 0.0
    %3039 = vmatprep.subr.mxu0 0.0
    %3040 = vmatpush1.msra.mxu0 0.0
    %3041 = vmatprep.subr.mxu0 0.0
    %3042 = vmatpush1.msra.mxu0 0.0
    %3043 = vmatprep.subr.mxu0 0.0
    %3044 = vmatpush1.msra.mxu0 0.0
    %3045 = vmatprep.subr.mxu0 0.0
    %3046 = vmatpush1.msra.mxu0 0.0
    %3047 = vmatprep.subr.mxu0 0.0
    %3048 = vmatpush1.msra.mxu0 0.0
    %3049 = vmatprep.subr.mxu0 0.0
    %3050 = vmatpush1.msra.mxu0 0.0
    %3051 = vmatprep.subr.mxu0 0.0
    %3052 = vmatpush1.msra.mxu0 0.0
    %3053 = vmatprep.subr.mxu0 0.0
    %3054 = vmatpush1.msra.mxu0 0.0
    %3055 = vmatprep.subr.mxu0 0.0
    %3056 = vmatpush1.msra.mxu0 0.0
    %3057 = vmatprep.subr.mxu0 0.0
    %3058 = vmatpush1.msra.mxu0 0.0
    %3059 = vmatprep.subr.mxu0 0.0
    %3060 = vmatpush1.msra.mxu0 0.0
    %3061 = vmatprep.subr.mxu0 0.0
    %3062 = vmatpush1.msra.mxu0 0.0
    %3063 = vmatprep.subr.mxu0 0.0
    %3064 = vmatpush1.msra.mxu0 0.0
    %3065 = vmatprep.subr.mxu0 0.0
    %3066 = vmatpush1.msra.mxu0 0.0
    %3067 = vmatprep.subr.mxu0 0.0
    %3068 = vmatpush1.msra.mxu0 0.0
    %3069 = vmatprep.subr.mxu0 0.0
    %3070 = vmatpush1.msra.mxu0 0.0
    %3071 = vmatprep.subr.mxu0 0.0
    %3072 = vmatpush1.msra.mxu0 0.0
    %3073 = vmatprep.subr.mxu0 0.0
    %3074 = vmatpush1.msra.mxu0 0.0
    %3075 = vmatprep.subr.mxu0 0.0
    %3076 = vmatpush1.msra.mxu0 0.0
    %3077 = vmatprep.subr.mxu0 0.0
    %3078 = vmatpush1.msra.mxu0 0.0
    %3079 = vmatprep.subr.mxu0 0.0
    %3080 = vmatpush1.msra.mxu0 0.0
    %3081 = vmatprep.subr.mxu0 0.0
    %3082 = vmatpush1.msra.mxu0 0.0
    %3083 = vmatprep.subr.mxu0 0.0
    %3084 = vmatpush1.msra.mxu0 0.0
    %3085 = vmatprep.mubr.f32.mxu0 0.0
    %3086 = vmatmul.mubr.f32.gmra.mrb[0].mxu0 %v3016
    %v3087 = vpop.f32.mrb[0].mxu0
    %v3088 = vadd.f32 0.0, %v3087
    %v3089 = vpop.f32.mrb[0].mxu0
    %3090 = vmatprep.mubr.f32.mxu0 0.0
    %3091 = vmatmul.mubr.f32.gmra.mrb[0].mxu0 %v3019
    %v3092 = vpop.f32.mrb[0].mxu0
    %v3093 = vadd.f32 0.0, %v3092
    %v3094 = vpop.f32.mrb[0].mxu0
    %3095 = vdwg.mxu0
    %s3096 = scalar_lea.vmem [#allocation2], 256
    %v3097 = vld [vmem:[%s3096] sm:$0xff]
    %v3098 = vld [vmem:[%s3096 + $0x8] sm:$0xff]
    %v3099 = vld [vmem:[%s3096 + $0x10] sm:$0xff]
    %v3100 = vld [vmem:[%s3096 + $0x18] sm:$0xff]
    %v3101 = vld [vmem:[%s6 + $0xf] sm:$0x1]
    %v3102 = vlaneseq
    %v3103 = vshrl.u32 %v3102, 7
    %v3104 = vsub.s32 0, %v3103
    %v3105 = vrot.slane %v3101, %v3104
    %v3107 = vsel %vm233, %v3088, 0
    %v3110 = vsel %vm233, %v3093, 0
    %3112 = vmatprep.subr.mxu0 0.0
    %3113 = vmatpush1.msra.mxu0 %v3097
    %3114 = vmatprep.subr.mxu0 0.0
    %3115 = vmatpush1.msra.mxu0 %v3098
    %3116 = vmatprep.subr.mxu0 0.0
    %3117 = vmatpush1.msra.mxu0 %v3099
    %3118 = vmatprep.subr.mxu0 0.0
    %3119 = vmatpush1.msra.mxu0 %v3100
    %3120 = vmatprep.subr.mxu0 0.0
    %3121 = vmatpush1.msra.mxu0 0.0
    %3122 = vmatprep.subr.mxu0 0.0
    %3123 = vmatpush1.msra.mxu0 0.0
    %3124 = vmatprep.subr.mxu0 0.0
    %3125 = vmatpush1.msra.mxu0 0.0
    %3126 = vmatprep.subr.mxu0 0.0
    %3127 = vmatpush1.msra.mxu0 0.0
    %3128 = vmatprep.subr.mxu0 0.0
    %3129 = vmatpush1.msra.mxu0 0.0
    %3130 = vmatprep.subr.mxu0 0.0
    %3131 = vmatpush1.msra.mxu0 0.0
    %3132 = vmatprep.subr.mxu0 0.0
    %3133 = vmatpush1.msra.mxu0 0.0
    %3134 = vmatprep.subr.mxu0 0.0
    %3135 = vmatpush1.msra.mxu0 0.0
    %3136 = vmatprep.subr.mxu0 0.0
    %3137 = vmatpush1.msra.mxu0 0.0
    %3138 = vmatprep.subr.mxu0 0.0
    %3139 = vmatpush1.msra.mxu0 0.0
    %3140 = vmatprep.subr.mxu0 0.0
    %3141 = vmatpush1.msra.mxu0 0.0
    %3142 = vmatprep.subr.mxu0 0.0
    %3143 = vmatpush1.msra.mxu0 0.0
    %3144 = vmatprep.subr.mxu0 0.0
    %3145 = vmatpush1.msra.mxu0 0.0
    %3146 = vmatprep.subr.mxu0 0.0
    %3147 = vmatpush1.msra.mxu0 0.0
    %3148 = vmatprep.subr.mxu0 0.0
    %3149 = vmatpush1.msra.mxu0 0.0
    %3150 = vmatprep.subr.mxu0 0.0
    %3151 = vmatpush1.msra.mxu0 0.0
    %3152 = vmatprep.subr.mxu0 0.0
    %3153 = vmatpush1.msra.mxu0 0.0
    %3154 = vmatprep.subr.mxu0 0.0
    %3155 = vmatpush1.msra.mxu0 0.0
    %3156 = vmatprep.subr.mxu0 0.0
    %3157 = vmatpush1.msra.mxu0 0.0
    %3158 = vmatprep.subr.mxu0 0.0
    %3159 = vmatpush1.msra.mxu0 0.0
    %3160 = vmatprep.subr.mxu0 0.0
    %3161 = vmatpush1.msra.mxu0 0.0
    %3162 = vmatprep.subr.mxu0 0.0
    %3163 = vmatpush1.msra.mxu0 0.0
    %3164 = vmatprep.subr.mxu0 0.0
    %3165 = vmatpush1.msra.mxu0 0.0
    %3166 = vmatprep.subr.mxu0 0.0
    %3167 = vmatpush1.msra.mxu0 0.0
    %3168 = vmatprep.subr.mxu0 0.0
    %3169 = vmatpush1.msra.mxu0 0.0
    %3170 = vmatprep.subr.mxu0 0.0
    %3171 = vmatpush1.msra.mxu0 0.0
    %3172 = vmatprep.subr.mxu0 0.0
    %3173 = vmatpush1.msra.mxu0 0.0
    %3174 = vmatprep.subr.mxu0 0.0
    %3175 = vmatpush1.msra.mxu0 0.0
    %3176 = vmatprep.mubr.f32.mxu0 0.0
    %3177 = vmatmul.mubr.f32.gmra.mrb[0].mxu0 %v3107
    %v3178 = vpop.f32.mrb[0].mxu0
    %v3179 = vadd.f32 %v3105, %v3178
    %v3180 = vpop.f32.mrb[0].mxu0
    %3181 = vmatprep.mubr.f32.mxu0 0.0
    %3182 = vmatmul.mubr.f32.gmra.mrb[0].mxu0 %v3110
    %v3183 = vpop.f32.mrb[0].mxu0
    %v3184 = vadd.f32 %v3105, %v3183
    %v3185 = vpop.f32.mrb[0].mxu0
    %3186 = vdwg.mxu0
    %v3187 = vadd.f32 %v3179, %v2521
    %v3188 = vadd.f32 %v3184, %v2522
    %v3189 = vld [vmem:[%s6 + $0x10] sm:$0x1]
    %v3190 = vld [vmem:[%s6 + $0x11] sm:$0x1]
    %v3191 = vsel %vm233, %v3187, 0.0
    %3192 = vadd.xlane.f32.xlu0 %v3191
    %v3193 = vpop.xlane.xlu0 %3192
    %v3194 = vsel %vm1583, %v3188, 0.0
    %3195 = vadd.xlane.f32.xlu0 %v3194
    %v3196 = vpop.xlane.xlu0 %3195
    %v3197 = vmul.f32 %v3193, %v1138
    %v3198 = vmul.f32 %v3196, %v1138
    %v3199 = vsub.f32 %v3187, %v3197
    %v3200 = vsub.f32 %v3188, %v3198
    %v3201 = vmul.f32 %v3199, %v3199
    %v3202 = vmul.f32 %v3200, %v3200
    %v3203 = vsel %vm233, %v3201, 0.0
    %3204 = vadd.xlane.f32.xlu0 %v3203
    %v3205 = vpop.xlane.xlu0 %3204
    %v3206 = vsel %vm1583, %v3202, 0.0
    %3207 = vadd.xlane.f32.xlu0 %v3206
    %v3208 = vpop.xlane.xlu0 %3207
    %v3209 = vmul.f32 %v3205, %v1138
    %v3210 = vmul.f32 %v3208, %v1138
    %v3211 = vadd.f32 %v3209, 1e-06
    %v3212 = vadd.f32 %v3210, 1e-06
    %v3213 = vrsqrt.pop %v3211
    %v3214 = vrsqrt.pop %v3212
    %v3215 = vmul.f32 %v3199, %v3213
    %v3216 = vmul.f32 %v3200, %v3214
    %v3217 = vlaneseq
    %v3218 = vshrl.u32 %v3217, 7
    %v3219 = vsub.s32 0, %v3218
    %v3220 = vrot.slane %v3189, %v3219
    %v3221 = vmul.f32 %v3215, %v3220
    %v3222 = vmul.f32 %v3216, %v3220
    %v3223 = vlaneseq
    %v3224 = vshrl.u32 %v3223, 7
    %v3225 = vsub.s32 0, %v3224
    %v3226 = vrot.slane %v3190, %v3225
    %v3227 = vadd.f32 %v3221, %v3226
    %v3228 = vadd.f32 %v3222, %v3226
    %s3229 = scalar_lea.vmem [#allocation2], 288
    %v3230 = vld [vmem:[%s3229] sm:$0xff]
    %v3231 = vld [vmem:[%s3229 + $0x8] sm:$0xff]
    %v3232 = vld [vmem:[%s3229 + $0x10] sm:$0xff]
    %v3233 = vld [vmem:[%s3229 + $0x18] sm:$0xff]
    %v3234 = vld [vmem:[%s6 + $0x12] sm:$0x1]
    %v3235 = vlaneseq
    %v3236 = vshrl.u32 %v3235, 7
    %v3237 = vsub.s32 0, %v3236
    %v3238 = vrot.slane %v3234, %v3237
    %v3240 = vsel %vm233, %v3227, 0
    %v3243 = vsel %vm233, %v3228, 0
    %3245 = vmatprep.subr.mxu0 0.0
    %3246 = vmatpush1.msra.mxu0 %v3230
    %3247 = vmatprep.subr.mxu0 0.0
    %3248 = vmatpush1.msra.mxu0 %v3231
    %3249 = vmatprep.subr.mxu0 0.0
    %3250 = vmatpush1.msra.mxu0 %v3232
    %3251 = vmatprep.subr.mxu0 0.0
    %3252 = vmatpush1.msra.mxu0 %v3233
    %3253 = vmatprep.subr.mxu0 0.0
    %3254 = vmatpush1.msra.mxu0 0.0
    %3255 = vmatprep.subr.mxu0 0.0
    %3256 = vmatpush1.msra.mxu0 0.0
    %3257 = vmatprep.subr.mxu0 0.0
    %3258 = vmatpush1.msra.mxu0 0.0
    %3259 = vmatprep.subr.mxu0 0.0
    %3260 = vmatpush1.msra.mxu0 0.0
    %3261 = vmatprep.subr.mxu0 0.0
    %3262 = vmatpush1.msra.mxu0 0.0
    %3263 = vmatprep.subr.mxu0 0.0
    %3264 = vmatpush1.msra.mxu0 0.0
    %3265 = vmatprep.subr.mxu0 0.0
    %3266 = vmatpush1.msra.mxu0 0.0
    %3267 = vmatprep.subr.mxu0 0.0
    %3268 = vmatpush1.msra.mxu0 0.0
    %3269 = vmatprep.subr.mxu0 0.0
    %3270 = vmatpush1.msra.mxu0 0.0
    %3271 = vmatprep.subr.mxu0 0.0
    %3272 = vmatpush1.msra.mxu0 0.0
    %3273 = vmatprep.subr.mxu0 0.0
    %3274 = vmatpush1.msra.mxu0 0.0
    %3275 = vmatprep.subr.mxu0 0.0
    %3276 = vmatpush1.msra.mxu0 0.0
    %3277 = vmatprep.subr.mxu0 0.0
    %3278 = vmatpush1.msra.mxu0 0.0
    %3279 = vmatprep.subr.mxu0 0.0
    %3280 = vmatpush1.msra.mxu0 0.0
    %3281 = vmatprep.subr.mxu0 0.0
    %3282 = vmatpush1.msra.mxu0 0.0
    %3283 = vmatprep.subr.mxu0 0.0
    %3284 = vmatpush1.msra.mxu0 0.0
    %3285 = vmatprep.subr.mxu0 0.0
    %3286 = vmatpush1.msra.mxu0 0.0
    %3287 = vmatprep.subr.mxu0 0.0
    %3288 = vmatpush1.msra.mxu0 0.0
    %3289 = vmatprep.subr.mxu0 0.0
    %3290 = vmatpush1.msra.mxu0 0.0
    %3291 = vmatprep.subr.mxu0 0.0
    %3292 = vmatpush1.msra.mxu0 0.0
    %3293 = vmatprep.subr.mxu0 0.0
    %3294 = vmatpush1.msra.mxu0 0.0
    %3295 = vmatprep.subr.mxu0 0.0
    %3296 = vmatpush1.msra.mxu0 0.0
    %3297 = vmatprep.subr.mxu0 0.0
    %3298 = vmatpush1.msra.mxu0 0.0
    %3299 = vmatprep.subr.mxu0 0.0
    %3300 = vmatpush1.msra.mxu0 0.0
    %3301 = vmatprep.subr.mxu0 0.0
    %3302 = vmatpush1.msra.mxu0 0.0
    %3303 = vmatprep.subr.mxu0 0.0
    %3304 = vmatpush1.msra.mxu0 0.0
    %3305 = vmatprep.subr.mxu0 0.0
    %3306 = vmatpush1.msra.mxu0 0.0
    %3307 = vmatprep.subr.mxu0 0.0
    %3308 = vmatpush1.msra.mxu0 0.0
    %3309 = vmatprep.mubr.f32.mxu0 0.0
    %3310 = vmatmul.mubr.f32.gmra.mrb[0].mxu0 %v3240
    %v3311 = vpop.f32.mrb[0].mxu0
    %v3312 = vadd.f32 %v3238, %v3311
    %v3313 = vpop.f32.mrb[0].mxu0
    %3314 = vmatprep.mubr.f32.mxu0 0.0
    %3315 = vmatmul.mubr.f32.gmra.mrb[0].mxu0 %v3243
    %v3316 = vpop.f32.mrb[0].mxu0
    %v3317 = vadd.f32 %v3238, %v3316
    %v3318 = vpop.f32.mrb[0].mxu0
    %3319 = vdwg.mxu0
    %v3320 = vmax.f32 %v3312, 0.0
    %v3321 = vmax.f32 %v3317, 0.0
    %s3322 = scalar_lea.vmem [#allocation5], 128
    %v3323 = vld [vmem:[%s3322] sm:$0xff]
    %v3324 = vld [vmem:[%s3322 + $0x8] sm:$0xff]
    %v3325 = vld [vmem:[%s3322 + $0x10] sm:$0xff]
    %v3326 = vld [vmem:[%s3322 + $0x18] sm:$0xff]
    %v3327 = vld [vmem:[%s3322 + $0x20] sm:$0xff]
    %v3328 = vld [vmem:[%s3322 + $0x28] sm:$0xff]
    %v3329 = vld [vmem:[%s3322 + $0x30] sm:$0xff]
    %v3330 = vld [vmem:[%s3322 + $0x38] sm:$0xff]
    %v3331 = vld [vmem:[%s6 + $0x13] sm:$0x1]
    %v3332 = vlaneseq
    %v3333 = vshrl.u32 %v3332, 7
    %v3334 = vsub.s32 0, %v3333
    %v3335 = vrot.slane %v3331, %v3334
    %v3337 = vsel %vm1277, %v3320, 0
    %v3340 = vsel %vm1277, %v3321, 0
    %3342 = vmatprep.subr.mxu0 0.0
    %3343 = vmatpush1.msra.mxu0 %v3323
    %3344 = vmatprep.subr.mxu0 0.0
    %3345 = vmatpush1.msra.mxu0 %v3324
    %3346 = vmatprep.subr.mxu0 0.0
    %3347 = vmatpush1.msra.mxu0 %v3325
    %3348 = vmatprep.subr.mxu0 0.0
    %3349 = vmatpush1.msra.mxu0 %v3326
    %3350 = vmatprep.subr.mxu0 0.0
    %3351 = vmatpush1.msra.mxu0 %v3327
    %3352 = vmatprep.subr.mxu0 0.0
    %3353 = vmatpush1.msra.mxu0 %v3328
    %3354 = vmatprep.subr.mxu0 0.0
    %3355 = vmatpush1.msra.mxu0 %v3329
    %3356 = vmatprep.subr.mxu0 0.0
    %3357 = vmatpush1.msra.mxu0 %v3330
    %3358 = vmatprep.subr.mxu0 0.0
    %3359 = vmatpush1.msra.mxu0 0.0
    %3360 = vmatprep.subr.mxu0 0.0
    %3361 = vmatpush1.msra.mxu0 0.0
    %3362 = vmatprep.subr.mxu0 0.0
    %3363 = vmatpush1.msra.mxu0 0.0
    %3364 = vmatprep.subr.mxu0 0.0
    %3365 = vmatpush1.msra.mxu0 0.0
    %3366 = vmatprep.subr.mxu0 0.0
    %3367 = vmatpush1.msra.mxu0 0.0
    %3368 = vmatprep.subr.mxu0 0.0
    %3369 = vmatpush1.msra.mxu0 0.0
    %3370 = vmatprep.subr.mxu0 0.0
    %3371 = vmatpush1.msra.mxu0 0.0
    %3372 = vmatprep.subr.mxu0 0.0
    %3373 = vmatpush1.msra.mxu0 0.0
    %3374 = vmatprep.subr.mxu0 0.0
    %3375 = vmatpush1.msra.mxu0 0.0
    %3376 = vmatprep.subr.mxu0 0.0
    %3377 = vmatpush1.msra.mxu0 0.0
    %3378 = vmatprep.subr.mxu0 0.0
    %3379 = vmatpush1.msra.mxu0 0.0
    %3380 = vmatprep.subr.mxu0 0.0
    %3381 = vmatpush1.msra.mxu0 0.0
    %3382 = vmatprep.subr.mxu0 0.0
    %3383 = vmatpush1.msra.mxu0 0.0
    %3384 = vmatprep.subr.mxu0 0.0
    %3385 = vmatpush1.msra.mxu0 0.0
    %3386 = vmatprep.subr.mxu0 0.0
    %3387 = vmatpush1.msra.mxu0 0.0
    %3388 = vmatprep.subr.mxu0 0.0
    %3389 = vmatpush1.msra.mxu0 0.0
    %3390 = vmatprep.subr.mxu0 0.0
    %3391 = vmatpush1.msra.mxu0 0.0
    %3392 = vmatprep.subr.mxu0 0.0
    %3393 = vmatpush1.msra.mxu0 0.0
    %3394 = vmatprep.subr.mxu0 0.0
    %3395 = vmatpush1.msra.mxu0 0.0
    %3396 = vmatprep.subr.mxu0 0.0
    %3397 = vmatpush1.msra.mxu0 0.0
    %3398 = vmatprep.subr.mxu0 0.0
    %3399 = vmatpush1.msra.mxu0 0.0
    %3400 = vmatprep.subr.mxu0 0.0
    %3401 = vmatpush1.msra.mxu0 0.0
    %3402 = vmatprep.subr.mxu0 0.0
    %3403 = vmatpush1.msra.mxu0 0.0
    %3404 = vmatprep.subr.mxu0 0.0
    %3405 = vmatpush1.msra.mxu0 0.0
    %3406 = vmatprep.mubr.f32.mxu0 0.0
    %3407 = vmatmul.mubr.f32.gmra.mrb[0].mxu0 %v3337
    %v3408 = vpop.f32.mrb[0].mxu0
    %v3409 = vadd.f32 %v3335, %v3408
    %v3410 = vpop.f32.mrb[0].mxu0
    %3411 = vmatprep.mubr.f32.mxu0 0.0
    %3412 = vmatmul.mubr.f32.gmra.mrb[0].mxu0 %v3340
    %v3413 = vpop.f32.mrb[0].mxu0
    %v3414 = vadd.f32 %v3335, %v3413
    %v3415 = vpop.f32.mrb[0].mxu0
    %3416 = vdwg.mxu0
    %v3417 = vadd.f32 %v3409, %v3227
    %v3418 = vadd.f32 %v3414, %v3228
    %v3419 = vld [vmem:[%s6 + $0x14] sm:$0x1]
    %v3420 = vld [vmem:[%s6 + $0x15] sm:$0x1]
    %v3421 = vsel %vm233, %v3417, 0.0
    %3422 = vadd.xlane.f32.xlu0 %v3421
    %v3423 = vpop.xlane.xlu0 %3422
    %v3424 = vsel %vm1583, %v3418, 0.0
    %3425 = vadd.xlane.f32.xlu0 %v3424
    %v3426 = vpop.xlane.xlu0 %3425
    %v3427 = vmul.f32 %v3423, %v1138
    %v3428 = vmul.f32 %v3426, %v1138
    %v3429 = vsub.f32 %v3417, %v3427
    %v3430 = vsub.f32 %v3418, %v3428
    %v3431 = vmul.f32 %v3429, %v3429
    %v3432 = vmul.f32 %v3430, %v3430
    %v3433 = vsel %vm233, %v3431, 0.0
    %3434 = vadd.xlane.f32.xlu0 %v3433
    %v3435 = vpop.xlane.xlu0 %3434
    %v3436 = vsel %vm1583, %v3432, 0.0
    %3437 = vadd.xlane.f32.xlu0 %v3436
    %v3438 = vpop.xlane.xlu0 %3437
    %v3439 = vmul.f32 %v3435, %v1138
    %v3440 = vmul.f32 %v3438, %v1138
    %v3441 = vadd.f32 %v3439, 1e-06
    %v3442 = vadd.f32 %v3440, 1e-06
    %v3443 = vrsqrt.pop %v3441
    %v3444 = vrsqrt.pop %v3442
    %v3445 = vmul.f32 %v3429, %v3443
    %v3446 = vmul.f32 %v3430, %v3444
    %v3447 = vlaneseq
    %v3448 = vshrl.u32 %v3447, 7
    %v3449 = vsub.s32 0, %v3448
    %v3450 = vrot.slane %v3419, %v3449
    %v3451 = vmul.f32 %v3445, %v3450
    %v3452 = vmul.f32 %v3446, %v3450
    %v3453 = vlaneseq
    %v3454 = vshrl.u32 %v3453, 7
    %v3455 = vsub.s32 0, %v3454
    %v3456 = vrot.slane %v3420, %v3455
    %v3457 = vadd.f32 %v3451, %v3456
    %v3458 = vadd.f32 %v3452, %v3456
    %v3460 = vsel %vm233, %v3457, 0
    %v3463 = vsel %vm233, %v3458, 0
    %v3466 = vsel %vm233, %v1401, 0
    %v3468 = vsel %vm233, %v1402, 0
    %3470 = vmatprep.subr.mxu0 0.0
    %3471 = vmatpush1.xpose.msra.mxu0 %v3466
    %3472 = vmatprep.subr.mxu0 0.0
    %3473 = vmatpush1.xpose.msra.mxu0 %v3468
    %3474 = vmatprep.subr.mxu0 0.0
    %3475 = vmatpush1.xpose.msra.mxu0 0.0
    %3476 = vmatprep.subr.mxu0 0.0
    %3477 = vmatpush1.xpose.msra.mxu0 0.0
    %3478 = vmatprep.subr.mxu0 0.0
    %3479 = vmatpush1.xpose.msra.mxu0 0.0
    %3480 = vmatprep.subr.mxu0 0.0
    %3481 = vmatpush1.xpose.msra.mxu0 0.0
    %3482 = vmatprep.subr.mxu0 0.0
    %3483 = vmatpush1.xpose.msra.mxu0 0.0
    %3484 = vmatprep.subr.mxu0 0.0
    %3485 = vmatpush1.xpose.msra.mxu0 0.0
    %3486 = vmatprep.subr.mxu0 0.0
    %3487 = vmatpush1.xpose.msra.mxu0 0.0
    %3488 = vmatprep.subr.mxu0 0.0
    %3489 = vmatpush1.xpose.msra.mxu0 0.0
    %3490 = vmatprep.subr.mxu0 0.0
    %3491 = vmatpush1.xpose.msra.mxu0 0.0
    %3492 = vmatprep.subr.mxu0 0.0
    %3493 = vmatpush1.xpose.msra.mxu0 0.0
    %3494 = vmatprep.subr.mxu0 0.0
    %3495 = vmatpush1.xpose.msra.mxu0 0.0
    %3496 = vmatprep.subr.mxu0 0.0
    %3497 = vmatpush1.xpose.msra.mxu0 0.0
    %3498 = vmatprep.subr.mxu0 0.0
    %3499 = vmatpush1.xpose.msra.mxu0 0.0
    %3500 = vmatprep.subr.mxu0 0.0
    %3501 = vmatpush1.xpose.msra.mxu0 0.0
    %3502 = vmatprep.subr.mxu0 0.0
    %3503 = vmatpush1.xpose.msra.mxu0 0.0
    %3504 = vmatprep.subr.mxu0 0.0
    %3505 = vmatpush1.xpose.msra.mxu0 0.0
    %3506 = vmatprep.subr.mxu0 0.0
    %3507 = vmatpush1.xpose.msra.mxu0 0.0
    %3508 = vmatprep.subr.mxu0 0.0
    %3509 = vmatpush1.xpose.msra.mxu0 0.0
    %3510 = vmatprep.subr.mxu0 0.0
    %3511 = vmatpush1.xpose.msra.mxu0 0.0
    %3512 = vmatprep.subr.mxu0 0.0
    %3513 = vmatpush1.xpose.msra.mxu0 0.0
    %3514 = vmatprep.subr.mxu0 0.0
    %3515 = vmatpush1.xpose.msra.mxu0 0.0
    %3516 = vmatprep.subr.mxu0 0.0
    %3517 = vmatpush1.xpose.msra.mxu0 0.0
    %3518 = vmatprep.subr.mxu0 0.0
    %3519 = vmatpush1.xpose.msra.mxu0 0.0
    %3520 = vmatprep.subr.mxu0 0.0
    %3521 = vmatpush1.xpose.msra.mxu0 0.0
    %3522 = vmatprep.subr.mxu0 0.0
    %3523 = vmatpush1.xpose.msra.mxu0 0.0
    %3524 = vmatprep.subr.mxu0 0.0
    %3525 = vmatpush1.xpose.msra.mxu0 0.0
    %3526 = vmatprep.subr.mxu0 0.0
    %3527 = vmatpush1.xpose.msra.mxu0 0.0
    %3528 = vmatprep.subr.mxu0 0.0
    %3529 = vmatpush1.xpose.msra.mxu0 0.0
    %3530 = vmatprep.subr.mxu0 0.0
    %3531 = vmatpush1.xpose.msra.mxu0 0.0
    %3532 = vmatprep.subr.mxu0 0.0
    %3533 = vmatpush1.xpose.msra.mxu0 0.0
    %3534 = vmatprep.mubr.f32.mxu0 0.0
    %3535 = vmatmul.mubr.f32.gmra.mrb[0].mxu0 %v3460
    %v3536 = vpop.f32.mrb[0].mxu0
    %v3537 = vadd.f32 0.0, %v3536
    %v3538 = vpop.f32.mrb[0].mxu0
    %3539 = vmatprep.mubr.f32.mxu0 0.0
    %3540 = vmatmul.mubr.f32.gmra.mrb[0].mxu0 %v3463
    %v3541 = vpop.f32.mrb[0].mxu0
    %v3542 = vadd.f32 0.0, %v3541
    %v3543 = vpop.f32.mrb[0].mxu0
    %3544 = vdwg.mxu0
    %v3545 = vmul.f32 %v3537, %v2709
    %v3546 = vmul.f32 %v3542, %v2710
    %v3547 = vsel %vm1406, %v3545, 0.0
    %vm3548 = vcmask 74752
    %v3549 = vsel %vm3548, %v3546, 0.0
    %v3550 = vadd.f32 %v3547, %v3549
    %v3551 = vrot.slane %v3550, 4
    %v3552 = vadd.f32 %v3550, %v3551
    %v3553 = vrot.slane %v3552, 2
    %v3554 = vadd.f32 %v3552, %v3553
    %v3555 = vrot.slane %v3554, 1
    %v3556 = vadd.f32 %v3554, %v3555
    %3557 = vxpose.xlu0.b32.start [1/16] %v2702, 128
    %3558 = vxpose.xlu0.b32.cont [2/16] 0.0, 128
    %3559 = vxpose.xlu0.b32.cont [3/16] 0.0, 128
    %3560 = vxpose.xlu0.b32.cont [4/16] 0.0, 128
    %3561 = vxpose.xlu0.b32.cont [5/16] 0.0, 128
    %3562 = vxpose.xlu0.b32.cont [6/16] 0.0, 128
    %3563 = vxpose.xlu0.b32.cont [7/16] 0.0, 128
    %3564 = vxpose.xlu0.b32.cont [8/16] 0.0, 128
    %3565 = vxpose.xlu0.b32.cont [9/16] 0.0, 128
    %3566 = vxpose.xlu0.b32.cont [10/16] 0.0, 128
    %3567 = vxpose.xlu0.b32.cont [11/16] 0.0, 128
    %3568 = vxpose.xlu0.b32.cont [12/16] 0.0, 128
    %3569 = vxpose.xlu0.b32.cont [13/16] 0.0, 128
    %3570 = vxpose.xlu0.b32.cont [14/16] 0.0, 128
    %3571 = vxpose.xlu0.b32.cont [15/16] 0.0, 128
    %3572 = vxpose.xlu0.b32.end [16/16] 0.0, 128
    %v3573 = vpop.trf.xlu0
    %v3574 = vpop.trf.xlu0
    %v3575 = vpop.trf.xlu0
    %v3576 = vpop.trf.xlu0
    %v3577 = vpop.trf.xlu0
    %v3578 = vpop.trf.xlu0
    %v3579 = vpop.trf.xlu0
    %v3580 = vpop.trf.xlu0
    %v3581 = vpop.trf.xlu0
    %v3582 = vpop.trf.xlu0
    %v3583 = vpop.trf.xlu0
    %v3584 = vpop.trf.xlu0
    %v3585 = vpop.trf.xlu0
    %v3586 = vpop.trf.xlu0
    %v3587 = vpop.trf.xlu0
    %v3588 = vpop.trf.xlu0
    %3593 = vrot.lane.b32.xlu0 %v3573, 8
    %v3594 = vpop.permute.xlu0 %3593
    %3595 = vrot.lane.b32.xlu0 %v3574, 8
    %v3596 = vpop.permute.xlu0 %3595
    %3597 = vrot.lane.b32.xlu0 %v3575, 8
    %v3598 = vpop.permute.xlu0 %3597
    %3599 = vrot.lane.b32.xlu0 %v3576, 8
    %v3600 = vpop.permute.xlu0 %3599
    %3605 = vrot.lane.b32.xlu0 %v3573, 16
    %v3606 = vpop.permute.xlu0 %3605
    %3607 = vrot.lane.b32.xlu0 %v3574, 16
    %v3608 = vpop.permute.xlu0 %3607
    %3609 = vrot.lane.b32.xlu0 %v3575, 16
    %v3610 = vpop.permute.xlu0 %3609
    %3611 = vrot.lane.b32.xlu0 %v3576, 16
    %v3612 = vpop.permute.xlu0 %3611
    %3617 = vrot.lane.b32.xlu0 %v3573, 24
    %v3618 = vpop.permute.xlu0 %3617
    %3619 = vrot.lane.b32.xlu0 %v3574, 24
    %v3620 = vpop.permute.xlu0 %3619
    %3621 = vrot.lane.b32.xlu0 %v3575, 24
    %v3622 = vpop.permute.xlu0 %3621
    %3623 = vrot.lane.b32.xlu0 %v3576, 24
    %v3624 = vpop.permute.xlu0 %3623
    %v3629 = vsel %vm391, %v3573, %v3594
    %v3630 = vsel %vm391, %v3574, %v3596
    %v3631 = vsel %vm391, %v3575, %v3598
    %v3632 = vsel %vm391, %v3576, %v3600
    %v3633 = vsel %vm396, %v3629, %v3606
    %v3634 = vsel %vm396, %v3630, %v3608
    %v3635 = vsel %vm396, %v3631, %v3610
    %v3636 = vsel %vm396, %v3632, %v3612
    %v3637 = vsel %vm401, %v3633, %v3618
    %v3638 = vsel %vm401, %v3634, %v3620
    %v3639 = vsel %vm401, %v3635, %v3622
    %v3640 = vsel %vm401, %v3636, %v3624
    %v3641 = vmul.f32 %v3637, %v220
    %v3642 = vmul.f32 %v3638, %v221
    %v3643 = vmul.f32 %v3639, %v222
    %v3644 = vmul.f32 %v3640, %v223
    %v3645 = vmul.f32 %v2702, %v2800
    %v3646 = vmul.f32 %v2702, %v2802
    %v3647 = vmul.f32 %v2702, %v2804
    %v3648 = vmul.f32 %v2702, %v2806
    %3649 = vmatprep.subr.mxu0 0.0
    %3650 = vmatpush1.msra.mxu0 %v3641
    %3651 = vmatprep.subr.mxu0 0.0
    %3652 = vmatpush1.msra.mxu0 %v3642
    %3653 = vmatprep.subr.mxu0 0.0
    %3654 = vmatpush1.msra.mxu0 %v3643
    %3655 = vmatprep.subr.mxu0 0.0
    %3656 = vmatpush1.msra.mxu0 %v3644
    %3657 = vmatprep.subr.mxu0 0.0
    %3658 = vmatpush1.msra.mxu0 0.0
    %3659 = vmatprep.subr.mxu0 0.0
    %3660 = vmatpush1.msra.mxu0 0.0
    %3661 = vmatprep.subr.mxu0 0.0
    %3662 = vmatpush1.msra.mxu0 0.0
    %3663 = vmatprep.subr.mxu0 0.0
    %3664 = vmatpush1.msra.mxu0 0.0
    %3665 = vmatprep.subr.mxu0 0.0
    %3666 = vmatpush1.msra.mxu0 0.0
    %3667 = vmatprep.subr.mxu0 0.0
    %3668 = vmatpush1.msra.mxu0 0.0
    %3669 = vmatprep.subr.mxu0 0.0
    %3670 = vmatpush1.msra.mxu0 0.0
    %3671 = vmatprep.subr.mxu0 0.0
    %3672 = vmatpush1.msra.mxu0 0.0
    %3673 = vmatprep.subr.mxu0 0.0
    %3674 = vmatpush1.msra.mxu0 0.0
    %3675 = vmatprep.subr.mxu0 0.0
    %3676 = vmatpush1.msra.mxu0 0.0
    %3677 = vmatprep.subr.mxu0 0.0
    %3678 = vmatpush1.msra.mxu0 0.0
    %3679 = vmatprep.subr.mxu0 0.0
    %3680 = vmatpush1.msra.mxu0 0.0
    %3681 = vmatprep.subr.mxu0 0.0
    %3682 = vmatpush1.msra.mxu0 0.0
    %3683 = vmatprep.subr.mxu0 0.0
    %3684 = vmatpush1.msra.mxu0 0.0
    %3685 = vmatprep.subr.mxu0 0.0
    %3686 = vmatpush1.msra.mxu0 0.0
    %3687 = vmatprep.subr.mxu0 0.0
    %3688 = vmatpush1.msra.mxu0 0.0
    %3689 = vmatprep.subr.mxu0 0.0
    %3690 = vmatpush1.msra.mxu0 0.0
    %3691 = vmatprep.subr.mxu0 0.0
    %3692 = vmatpush1.msra.mxu0 0.0
    %3693 = vmatprep.subr.mxu0 0.0
    %3694 = vmatpush1.msra.mxu0 0.0
    %3695 = vmatprep.subr.mxu0 0.0
    %3696 = vmatpush1.msra.mxu0 0.0
    %3697 = vmatprep.subr.mxu0 0.0
    %3698 = vmatpush1.msra.mxu0 0.0
    %3699 = vmatprep.subr.mxu0 0.0
    %3700 = vmatpush1.msra.mxu0 0.0
    %3701 = vmatprep.subr.mxu0 0.0
    %3702 = vmatpush1.msra.mxu0 0.0
    %3703 = vmatprep.subr.mxu0 0.0
    %3704 = vmatpush1.msra.mxu0 0.0
    %3705 = vmatprep.subr.mxu0 0.0
    %3706 = vmatpush1.msra.mxu0 0.0
    %3707 = vmatprep.subr.mxu0 0.0
    %3708 = vmatpush1.msra.mxu0 0.0
    %3709 = vmatprep.subr.mxu0 0.0
    %3710 = vmatpush1.msra.mxu0 0.0
    %3711 = vmatprep.subr.mxu0 0.0
    %3712 = vmatpush1.msra.mxu0 0.0
    %3713 = vmatprep.mubr.f32.mxu0 0.0
    %3714 = vmatmul.mubr.f32.gmra.mrb[0].mxu0 %v2816
    %v3715 = vpop.f32.mrb[0].mxu0
    %v3716 = vadd.f32 0.0, %v3715
    %v3717 = vpop.f32.mrb[0].mxu0
    %3718 = vmatprep.mubr.f32.mxu0 0.0
    %3719 = vmatmul.mubr.f32.gmra.mrb[0].mxu0 %v2819
    %v3720 = vpop.f32.mrb[0].mxu0
    %v3721 = vadd.f32 0.0, %v3720
    %v3722 = vpop.f32.mrb[0].mxu0
    %3723 = vdwg.mxu0
    %v3724 = vmul.f32 %v3716, 0.35355338
    %v3725 = vmul.f32 %v3721, 0.35355338
    %v3726 = vadd.f32 %v3724, %v864
    %v3727 = vadd.f32 %v3725, %v864
    %v3728 = vsel %vm233, %v3726, -inf
    %3729 = vmax.xlane.f32.xlu0 %v3728
    %v3730 = vpop.xlane.xlu0 %3729
    %v3731 = vsel %vm1583, %v3727, -inf
    %3732 = vmax.xlane.f32.xlu0 %v3731
    %v3733 = vpop.xlane.xlu0 %3732
    %v3734 = vsub.f32 %v3726, %v3730
    %v3735 = vsub.f32 %v3727, %v3733
    %v3736 = vmul.f32 %v3734, 1.442695
    %v3737 = vpow.pop %v3736
    %v3738 = vmul.f32 %v3735, 1.442695
    %v3739 = vpow.pop %v3738
    %v3741 = vsel %vm233, %v3737, 0
    %v3744 = vsel %vm233, %v3739, 0
    %3746 = vmatprep.subr.mxu0 0.0
    %3747 = vmatpush1.msra.mxu0 %v220
    %3748 = vmatprep.subr.mxu0 0.0
    %3749 = vmatpush1.msra.mxu0 %v221
    %3750 = vmatprep.subr.mxu0 0.0
    %3751 = vmatpush1.msra.mxu0 %v222
    %3752 = vmatprep.subr.mxu0 0.0
    %3753 = vmatpush1.msra.mxu0 %v223
    %3754 = vmatprep.subr.mxu0 0.0
    %3755 = vmatpush1.msra.mxu0 0.0
    %3756 = vmatprep.subr.mxu0 0.0
    %3757 = vmatpush1.msra.mxu0 0.0
    %3758 = vmatprep.subr.mxu0 0.0
    %3759 = vmatpush1.msra.mxu0 0.0
    %3760 = vmatprep.subr.mxu0 0.0
    %3761 = vmatpush1.msra.mxu0 0.0
    %3762 = vmatprep.subr.mxu0 0.0
    %3763 = vmatpush1.msra.mxu0 0.0
    %3764 = vmatprep.subr.mxu0 0.0
    %3765 = vmatpush1.msra.mxu0 0.0
    %3766 = vmatprep.subr.mxu0 0.0
    %3767 = vmatpush1.msra.mxu0 0.0
    %3768 = vmatprep.subr.mxu0 0.0
    %3769 = vmatpush1.msra.mxu0 0.0
    %3770 = vmatprep.subr.mxu0 0.0
    %3771 = vmatpush1.msra.mxu0 0.0
    %3772 = vmatprep.subr.mxu0 0.0
    %3773 = vmatpush1.msra.mxu0 0.0
    %3774 = vmatprep.subr.mxu0 0.0
    %3775 = vmatpush1.msra.mxu0 0.0
    %3776 = vmatprep.subr.mxu0 0.0
    %3777 = vmatpush1.msra.mxu0 0.0
    %3778 = vmatprep.subr.mxu0 0.0
    %3779 = vmatpush1.msra.mxu0 0.0
    %3780 = vmatprep.subr.mxu0 0.0
    %3781 = vmatpush1.msra.mxu0 0.0
    %3782 = vmatprep.subr.mxu0 0.0
    %3783 = vmatpush1.msra.mxu0 0.0
    %3784 = vmatprep.subr.mxu0 0.0
    %3785 = vmatpush1.msra.mxu0 0.0
    %3786 = vmatprep.subr.mxu0 0.0
    %3787 = vmatpush1.msra.mxu0 0.0
    %3788 = vmatprep.subr.mxu0 0.0
    %3789 = vmatpush1.msra.mxu0 0.0
    %3790 = vmatprep.subr.mxu0 0.0
    %3791 = vmatpush1.msra.mxu0 0.0
    %3792 = vmatprep.subr.mxu0 0.0
    %3793 = vmatpush1.msra.mxu0 0.0
    %3794 = vmatprep.subr.mxu0 0.0
    %3795 = vmatpush1.msra.mxu0 0.0
    %3796 = vmatprep.subr.mxu0 0.0
    %3797 = vmatpush1.msra.mxu0 0.0
    %3798 = vmatprep.subr.mxu0 0.0
    %3799 = vmatpush1.msra.mxu0 0.0
    %3800 = vmatprep.subr.mxu0 0.0
    %3801 = vmatpush1.msra.mxu0 0.0
    %3802 = vmatprep.subr.mxu0 0.0
    %3803 = vmatpush1.msra.mxu0 0.0
    %3804 = vmatprep.subr.mxu0 0.0
    %3805 = vmatpush1.msra.mxu0 0.0
    %3806 = vmatprep.subr.mxu0 0.0
    %3807 = vmatpush1.msra.mxu0 0.0
    %3808 = vmatprep.subr.mxu0 0.0
    %3809 = vmatpush1.msra.mxu0 0.0
    %3810 = vmatprep.mubr.f32.mxu0 0.0
    %3811 = vmatmul.mubr.f32.gmra.mrb[0].mxu0 %v3741
    %v3812 = vpop.f32.mrb[0].mxu0
    %v3813 = vadd.f32 0.0, %v3812
    %v3814 = vpop.f32.mrb[0].mxu0
    %3815 = vmatprep.mubr.f32.mxu0 0.0
    %3816 = vmatmul.mubr.f32.gmra.mrb[0].mxu0 %v3744
    %v3817 = vpop.f32.mrb[0].mxu0
    %v3818 = vadd.f32 0.0, %v3817
    %v3819 = vpop.f32.mrb[0].mxu0
    %3820 = vdwg.mxu0
    %v3821 = vmax.f32 %v3813, 1e-30
    %v3822 = vmax.f32 %v3818, 1e-30
    %v3823 = vrcp.pop %v3821
    %v3824 = vmul.f32 %v3737, %v3823
    %v3825 = vrcp.pop %v3822
    %v3826 = vmul.f32 %v3739, %v3825
    %3831 = vrot.lane.b32.xlu0 %v3645, 96
    %v3832 = vpop.permute.xlu0 %3831
    %3833 = vrot.lane.b32.xlu0 %v3646, 96
    %v3834 = vpop.permute.xlu0 %3833
    %3835 = vrot.lane.b32.xlu0 %v3647, 96
    %v3836 = vpop.permute.xlu0 %3835
    %3837 = vrot.lane.b32.xlu0 %v3648, 96
    %v3838 = vpop.permute.xlu0 %3837
    %v3844 = vsel %vm233, %v3824, 0
    %v3847 = vsel %vm233, %v3826, 0
    %3849 = vmatprep.subr.mxu0 0.0
    %3850 = vmatpush1.msra.mxu0 %v3832
    %3851 = vmatprep.subr.mxu0 0.0
    %3852 = vmatpush1.msra.mxu0 %v3834
    %3853 = vmatprep.subr.mxu0 0.0
    %3854 = vmatpush1.msra.mxu0 %v3836
    %3855 = vmatprep.subr.mxu0 0.0
    %3856 = vmatpush1.msra.mxu0 %v3838
    %3857 = vmatprep.subr.mxu0 0.0
    %3858 = vmatpush1.msra.mxu0 0.0
    %3859 = vmatprep.subr.mxu0 0.0
    %3860 = vmatpush1.msra.mxu0 0.0
    %3861 = vmatprep.subr.mxu0 0.0
    %3862 = vmatpush1.msra.mxu0 0.0
    %3863 = vmatprep.subr.mxu0 0.0
    %3864 = vmatpush1.msra.mxu0 0.0
    %3865 = vmatprep.subr.mxu0 0.0
    %3866 = vmatpush1.msra.mxu0 0.0
    %3867 = vmatprep.subr.mxu0 0.0
    %3868 = vmatpush1.msra.mxu0 0.0
    %3869 = vmatprep.subr.mxu0 0.0
    %3870 = vmatpush1.msra.mxu0 0.0
    %3871 = vmatprep.subr.mxu0 0.0
    %3872 = vmatpush1.msra.mxu0 0.0
    %3873 = vmatprep.subr.mxu0 0.0
    %3874 = vmatpush1.msra.mxu0 0.0
    %3875 = vmatprep.subr.mxu0 0.0
    %3876 = vmatpush1.msra.mxu0 0.0
    %3877 = vmatprep.subr.mxu0 0.0
    %3878 = vmatpush1.msra.mxu0 0.0
    %3879 = vmatprep.subr.mxu0 0.0
    %3880 = vmatpush1.msra.mxu0 0.0
    %3881 = vmatprep.subr.mxu0 0.0
    %3882 = vmatpush1.msra.mxu0 0.0
    %3883 = vmatprep.subr.mxu0 0.0
    %3884 = vmatpush1.msra.mxu0 0.0
    %3885 = vmatprep.subr.mxu0 0.0
    %3886 = vmatpush1.msra.mxu0 0.0
    %3887 = vmatprep.subr.mxu0 0.0
    %3888 = vmatpush1.msra.mxu0 0.0
    %3889 = vmatprep.subr.mxu0 0.0
    %3890 = vmatpush1.msra.mxu0 0.0
    %3891 = vmatprep.subr.mxu0 0.0
    %3892 = vmatpush1.msra.mxu0 0.0
    %3893 = vmatprep.subr.mxu0 0.0
    %3894 = vmatpush1.msra.mxu0 0.0
    %3895 = vmatprep.subr.mxu0 0.0
    %3896 = vmatpush1.msra.mxu0 0.0
    %3897 = vmatprep.subr.mxu0 0.0
    %3898 = vmatpush1.msra.mxu0 0.0
    %3899 = vmatprep.subr.mxu0 0.0
    %3900 = vmatpush1.msra.mxu0 0.0
    %3901 = vmatprep.subr.mxu0 0.0
    %3902 = vmatpush1.msra.mxu0 0.0
    %3903 = vmatprep.subr.mxu0 0.0
    %3904 = vmatpush1.msra.mxu0 0.0
    %3905 = vmatprep.subr.mxu0 0.0
    %3906 = vmatpush1.msra.mxu0 0.0
    %3907 = vmatprep.subr.mxu0 0.0
    %3908 = vmatpush1.msra.mxu0 0.0
    %3909 = vmatprep.subr.mxu0 0.0
    %3910 = vmatpush1.msra.mxu0 0.0
    %3911 = vmatprep.subr.mxu0 0.0
    %3912 = vmatpush1.msra.mxu0 0.0
    %3913 = vmatprep.mubr.f32.mxu0 0.0
    %3914 = vmatmul.mubr.f32.gmra.mrb[0].mxu0 %v3844
    %v3915 = vpop.f32.mrb[0].mxu0
    %v3916 = vadd.f32 0.0, %v3915
    %v3917 = vpop.f32.mrb[0].mxu0
    %3918 = vmatprep.mubr.f32.mxu0 0.0
    %3919 = vmatmul.mubr.f32.gmra.mrb[0].mxu0 %v3847
    %v3920 = vpop.f32.mrb[0].mxu0
    %v3921 = vadd.f32 0.0, %v3920
    %v3922 = vpop.f32.mrb[0].mxu0
    %3923 = vdwg.mxu0
    %v3925 = vsel %vm233, %v3916, 0
    %v3928 = vsel %vm233, %v3921, 0
    %3930 = vmatprep.subr.mxu0 0.0
    %3931 = vmatpush1.msra.mxu0 %v3097
    %3932 = vmatprep.subr.mxu0 0.0
    %3933 = vmatpush1.msra.mxu0 %v3098
    %3934 = vmatprep.subr.mxu0 0.0
    %3935 = vmatpush1.msra.mxu0 %v3099
    %3936 = vmatprep.subr.mxu0 0.0
    %3937 = vmatpush1.msra.mxu0 %v3100
    %3938 = vmatprep.subr.mxu0 0.0
    %3939 = vmatpush1.msra.mxu0 0.0
    %3940 = vmatprep.subr.mxu0 0.0
    %3941 = vmatpush1.msra.mxu0 0.0
    %3942 = vmatprep.subr.mxu0 0.0
    %3943 = vmatpush1.msra.mxu0 0.0
    %3944 = vmatprep.subr.mxu0 0.0
    %3945 = vmatpush1.msra.mxu0 0.0
    %3946 = vmatprep.subr.mxu0 0.0
    %3947 = vmatpush1.msra.mxu0 0.0
    %3948 = vmatprep.subr.mxu0 0.0
    %3949 = vmatpush1.msra.mxu0 0.0
    %3950 = vmatprep.subr.mxu0 0.0
    %3951 = vmatpush1.msra.mxu0 0.0
    %3952 = vmatprep.subr.mxu0 0.0
    %3953 = vmatpush1.msra.mxu0 0.0
    %3954 = vmatprep.subr.mxu0 0.0
    %3955 = vmatpush1.msra.mxu0 0.0
    %3956 = vmatprep.subr.mxu0 0.0
    %3957 = vmatpush1.msra.mxu0 0.0
    %3958 = vmatprep.subr.mxu0 0.0
    %3959 = vmatpush1.msra.mxu0 0.0
    %3960 = vmatprep.subr.mxu0 0.0
    %3961 = vmatpush1.msra.mxu0 0.0
    %3962 = vmatprep.subr.mxu0 0.0
    %3963 = vmatpush1.msra.mxu0 0.0
    %3964 = vmatprep.subr.mxu0 0.0
    %3965 = vmatpush1.msra.mxu0 0.0
    %3966 = vmatprep.subr.mxu0 0.0
    %3967 = vmatpush1.msra.mxu0 0.0
    %3968 = vmatprep.subr.mxu0 0.0
    %3969 = vmatpush1.msra.mxu0 0.0
    %3970 = vmatprep.subr.mxu0 0.0
    %3971 = vmatpush1.msra.mxu0 0.0
    %3972 = vmatprep.subr.mxu0 0.0
    %3973 = vmatpush1.msra.mxu0 0.0
    %3974 = vmatprep.subr.mxu0 0.0
    %3975 = vmatpush1.msra.mxu0 0.0
    %3976 = vmatprep.subr.mxu0 0.0
    %3977 = vmatpush1.msra.mxu0 0.0
    %3978 = vmatprep.subr.mxu0 0.0
    %3979 = vmatpush1.msra.mxu0 0.0
    %3980 = vmatprep.subr.mxu0 0.0
    %3981 = vmatpush1.msra.mxu0 0.0
    %3982 = vmatprep.subr.mxu0 0.0
    %3983 = vmatpush1.msra.mxu0 0.0
    %3984 = vmatprep.subr.mxu0 0.0
    %3985 = vmatpush1.msra.mxu0 0.0
    %3986 = vmatprep.subr.mxu0 0.0
    %3987 = vmatpush1.msra.mxu0 0.0
    %3988 = vmatprep.subr.mxu0 0.0
    %3989 = vmatpush1.msra.mxu0 0.0
    %3990 = vmatprep.subr.mxu0 0.0
    %3991 = vmatpush1.msra.mxu0 0.0
    %3992 = vmatprep.subr.mxu0 0.0
    %3993 = vmatpush1.msra.mxu0 0.0
    %3994 = vmatprep.mubr.f32.mxu0 0.0
    %3995 = vmatmul.mubr.f32.gmra.mrb[0].mxu0 %v3925
    %v3996 = vpop.f32.mrb[0].mxu0
    %v3997 = vadd.f32 %v3105, %v3996
    %v3998 = vpop.f32.mrb[0].mxu0
    %3999 = vmatprep.mubr.f32.mxu0 0.0
    %4000 = vmatmul.mubr.f32.gmra.mrb[0].mxu0 %v3928
    %v4001 = vpop.f32.mrb[0].mxu0
    %v4002 = vadd.f32 %v3105, %v4001
    %v4003 = vpop.f32.mrb[0].mxu0
    %4004 = vdwg.mxu0
    %v4005 = vadd.f32 %v3997, %v2521
    %v4006 = vadd.f32 %v4002, %v2522
    %v4007 = vsel %vm233, %v4005, 0.0
    %4008 = vadd.xlane.f32.xlu0 %v4007
    %v4009 = vpop.xlane.xlu0 %4008
    %v4010 = vsel %vm1583, %v4006, 0.0
    %4011 = vadd.xlane.f32.xlu0 %v4010
    %v4012 = vpop.xlane.xlu0 %4011
    %v4013 = vmul.f32 %v4009, %v1138
    %v4014 = vmul.f32 %v4012, %v1138
    %v4015 = vsub.f32 %v4005, %v4013
    %v4016 = vsub.f32 %v4006, %v4014
    %v4017 = vmul.f32 %v4015, %v4015
    %v4018 = vmul.f32 %v4016, %v4016
    %v4019 = vsel %vm233, %v4017, 0.0
    %4020 = vadd.xlane.f32.xlu0 %v4019
    %v4021 = vpop.xlane.xlu0 %4020
    %v4022 = vsel %vm1583, %v4018, 0.0
    %4023 = vadd.xlane.f32.xlu0 %v4022
    %v4024 = vpop.xlane.xlu0 %4023
    %v4025 = vmul.f32 %v4021, %v1138
    %v4026 = vmul.f32 %v4024, %v1138
    %v4027 = vadd.f32 %v4025, 1e-06
    %v4028 = vadd.f32 %v4026, 1e-06
    %v4029 = vrsqrt.pop %v4027
    %v4030 = vrsqrt.pop %v4028
    %v4031 = vmul.f32 %v4015, %v4029
    %v4032 = vmul.f32 %v4016, %v4030
    %v4033 = vmul.f32 %v4031, %v3220
    %v4034 = vmul.f32 %v4032, %v3220
    %v4035 = vadd.f32 %v4033, %v3226
    %v4036 = vadd.f32 %v4034, %v3226
    %v4038 = vsel %vm233, %v4035, 0
    %v4041 = vsel %vm233, %v4036, 0
    %4043 = vmatprep.subr.mxu0 0.0
    %4044 = vmatpush1.msra.mxu0 %v3230
    %4045 = vmatprep.subr.mxu0 0.0
    %4046 = vmatpush1.msra.mxu0 %v3231
    %4047 = vmatprep.subr.mxu0 0.0
    %4048 = vmatpush1.msra.mxu0 %v3232
    %4049 = vmatprep.subr.mxu0 0.0
    %4050 = vmatpush1.msra.mxu0 %v3233
    %4051 = vmatprep.subr.mxu0 0.0
    %4052 = vmatpush1.msra.mxu0 0.0
    %4053 = vmatprep.subr.mxu0 0.0
    %4054 = vmatpush1.msra.mxu0 0.0
    %4055 = vmatprep.subr.mxu0 0.0
    %4056 = vmatpush1.msra.mxu0 0.0
    %4057 = vmatprep.subr.mxu0 0.0
    %4058 = vmatpush1.msra.mxu0 0.0
    %4059 = vmatprep.subr.mxu0 0.0
    %4060 = vmatpush1.msra.mxu0 0.0
    %4061 = vmatprep.subr.mxu0 0.0
    %4062 = vmatpush1.msra.mxu0 0.0
    %4063 = vmatprep.subr.mxu0 0.0
    %4064 = vmatpush1.msra.mxu0 0.0
    %4065 = vmatprep.subr.mxu0 0.0
    %4066 = vmatpush1.msra.mxu0 0.0
    %4067 = vmatprep.subr.mxu0 0.0
    %4068 = vmatpush1.msra.mxu0 0.0
    %4069 = vmatprep.subr.mxu0 0.0
    %4070 = vmatpush1.msra.mxu0 0.0
    %4071 = vmatprep.subr.mxu0 0.0
    %4072 = vmatpush1.msra.mxu0 0.0
    %4073 = vmatprep.subr.mxu0 0.0
    %4074 = vmatpush1.msra.mxu0 0.0
    %4075 = vmatprep.subr.mxu0 0.0
    %4076 = vmatpush1.msra.mxu0 0.0
    %4077 = vmatprep.subr.mxu0 0.0
    %4078 = vmatpush1.msra.mxu0 0.0
    %4079 = vmatprep.subr.mxu0 0.0
    %4080 = vmatpush1.msra.mxu0 0.0
    %4081 = vmatprep.subr.mxu0 0.0
    %4082 = vmatpush1.msra.mxu0 0.0
    %4083 = vmatprep.subr.mxu0 0.0
    %4084 = vmatpush1.msra.mxu0 0.0
    %4085 = vmatprep.subr.mxu0 0.0
    %4086 = vmatpush1.msra.mxu0 0.0
    %4087 = vmatprep.subr.mxu0 0.0
    %4088 = vmatpush1.msra.mxu0 0.0
    %4089 = vmatprep.subr.mxu0 0.0
    %4090 = vmatpush1.msra.mxu0 0.0
    %4091 = vmatprep.subr.mxu0 0.0
    %4092 = vmatpush1.msra.mxu0 0.0
    %4093 = vmatprep.subr.mxu0 0.0
    %4094 = vmatpush1.msra.mxu0 0.0
    %4095 = vmatprep.subr.mxu0 0.0
    %4096 = vmatpush1.msra.mxu0 0.0
    %4097 = vmatprep.subr.mxu0 0.0
    %4098 = vmatpush1.msra.mxu0 0.0
    %4099 = vmatprep.subr.mxu0 0.0
    %4100 = vmatpush1.msra.mxu0 0.0
    %4101 = vmatprep.subr.mxu0 0.0
    %4102 = vmatpush1.msra.mxu0 0.0
    %4103 = vmatprep.subr.mxu0 0.0
    %4104 = vmatpush1.msra.mxu0 0.0
    %4105 = vmatprep.subr.mxu0 0.0
    %4106 = vmatpush1.msra.mxu0 0.0
    %4107 = vmatprep.mubr.f32.mxu0 0.0
    %4108 = vmatmul.mubr.f32.gmra.mrb[0].mxu0 %v4038
    %v4109 = vpop.f32.mrb[0].mxu0
    %v4110 = vadd.f32 %v3238, %v4109
    %v4111 = vpop.f32.mrb[0].mxu0
    %4112 = vmatprep.mubr.f32.mxu0 0.0
    %4113 = vmatmul.mubr.f32.gmra.mrb[0].mxu0 %v4041
    %v4114 = vpop.f32.mrb[0].mxu0
    %v4115 = vadd.f32 %v3238, %v4114
    %v4116 = vpop.f32.mrb[0].mxu0
    %4117 = vdwg.mxu0
    %v4118 = vmax.f32 %v4110, 0.0
    %v4119 = vmax.f32 %v4115, 0.0
    %v4121 = vsel %vm1277, %v4118, 0
    %v4124 = vsel %vm1277, %v4119, 0
    %4126 = vmatprep.subr.mxu0 0.0
    %4127 = vmatpush1.msra.mxu0 %v3323
    %4128 = vmatprep.subr.mxu0 0.0
    %4129 = vmatpush1.msra.mxu0 %v3324
    %4130 = vmatprep.subr.mxu0 0.0
    %4131 = vmatpush1.msra.mxu0 %v3325
    %4132 = vmatprep.subr.mxu0 0.0
    %4133 = vmatpush1.msra.mxu0 %v3326
    %4134 = vmatprep.subr.mxu0 0.0
    %4135 = vmatpush1.msra.mxu0 %v3327
    %4136 = vmatprep.subr.mxu0 0.0
    %4137 = vmatpush1.msra.mxu0 %v3328
    %4138 = vmatprep.subr.mxu0 0.0
    %4139 = vmatpush1.msra.mxu0 %v3329
    %4140 = vmatprep.subr.mxu0 0.0
    %4141 = vmatpush1.msra.mxu0 %v3330
    %4142 = vmatprep.subr.mxu0 0.0
    %4143 = vmatpush1.msra.mxu0 0.0
    %4144 = vmatprep.subr.mxu0 0.0
    %4145 = vmatpush1.msra.mxu0 0.0
    %4146 = vmatprep.subr.mxu0 0.0
    %4147 = vmatpush1.msra.mxu0 0.0
    %4148 = vmatprep.subr.mxu0 0.0
    %4149 = vmatpush1.msra.mxu0 0.0
    %4150 = vmatprep.subr.mxu0 0.0
    %4151 = vmatpush1.msra.mxu0 0.0
    %4152 = vmatprep.subr.mxu0 0.0
    %4153 = vmatpush1.msra.mxu0 0.0
    %4154 = vmatprep.subr.mxu0 0.0
    %4155 = vmatpush1.msra.mxu0 0.0
    %4156 = vmatprep.subr.mxu0 0.0
    %4157 = vmatpush1.msra.mxu0 0.0
    %4158 = vmatprep.subr.mxu0 0.0
    %4159 = vmatpush1.msra.mxu0 0.0
    %4160 = vmatprep.subr.mxu0 0.0
    %4161 = vmatpush1.msra.mxu0 0.0
    %4162 = vmatprep.subr.mxu0 0.0
    %4163 = vmatpush1.msra.mxu0 0.0
    %4164 = vmatprep.subr.mxu0 0.0
    %4165 = vmatpush1.msra.mxu0 0.0
    %4166 = vmatprep.subr.mxu0 0.0
    %4167 = vmatpush1.msra.mxu0 0.0
    %4168 = vmatprep.subr.mxu0 0.0
    %4169 = vmatpush1.msra.mxu0 0.0
    %4170 = vmatprep.subr.mxu0 0.0
    %4171 = vmatpush1.msra.mxu0 0.0
    %4172 = vmatprep.subr.mxu0 0.0
    %4173 = vmatpush1.msra.mxu0 0.0
    %4174 = vmatprep.subr.mxu0 0.0
    %4175 = vmatpush1.msra.mxu0 0.0
    %4176 = vmatprep.subr.mxu0 0.0
    %4177 = vmatpush1.msra.mxu0 0.0
    %4178 = vmatprep.subr.mxu0 0.0
    %4179 = vmatpush1.msra.mxu0 0.0
    %4180 = vmatprep.subr.mxu0 0.0
    %4181 = vmatpush1.msra.mxu0 0.0
    %4182 = vmatprep.subr.mxu0 0.0
    %4183 = vmatpush1.msra.mxu0 0.0
    %4184 = vmatprep.subr.mxu0 0.0
    %4185 = vmatpush1.msra.mxu0 0.0
    %4186 = vmatprep.subr.mxu0 0.0
    %4187 = vmatpush1.msra.mxu0 0.0
    %4188 = vmatprep.subr.mxu0 0.0
    %4189 = vmatpush1.msra.mxu0 0.0
    %4190 = vmatprep.mubr.f32.mxu0 0.0
    %4191 = vmatmul.mubr.f32.gmra.mrb[0].mxu0 %v4121
    %v4192 = vpop.f32.mrb[0].mxu0
    %v4193 = vadd.f32 %v3335, %v4192
    %v4194 = vpop.f32.mrb[0].mxu0
    %4195 = vmatprep.mubr.f32.mxu0 0.0
    %4196 = vmatmul.mubr.f32.gmra.mrb[0].mxu0 %v4124
    %v4197 = vpop.f32.mrb[0].mxu0
    %v4198 = vadd.f32 %v3335, %v4197
    %v4199 = vpop.f32.mrb[0].mxu0
    %4200 = vdwg.mxu0
    %v4201 = vadd.f32 %v4193, %v4035
    %v4202 = vadd.f32 %v4198, %v4036
    %v4203 = vsel %vm233, %v4201, 0.0
    %4204 = vadd.xlane.f32.xlu0 %v4203
    %v4205 = vpop.xlane.xlu0 %4204
    %v4206 = vsel %vm1583, %v4202, 0.0
    %4207 = vadd.xlane.f32.xlu0 %v4206
    %v4208 = vpop.xlane.xlu0 %4207
    %v4209 = vmul.f32 %v4205, %v1138
    %v4210 = vmul.f32 %v4208, %v1138
    %v4211 = vsub.f32 %v4201, %v4209
    %v4212 = vsub.f32 %v4202, %v4210
    %v4213 = vmul.f32 %v4211, %v4211
    %v4214 = vmul.f32 %v4212, %v4212
    %v4215 = vsel %vm233, %v4213, 0.0
    %4216 = vadd.xlane.f32.xlu0 %v4215
    %v4217 = vpop.xlane.xlu0 %4216
    %v4218 = vsel %vm1583, %v4214, 0.0
    %4219 = vadd.xlane.f32.xlu0 %v4218
    %v4220 = vpop.xlane.xlu0 %4219
    %v4221 = vmul.f32 %v4217, %v1138
    %v4222 = vmul.f32 %v4220, %v1138
    %v4223 = vadd.f32 %v4221, 1e-06
    %v4224 = vadd.f32 %v4222, 1e-06
    %v4225 = vrsqrt.pop %v4223
    %v4226 = vrsqrt.pop %v4224
    %v4227 = vmul.f32 %v4211, %v4225
    %v4228 = vmul.f32 %v4212, %v4226
    %v4229 = vmul.f32 %v4227, %v3450
    %v4230 = vmul.f32 %v4228, %v3450
    %v4231 = vadd.f32 %v4229, %v3456
    %v4232 = vadd.f32 %v4230, %v3456
    %v4234 = vsel %vm233, %v4231, 0
    %v4237 = vsel %vm233, %v4232, 0
    %4239 = vmatprep.subr.mxu0 0.0
    %4240 = vmatpush1.xpose.msra.mxu0 %v3466
    %4241 = vmatprep.subr.mxu0 0.0
    %4242 = vmatpush1.xpose.msra.mxu0 %v3468
    %4243 = vmatprep.subr.mxu0 0.0
    %4244 = vmatpush1.xpose.msra.mxu0 0.0
    %4245 = vmatprep.subr.mxu0 0.0
    %4246 = vmatpush1.xpose.msra.mxu0 0.0
    %4247 = vmatprep.subr.mxu0 0.0
    %4248 = vmatpush1.xpose.msra.mxu0 0.0
    %4249 = vmatprep.subr.mxu0 0.0
    %4250 = vmatpush1.xpose.msra.mxu0 0.0
    %4251 = vmatprep.subr.mxu0 0.0
    %4252 = vmatpush1.xpose.msra.mxu0 0.0
    %4253 = vmatprep.subr.mxu0 0.0
    %4254 = vmatpush1.xpose.msra.mxu0 0.0
    %4255 = vmatprep.subr.mxu0 0.0
    %4256 = vmatpush1.xpose.msra.mxu0 0.0
    %4257 = vmatprep.subr.mxu0 0.0
    %4258 = vmatpush1.xpose.msra.mxu0 0.0
    %4259 = vmatprep.subr.mxu0 0.0
    %4260 = vmatpush1.xpose.msra.mxu0 0.0
    %4261 = vmatprep.subr.mxu0 0.0
    %4262 = vmatpush1.xpose.msra.mxu0 0.0
    %4263 = vmatprep.subr.mxu0 0.0
    %4264 = vmatpush1.xpose.msra.mxu0 0.0
    %4265 = vmatprep.subr.mxu0 0.0
    %4266 = vmatpush1.xpose.msra.mxu0 0.0
    %4267 = vmatprep.subr.mxu0 0.0
    %4268 = vmatpush1.xpose.msra.mxu0 0.0
    %4269 = vmatprep.subr.mxu0 0.0
    %4270 = vmatpush1.xpose.msra.mxu0 0.0
    %4271 = vmatprep.subr.mxu0 0.0
    %4272 = vmatpush1.xpose.msra.mxu0 0.0
    %4273 = vmatprep.subr.mxu0 0.0
    %4274 = vmatpush1.xpose.msra.mxu0 0.0
    %4275 = vmatprep.subr.mxu0 0.0
    %4276 = vmatpush1.xpose.msra.mxu0 0.0
    %4277 = vmatprep.subr.mxu0 0.0
    %4278 = vmatpush1.xpose.msra.mxu0 0.0
    %4279 = vmatprep.subr.mxu0 0.0
    %4280 = vmatpush1.xpose.msra.mxu0 0.0
    %4281 = vmatprep.subr.mxu0 0.0
    %4282 = vmatpush1.xpose.msra.mxu0 0.0
    %4283 = vmatprep.subr.mxu0 0.0
    %4284 = vmatpush1.xpose.msra.mxu0 0.0
    %4285 = vmatprep.subr.mxu0 0.0
    %4286 = vmatpush1.xpose.msra.mxu0 0.0
    %4287 = vmatprep.subr.mxu0 0.0
    %4288 = vmatpush1.xpose.msra.mxu0 0.0
    %4289 = vmatprep.subr.mxu0 0.0
    %4290 = vmatpush1.xpose.msra.mxu0 0.0
    %4291 = vmatprep.subr.mxu0 0.0
    %4292 = vmatpush1.xpose.msra.mxu0 0.0
    %4293 = vmatprep.subr.mxu0 0.0
    %4294 = vmatpush1.xpose.msra.mxu0 0.0
    %4295 = vmatprep.subr.mxu0 0.0
    %4296 = vmatpush1.xpose.msra.mxu0 0.0
    %4297 = vmatprep.subr.mxu0 0.0
    %4298 = vmatpush1.xpose.msra.mxu0 0.0
    %4299 = vmatprep.subr.mxu0 0.0
    %4300 = vmatpush1.xpose.msra.mxu0 0.0
    %4301 = vmatprep.subr.mxu0 0.0
    %4302 = vmatpush1.xpose.msra.mxu0 0.0
    %4303 = vmatprep.mubr.f32.mxu0 0.0
    %4304 = vmatmul.mubr.f32.gmra.mrb[0].mxu0 %v4234
    %v4305 = vpop.f32.mrb[0].mxu0
    %v4306 = vadd.f32 0.0, %v4305
    %v4307 = vpop.f32.mrb[0].mxu0
    %4308 = vmatprep.mubr.f32.mxu0 0.0
    %4309 = vmatmul.mubr.f32.gmra.mrb[0].mxu0 %v4237
    %v4310 = vpop.f32.mrb[0].mxu0
    %v4311 = vadd.f32 0.0, %v4310
    %v4312 = vpop.f32.mrb[0].mxu0
    %4313 = vdwg.mxu0
    %v4314 = vmul.f32 %v4306, %v2709
    %v4315 = vmul.f32 %v4311, %v2710
    %v4316 = vsel %vm1406, %v4314, 0.0
    %v4317 = vsel %vm3548, %v4315, 0.0
    %v4318 = vadd.f32 %v4316, %v4317
    %v4319 = vrot.slane %v4318, 4
    %v4320 = vadd.f32 %v4318, %v4319
    %v4321 = vrot.slane %v4320, 2
    %v4322 = vadd.f32 %v4320, %v4321
    %v4323 = vrot.slane %v4322, 1
    %v4324 = vadd.f32 %v4322, %v4323
    %vm4325 = vcmask 1040384
    %v4326 = vsel %vm4325, %v3556, %v4324
    %v4327 = vld [vmem:[%s6 + $0x16] sm:$0x1]
    %v4328 = vlaneseq
    %v4329 = vshrl.u32 %v4328, 7
    %v4330 = vsub.s32 0, %v4329
    %v4331 = vrot.slane %v4327, %v4330
    %v4332 = vadd.f32 %v4326, %v4331
    %4333 = vst.msk [vmem:[#allocation7] sm:$0x3] %vm3548, %v4332
    // Predicated region
    $region38: #{mrmp_forward.1} parent=1 // pred_check
      _
    $region39: #{mrmp_forward.1} parent=1 // pred_check_branch
      %4335 = sbr.rel (0) target = $region41
    $region40: #{mrmp_forward.1} parent=1 // pred_region
      %s4337 = ssub.s32 32, 32
      %4338 = vsyncadd [#allocation4], %s4337
      %s4340 = sshll.u32 [#allocation7], 4
      %s4341 = int_to_ptr.vmem [resolvable:$true] %s4340
      %4343 = dma.vmem_to_hbm [thread:$0]  %s4341, 32, %s7, [#allocation4]
    $region41: #{mrmp_forward.1} parent=1 // pred_fallthru
      _
    // Predicated region
    $region42: #{mrmp_forward.1} parent=1 // pred_check
      _
    $region43: #{mrmp_forward.1} parent=1 // pred_check_branch
      %4345 = sbr.rel (0) target = $region45
    $region44: #{mrmp_forward.1} parent=1 // pred_region
      %s4347 = ssub.s32 256, 256
      %4348 = vsyncadd [#allocation9], %s4347
      %s4349 = sshll.u32 [#allocation8], 4
      %s4350 = int_to_ptr.vmem [resolvable:$true] %s4349
      %4355 = dma.vmem_to_hbm [thread:$0]  %s4350, 256, %s8, [#allocation9], 128, 128, 8
    $region45: #{mrmp_forward.1} parent=1 // pred_fallthru
      _
    // Predicated region
    $region46: #{mrmp_forward.1} parent=1 // pred_check
      _
    $region47: #{mrmp_forward.1} parent=1 // pred_check_branch
      %4357 = sbr.rel (0) target = $region49
    $region48: #{mrmp_forward.1} parent=1 // pred_region
      %s4359 = ssub.s32 128, 128
      %4360 = vsyncadd [#allocation9], %s4359
      %s4362 = sshll.u32 [#allocation10], 4
      %s4363 = int_to_ptr.vmem [resolvable:$true] %s4362
      %4365 = dma.vmem_to_hbm [thread:$0]  %s4363, 128, %s9, [#allocation9]
    $region49: #{mrmp_forward.1} parent=1 // pred_fallthru
      _
    // Predicated region
    $region50: #{mrmp_forward.1} parent=1 // pred_check
      _
    $region51: #{mrmp_forward.1} parent=1 // pred_check_branch
      %4367 = sbr.rel (0) target = $region53
    $region52: #{mrmp_forward.1} parent=1 // pred_region
      %4368 = dma.done [#allocation4], 32
    $region53: #{mrmp_forward.1} parent=1 // pred_fallthru
      _
    // Predicated region
    $region54: #{mrmp_forward.1} parent=1 // pred_check
      _
    $region55: #{mrmp_forward.1} parent=1 // pred_check_branch
      %4370 = sbr.rel (0) target = $region57
    $region56: #{mrmp_forward.1} parent=1 // pred_region
      %4371 = dma.done [#allocation9], 256
    $region57: #{mrmp_forward.1} parent=1 // pred_fallthru
      _
    // Predicated region
    $region58: #{mrmp_forward.1} parent=1 // pred_check
      _
    $region59: #{mrmp_forward.1} parent=1 // pred_check_branch
      %4373 = sbr.rel (0) target = $region61
    $region60: #{mrmp_forward.1} parent=1 // pred_region
      %4374 = dma.done [#allocation9], 128
    $region61: #{mrmp_forward.1} parent=1 // pred_fallthru
      _
    %4375 = vsyncpa [#allocation3], 1
    %4376 = vsyncpa [#allocation6], 1
    %4377 = vsyncpa [#allocation4], 1
    %4378 = vsyncpa [#allocation9], 1

</llo_original>
